<compile_context>
chip_gen: v5e
topology: v5e:2x2
jax: 0.10.0
libtpu: 0.0.40
codegen_flags: <defaults>
</compile_context>

<pallas_src>
import jax
import jax.numpy as jnp
from jax.experimental import pallas as pl
from jax.experimental.pallas import tpu as pltpu

INPUT_DIM = 768
HIDDEN_DIMS = (512, 256)
LATENT_DIM = 50        # real latent width (PyTorch module)
LATENT_PAD = 128       # lane-dense padded latent width used inside the kernel
N_HEADS = 5            # numerically irrelevant at seq_len == 1 (softmax over length-1 axis)
EPS = 1e-5


# --------------------------------------------------------------------------- kernel
def attention_autoencoder_kernel(
    x_ref,
    w1_ref, b1_ref, w2_ref, b2_ref,          # encoder MLP
    w3f_ref, b3f_ref,                        # W3 folded with residual+attention (see prepare_params)
    gamma_ref, beta_ref,                     # LayerNorm affine (zero-padded to 128)
    wd_ref, bd_ref,                          # decoder (zero-padded rows)
    latent_ref, recon_ref,
):
    f32 = jnp.float32

    # ---- Encoder MLP (nn.Dropout -> identity in inference mode) ----
    # x arrives f32 from HBM; cast to the matmul dtype in-kernel (no host pass over x).
    x = x_ref[...].astype(w1_ref.dtype)
    h1 = jnp.dot(x, w1_ref[...], preferred_element_type=f32) + b1_ref[...]
    h1 = jnp.maximum(h1, 0.0)
    h2 = jnp.dot(h1.astype(w2_ref.dtype), w2_ref[...], preferred_element_type=f32) + b2_ref[...]
    h2 = jnp.maximum(h2, 0.0)

    # ---- latent_initial + length-1-softmax attention + residual, all folded into one matmul ----
    # s = z0 + out_proj(v_proj(z0)) = h2 @ (W3 @ (I + Wv@Wo)) + (b3 @ (I + Wv@Wo) + bv@Wo + bo)
    # Padded lanes (50..127) of s are exactly 0 (padded weight columns / bias lanes are 0).
    s = jnp.dot(h2.astype(w3f_ref.dtype), w3f_ref[...], preferred_element_type=f32) + b3f_ref[...]

    # ---- LayerNorm over the real 50 latent lanes ----
    lane = jax.lax.broadcasted_iota(jnp.int32, (1, LATENT_PAD), 1)
    mask = lane < LATENT_DIM
    inv_n = 1.0 / LATENT_DIM
    mean = jnp.sum(s, axis=-1, keepdims=True) * inv_n          # pad lanes of s are exactly 0
    c = jnp.where(mask, s - mean, 0.0)                         # single centering mask
    var = jnp.sum(c * c, axis=-1, keepdims=True) * inv_n
    latent = c * jax.lax.rsqrt(var + EPS) * gamma_ref[...] + beta_ref[...]   # pad lanes -> 0
    latent_mm = latent.astype(wd_ref.dtype)
    latent_ref[...] = latent_mm.astype(latent_ref.dtype)       # lane-dense bf16 store

    # ---- Decoder (padded Wd rows are zero, so pad lanes contribute nothing) ----
    recon = jnp.dot(latent_mm, wd_ref[...], preferred_element_type=f32) + bd_ref[...]
    recon_ref[...] = recon.astype(recon_ref.dtype)


# --------------------------------------------------------------------------- params
def init_params(key, dtype=jnp.float32):
    """Deterministic synthetic parameters (shapes match the PyTorch module)."""
    ks = jax.random.split(key, 6)
    s = 0.05

    def lin(k, din, dout):
        kw, kb = jax.random.split(k)
        w = (jax.random.normal(kw, (din, dout)) * s).astype(dtype)   # stored (in, out)
        b = (jax.random.normal(kb, (1, dout)) * s).astype(dtype)     # (1, out)
        return w, b

    w1, b1 = lin(ks[0], INPUT_DIM, HIDDEN_DIMS[0])
    w2, b2 = lin(ks[1], HIDDEN_DIMS[0], HIDDEN_DIMS[1])
    w3, b3 = lin(ks[2], HIDDEN_DIMS[1], LATENT_DIM)
    wv, bv = lin(ks[3], LATENT_DIM, LATENT_DIM)      # value projection (slice of in_proj)
    wo, bo = lin(ks[4], LATENT_DIM, LATENT_DIM)      # attention out_proj
    gamma = jnp.ones((1, LATENT_DIM), dtype)
    beta = jnp.zeros((1, LATENT_DIM), dtype)
    wd, bd = lin(ks[5], LATENT_DIM, INPUT_DIM)
    return (w1, b1, w2, b2, w3, b3, wv, bv, wo, bo, gamma, beta, wd, bd)


def _pad_cols(a, total):
    return jnp.pad(a, ((0, 0), (0, total - a.shape[1])))


def prepare_params(params, *, use_bf16=True):
    """Fold attention (+residual) into W3, zero-pad latent 50->128, cast weights for the MXU."""
    (w1, b1, w2, b2, w3, b3, wv, bv, wo, bo, gamma, beta, wd, bd) = params
    f32 = jnp.float32
    mm_dtype = jnp.bfloat16 if use_bf16 else jnp.float32
    pad = LATENT_PAD - LATENT_DIM

    # seq_len == 1 -> attn = z0 @ (Wv@Wo) + (bv@Wo + bo); fold residual: s = z0 @ (I + Wv@Wo) + ...
    wvo = jnp.dot(wv.astype(f32), wo.astype(f32))                        # (50, 50)
    bvo = jnp.dot(bv.astype(f32), wo.astype(f32)) + bo.astype(f32)       # (1, 50)
    m = jnp.eye(LATENT_DIM, dtype=f32) + wvo
    w3f = jnp.dot(w3.astype(f32), m)                                     # (256, 50)
    b3f = jnp.dot(b3.astype(f32), m) + bvo                               # (1, 50)

    w3fp = _pad_cols(w3f, LATENT_PAD)                                    # (256, 128), pad cols = 0
    b3fp = _pad_cols(b3f, LATENT_PAD)                                    # (1, 128),   pad lanes = 0
    gammap = _pad_cols(gamma.astype(f32), LATENT_PAD)                    # pad lanes = 0
    betap = _pad_cols(beta.astype(f32), LATENT_PAD)                      # pad lanes = 0
    wdp = jnp.pad(wd.astype(f32), ((0, pad), (0, 0)))                    # (128, 768), pad rows = 0

    kernel_params = (
        w1.astype(mm_dtype), b1.astype(f32),
        w2.astype(mm_dtype), b2.astype(f32),
        w3fp.astype(mm_dtype), b3fp,
        gammap, betap,
        wdp.astype(mm_dtype), bd.astype(f32),
    )
    return kernel_params


# --------------------------------------------------------------------------- wrapper
def attention_autoencoder_forward(x, params, *, tb=512, use_bf16=True, out_dtype=jnp.bfloat16):
    """Returns PADDED outputs: latent (Bp, 128) and recon (Bp, 768) in out_dtype.

    Valid data is rows [:B] and latent lanes [:50]; slicing is left to the consumer
    so a memory-bound kernel isn't followed by an extra HBM pass over its outputs.
    """
    B, D = x.shape
    assert D == INPUT_DIM

    kernel_params = prepare_params(params, use_bf16=use_bf16)

    # Tile selection: big tiles amortize the ~0.35us/step pipeline overhead, but cap so the
    # grid has >= 2 (even) steps to keep both v7x TensorCores busy. Multiple of 16 for bf16
    # output sublane packing (also satisfies f32's multiple-of-8 for the x block).
    def round_up(v, m):
        return ((v + m - 1) // m) * m

    tb_eff = max(16, min(tb, round_up(-(-B // 2), 16)))
    assert tb_eff % 16 == 0
    n_tiles = -(-B // tb_eff)
    Bp = n_tiles * tb_eff

    xk = x  # keep f32 in HBM; cast to bf16 inside the kernel (no host cast pass over x)
    if Bp != B:
        xk = jnp.pad(xk, ((0, Bp - B), (0, 0)))

    def batch_spec(feat):
        return pl.BlockSpec((tb_eff, feat), lambda i: (i, 0))

    def full_spec(p):
        return pl.BlockSpec(p.shape, lambda i: (0,) * p.ndim)

    in_specs = [batch_spec(INPUT_DIM)] + [full_spec(p) for p in kernel_params]
    out_specs = [batch_spec(LATENT_PAD), batch_spec(INPUT_DIM)]

    weight_bytes = sum(int(p.size) * p.dtype.itemsize for p in kernel_params)
    out_itemsize = jnp.dtype(out_dtype).itemsize
    io_bytes = Bp * (INPUT_DIM * xk.dtype.itemsize + (LATENT_PAD + INPUT_DIM) * out_itemsize)
    cost = pl.CostEstimate(
        flops=2 * Bp * (INPUT_DIM * HIDDEN_DIMS[0]
                        + HIDDEN_DIMS[0] * HIDDEN_DIMS[1]
                        + HIDDEN_DIMS[1] * LATENT_PAD
                        + LATENT_PAD * INPUT_DIM),
        transcendentals=Bp,
        bytes_accessed=weight_bytes + io_bytes,
    )

    latent_pad, recon_pad = pl.pallas_call(
        attention_autoencoder_kernel,
        out_shape=(
            jax.ShapeDtypeStruct((Bp, LATENT_PAD), out_dtype),
            jax.ShapeDtypeStruct((Bp, INPUT_DIM), out_dtype),
        ),
        grid_spec=pltpu.PrefetchScalarGridSpec(
            num_scalar_prefetch=0,
            grid=(n_tiles,),
            in_specs=in_specs,
            out_specs=out_specs,
        ),
        compiler_params=pltpu.CompilerParams(
            dimension_semantics=("parallel",),       # megacore-shardable on v7x
            vmem_limit_bytes=32 * 1024 * 1024,       # ample for tb <= 1024 on v5e/v6e/v7x
        ),
        cost_estimate=cost,
    )(xk, *kernel_params)

    return latent_pad, recon_pad


# --------------------------------------------------------------------------- reference
def reference_forward(x, params, *, compute_dtype=jnp.float32):
    """Original (unfolded, unpadded) semantics; matmuls evaluated in compute_dtype, f32 accum."""
    (w1, b1, w2, b2, w3, b3, wv, bv, wo, bo, gamma, beta, wd, bd) = params
    f32 = jnp.float32

    def mm(a, w):
        return jnp.dot(a.astype(compute_dtype), w.astype(compute_dtype),
                       preferred_element_type=f32)

    h1 = jnp.maximum(mm(x, w1) + b1, 0.0)
    h2 = jnp.maximum(mm(h1, w2) + b2, 0.0)
    z0 = mm(h2, w3) + b3
    v = jnp.dot(z0, wv.astype(f32), preferred_element_type=f32) + bv
    attn = jnp.dot(v, wo.astype(f32), preferred_element_type=f32) + bo
    s = z0 + attn
    mean = jnp.mean(s, axis=-1, keepdims=True)
    var = jnp.mean((s - mean) ** 2, axis=-1, keepdims=True)
    latent = (s - mean) * jax.lax.rsqrt(var + EPS) * gamma + beta
    recon = mm(latent, wd) + bd
    return latent, recon


# --------------------------------------------------------------------------- demo / self-test
if __name__ == "__main__":
    key = jax.random.PRNGKey(0)
    kx, kp = jax.random.split(key)

    # B deliberately NOT a tile multiple -> exercises batch padding; tile cap keeps grid == 2.
    B = 104
    x = jax.random.normal(kx, (B, INPUT_DIM), dtype=jnp.float32)
    params = init_params(kp)

    latent_pad, recon_pad = attention_autoencoder_forward(x, params, tb=512, use_bf16=True)
    latent_pad = jax.block_until_ready(latent_pad)
    recon_pad = jax.block_until_ready(recon_pad)

    # Validation-only slicing/casting (consumers of the kernel should slice lazily).
    latent = latent_pad[:B, :LATENT_DIM].astype(jnp.float32)
    recon = recon_pad[:B].astype(jnp.float32)
    assert latent.shape == (B, LATENT_DIM) and recon.shape == (B, INPUT_DIM)
    assert bool(jnp.all(jnp.isfinite(latent))) and bool(jnp.all(jnp.isfinite(recon)))

    # Reference in matching precision: bf16 matmul inputs, f32 accumulation / LayerNorm,
    # outputs quantized to bf16 like the kernel's stores.
    ref_latent, ref_recon = reference_forward(x, params, compute_dtype=jnp.bfloat16)
    ref_latent = ref_latent.astype(jnp.bfloat16).astype(jnp.float32)
    ref_recon = ref_recon.astype(jnp.bfloat16).astype(jnp.float32)
    assert bool(jnp.allclose(latent, ref_latent, rtol=2e-2, atol=2e-2)), "latent mismatch"
    assert bool(jnp.allclose(recon, ref_recon, rtol=2e-2, atol=2e-2)), "recon mismatch"

    print("KERNEL_OK")
</pallas_src>

<mosaic_0001>
module attributes {stable_mosaic.version = 11 : i64} {
  func.func @attention_autoencoder_kernel(%arg0: i32, %arg1: memref<64x768xf32, #tpu.memory_space<vmem>>, %arg2: memref<768x512xbf16, #tpu.memory_space<vmem>>, %arg3: memref<1x512xf32, #tpu.memory_space<vmem>>, %arg4: memref<512x256xbf16, #tpu.memory_space<vmem>>, %arg5: memref<1x256xf32, #tpu.memory_space<vmem>>, %arg6: memref<256x128xbf16, #tpu.memory_space<vmem>>, %arg7: memref<1x128xf32, #tpu.memory_space<vmem>>, %arg8: memref<1x128xf32, #tpu.memory_space<vmem>>, %arg9: memref<1x128xf32, #tpu.memory_space<vmem>>, %arg10: memref<128x768xbf16, #tpu.memory_space<vmem>>, %arg11: memref<1x768xf32, #tpu.memory_space<vmem>>, %arg12: memref<64x128xbf16, #tpu.memory_space<vmem>>, %arg13: memref<64x768xbf16, #tpu.memory_space<vmem>>) attributes {dimension_semantics = [#tpu.dimension_semantics<parallel>], iteration_bounds = array<i64: 2>, scalar_prefetch = 0 : i64, scratch_operands = 0 : i64, tpu.core_type = #tpu.core_type<tc>, window_params = [{transform_indices = @transform_0, window_bounds = array<i64: 64, 768>}, {pipeline_mode = #tpu.pipeline_mode<synchronous>, transform_indices = @transform_1, window_bounds = array<i64: 768, 512>}, {pipeline_mode = #tpu.pipeline_mode<synchronous>, transform_indices = @transform_2, window_bounds = array<i64: 1, 512>}, {pipeline_mode = #tpu.pipeline_mode<synchronous>, transform_indices = @transform_3, window_bounds = array<i64: 512, 256>}, {pipeline_mode = #tpu.pipeline_mode<synchronous>, transform_indices = @transform_4, window_bounds = array<i64: 1, 256>}, {pipeline_mode = #tpu.pipeline_mode<synchronous>, transform_indices = @transform_5, window_bounds = array<i64: 256, 128>}, {pipeline_mode = #tpu.pipeline_mode<synchronous>, transform_indices = @transform_6, window_bounds = array<i64: 1, 128>}, {pipeline_mode = #tpu.pipeline_mode<synchronous>, transform_indices = @transform_7, window_bounds = array<i64: 1, 128>}, {pipeline_mode = #tpu.pipeline_mode<synchronous>, transform_indices = @transform_8, window_bounds = array<i64: 1, 128>}, {pipeline_mode = #tpu.pipeline_mode<synchronous>, transform_indices = @transform_9, window_bounds = array<i64: 128, 768>}, {pipeline_mode = #tpu.pipeline_mode<synchronous>, transform_indices = @transform_10, window_bounds = array<i64: 1, 768>}, {transform_indices = @transform_11, window_bounds = array<i64: 64, 128>}, {transform_indices = @transform_12, window_bounds = array<i64: 64, 768>}]} {
    %c0 = arith.constant 0 : index
    %c0_0 = arith.constant 0 : index
    %0 = vector.load %arg1[%c0, %c0_0] : memref<64x768xf32, #tpu.memory_space<vmem>>, vector<64x768xf32>
    %1 = arith.truncf %0 : vector<64x768xf32> to vector<64x768xbf16>
    %c0_1 = arith.constant 0 : index
    %c0_2 = arith.constant 0 : index
    %2 = vector.load %arg2[%c0_1, %c0_2] : memref<768x512xbf16, #tpu.memory_space<vmem>>, vector<768x512xbf16>
    %cst = arith.constant dense<0.000000e+00> : vector<64x512xf32>
    %3 = tpu.matmul %1, %2, %cst {dimension_numbers = #tpu.dot_dimension_numbers<[1], [0], [0], [1], [0, 0, 1, 1], [], []>} : vector<64x768xbf16>, vector<768x512xbf16>, vector<64x512xf32> -> vector<64x512xf32>
    %c0_3 = arith.constant 0 : index
    %c0_4 = arith.constant 0 : index
    %4 = vector.load %arg3[%c0_3, %c0_4] : memref<1x512xf32, #tpu.memory_space<vmem>>, vector<1x512xf32>
    %5 = vector.broadcast %4 : vector<1x512xf32> to vector<64x512xf32>
    %6 = arith.addf %3, %5 : vector<64x512xf32>
    %cst_5 = arith.constant 0.000000e+00 : f32
    %7 = vector.broadcast %cst_5 : f32 to vector<64x512xf32>
    %8 = arith.maximumf %6, %7 : vector<64x512xf32>
    %9 = arith.truncf %8 : vector<64x512xf32> to vector<64x512xbf16>
    %c0_6 = arith.constant 0 : index
    %c0_7 = arith.constant 0 : index
    %10 = vector.load %arg4[%c0_6, %c0_7] : memref<512x256xbf16, #tpu.memory_space<vmem>>, vector<512x256xbf16>
    %cst_8 = arith.constant dense<0.000000e+00> : vector<64x256xf32>
    %11 = tpu.matmul %9, %10, %cst_8 {dimension_numbers = #tpu.dot_dimension_numbers<[1], [0], [0], [1], [0, 0, 1, 1], [], []>} : vector<64x512xbf16>, vector<512x256xbf16>, vector<64x256xf32> -> vector<64x256xf32>
    %c0_9 = arith.constant 0 : index
    %c0_10 = arith.constant 0 : index
    %12 = vector.load %arg5[%c0_9, %c0_10] : memref<1x256xf32, #tpu.memory_space<vmem>>, vector<1x256xf32>
    %13 = vector.broadcast %12 : vector<1x256xf32> to vector<64x256xf32>
    %14 = arith.addf %11, %13 : vector<64x256xf32>
    %cst_11 = arith.constant 0.000000e+00 : f32
    %15 = vector.broadcast %cst_11 : f32 to vector<64x256xf32>
    %16 = arith.maximumf %14, %15 : vector<64x256xf32>
    %17 = arith.truncf %16 : vector<64x256xf32> to vector<64x256xbf16>
    %c0_12 = arith.constant 0 : index
    %c0_13 = arith.constant 0 : index
    %18 = vector.load %arg6[%c0_12, %c0_13] : memref<256x128xbf16, #tpu.memory_space<vmem>>, vector<256x128xbf16>
    %cst_14 = arith.constant dense<0.000000e+00> : vector<64x128xf32>
    %19 = tpu.matmul %17, %18, %cst_14 {dimension_numbers = #tpu.dot_dimension_numbers<[1], [0], [0], [1], [0, 0, 1, 1], [], []>} : vector<64x256xbf16>, vector<256x128xbf16>, vector<64x128xf32> -> vector<64x128xf32>
    %c0_15 = arith.constant 0 : index
    %c0_16 = arith.constant 0 : index
    %20 = vector.load %arg7[%c0_15, %c0_16] : memref<1x128xf32, #tpu.memory_space<vmem>>, vector<1x128xf32>
    %21 = vector.broadcast %20 : vector<1x128xf32> to vector<64x128xf32>
    %22 = arith.addf %19, %21 : vector<64x128xf32>
    %23 = tpu.iota {dimensions = array<i32: 1>} : vector<1x128xi32>
    %c50_i32 = arith.constant 50 : i32
    %24 = vector.broadcast %c50_i32 : i32 to vector<1x128xi32>
    %25 = arith.cmpi slt, %23, %24 : vector<1x128xi32>
    %cst_17 = arith.constant dense<0.000000e+00> : vector<64xf32>
    %26 = vector.multi_reduction <add>, %22, %cst_17 [1] : vector<64x128xf32> to vector<64xf32>
    %27 = vector.shape_cast %26 : vector<64xf32> to vector<64x1xf32>
    %cst_18 = arith.constant 2.000000e-02 : f32
    %28 = vector.broadcast %cst_18 : f32 to vector<64x1xf32>
    %29 = arith.mulf %27, %28 : vector<64x1xf32>
    %30 = vector.broadcast %29 : vector<64x1xf32> to vector<64x128xf32>
    %31 = arith.subf %22, %30 : vector<64x128xf32>
    %cst_19 = arith.constant 0.000000e+00 : f32
    %32 = vector.shape_cast %25 : vector<1x128xi1> to vector<1x128xi1>
    %33 = vector.broadcast %32 : vector<1x128xi1> to vector<64x128xi1>
    %34 = vector.broadcast %cst_19 : f32 to vector<64x128xf32>
    %35 = arith.select %33, %31, %34 : vector<64x128xi1>, vector<64x128xf32>
    %36 = arith.mulf %35, %35 : vector<64x128xf32>
    %cst_20 = arith.constant dense<0.000000e+00> : vector<64xf32>
    %37 = vector.multi_reduction <add>, %36, %cst_20 [1] : vector<64x128xf32> to vector<64xf32>
    %38 = vector.shape_cast %37 : vector<64xf32> to vector<64x1xf32>
    %cst_21 = arith.constant 2.000000e-02 : f32
    %39 = vector.broadcast %cst_21 : f32 to vector<64x1xf32>
    %40 = arith.mulf %38, %39 : vector<64x1xf32>
    %cst_22 = arith.constant 9.99999974E-6 : f32
    %41 = vector.broadcast %cst_22 : f32 to vector<64x1xf32>
    %42 = arith.addf %40, %41 : vector<64x1xf32>
    %43 = math.rsqrt %42 : vector<64x1xf32>
    %44 = vector.broadcast %43 : vector<64x1xf32> to vector<64x128xf32>
    %45 = arith.mulf %35, %44 : vector<64x128xf32>
    %c0_23 = arith.constant 0 : index
    %c0_24 = arith.constant 0 : index
    %46 = vector.load %arg8[%c0_23, %c0_24] : memref<1x128xf32, #tpu.memory_space<vmem>>, vector<1x128xf32>
    %47 = vector.broadcast %46 : vector<1x128xf32> to vector<64x128xf32>
    %48 = arith.mulf %45, %47 : vector<64x128xf32>
    %c0_25 = arith.constant 0 : index
    %c0_26 = arith.constant 0 : index
    %49 = vector.load %arg9[%c0_25, %c0_26] : memref<1x128xf32, #tpu.memory_space<vmem>>, vector<1x128xf32>
    %50 = vector.broadcast %49 : vector<1x128xf32> to vector<64x128xf32>
    %51 = arith.addf %48, %50 : vector<64x128xf32>
    %52 = arith.truncf %51 : vector<64x128xf32> to vector<64x128xbf16>
    %c0_27 = arith.constant 0 : index
    %c0_28 = arith.constant 0 : index
    %53 = vector.load %arg12[%c0_27, %c0_28] : memref<64x128xbf16, #tpu.memory_space<vmem>>, vector<64x128xbf16>
    tpu.vector_store %arg12[%c0_27, %c0_28], %52 {strides = array<i32>} : memref<64x128xbf16, #tpu.memory_space<vmem>>, vector<64x128xbf16>,
    %c0_29 = arith.constant 0 : index
    %c0_30 = arith.constant 0 : index
    %54 = vector.load %arg10[%c0_29, %c0_30] : memref<128x768xbf16, #tpu.memory_space<vmem>>, vector<128x768xbf16>
    %cst_31 = arith.constant dense<0.000000e+00> : vector<64x768xf32>
    %55 = tpu.matmul %52, %54, %cst_31 {dimension_numbers = #tpu.dot_dimension_numbers<[1], [0], [0], [1], [0, 0, 1, 1], [], []>} : vector<64x128xbf16>, vector<128x768xbf16>, vector<64x768xf32> -> vector<64x768xf32>
    %c0_32 = arith.constant 0 : index
    %c0_33 = arith.constant 0 : index
    %56 = vector.load %arg11[%c0_32, %c0_33] : memref<1x768xf32, #tpu.memory_space<vmem>>, vector<1x768xf32>
    %57 = vector.broadcast %56 : vector<1x768xf32> to vector<64x768xf32>
    %58 = arith.addf %55, %57 : vector<64x768xf32>
    %59 = arith.truncf %58 : vector<64x768xf32> to vector<64x768xbf16>
    %c0_34 = arith.constant 0 : index
    %c0_35 = arith.constant 0 : index
    %60 = vector.load %arg13[%c0_34, %c0_35] : memref<64x768xbf16, #tpu.memory_space<vmem>>, vector<64x768xbf16>
    tpu.vector_store %arg13[%c0_34, %c0_35], %59 {strides = array<i32>} : memref<64x768xbf16, #tpu.memory_space<vmem>>, vector<64x768xbf16>,
    return
  }
  func.func @transform_0(%arg0: i32) -> (i32, i32) {
    %c0_i32 = arith.constant 0 : i32
    %c0_i32_0 = arith.constant 0 : i32
    return %arg0, %c0_i32 : i32, i32
  }
  func.func @transform_1(%arg0: i32) -> (i32, i32) {
    %c0_i32 = arith.constant 0 : i32
    %c0_i32_0 = arith.constant 0 : i32
    %c0_i32_1 = arith.constant 0 : i32
    return %c0_i32, %c0_i32_0 : i32, i32
  }
  func.func @transform_2(%arg0: i32) -> (i32, i32) {
    %c0_i32 = arith.constant 0 : i32
    %c0_i32_0 = arith.constant 0 : i32
    %c0_i32_1 = arith.constant 0 : i32
    return %c0_i32, %c0_i32_0 : i32, i32
  }
  func.func @transform_3(%arg0: i32) -> (i32, i32) {
    %c0_i32 = arith.constant 0 : i32
    %c0_i32_0 = arith.constant 0 : i32
    %c0_i32_1 = arith.constant 0 : i32
    return %c0_i32, %c0_i32_0 : i32, i32
  }
  func.func @transform_4(%arg0: i32) -> (i32, i32) {
    %c0_i32 = arith.constant 0 : i32
    %c0_i32_0 = arith.constant 0 : i32
    %c0_i32_1 = arith.constant 0 : i32
    return %c0_i32, %c0_i32_0 : i32, i32
  }
  func.func @transform_5(%arg0: i32) -> (i32, i32) {
    %c0_i32 = arith.constant 0 : i32
    %c0_i32_0 = arith.constant 0 : i32
    %c0_i32_1 = arith.constant 0 : i32
    return %c0_i32, %c0_i32_0 : i32, i32
  }
  func.func @transform_6(%arg0: i32) -> (i32, i32) {
    %c0_i32 = arith.constant 0 : i32
    %c0_i32_0 = arith.constant 0 : i32
    %c0_i32_1 = arith.constant 0 : i32
    return %c0_i32, %c0_i32_0 : i32, i32
  }
  func.func @transform_7(%arg0: i32) -> (i32, i32) {
    %c0_i32 = arith.constant 0 : i32
    %c0_i32_0 = arith.constant 0 : i32
    %c0_i32_1 = arith.constant 0 : i32
    return %c0_i32, %c0_i32_0 : i32, i32
  }
  func.func @transform_8(%arg0: i32) -> (i32, i32) {
    %c0_i32 = arith.constant 0 : i32
    %c0_i32_0 = arith.constant 0 : i32
    %c0_i32_1 = arith.constant 0 : i32
    return %c0_i32, %c0_i32_0 : i32, i32
  }
  func.func @transform_9(%arg0: i32) -> (i32, i32) {
    %c0_i32 = arith.constant 0 : i32
    %c0_i32_0 = arith.constant 0 : i32
    %c0_i32_1 = arith.constant 0 : i32
    return %c0_i32, %c0_i32_0 : i32, i32
  }
  func.func @transform_10(%arg0: i32) -> (i32, i32) {
    %c0_i32 = arith.constant 0 : i32
    %c0_i32_0 = arith.constant 0 : i32
    %c0_i32_1 = arith.constant 0 : i32
    return %c0_i32, %c0_i32_0 : i32, i32
  }
  func.func @transform_11(%arg0: i32) -> (i32, i32) {
    %c0_i32 = arith.constant 0 : i32
    %c0_i32_0 = arith.constant 0 : i32
    return %arg0, %c0_i32 : i32, i32
  }
  func.func @transform_12(%arg0: i32) -> (i32, i32) {
    %c0_i32 = arith.constant 0 : i32
    %c0_i32_0 = arith.constant 0 : i32
    return %arg0, %c0_i32 : i32, i32
  }
}

</mosaic_0001>

<llo_original>
// kernel: tpu_custom_call.1
$region0: #{tpu_custom_call.1}
  #allocation0 [shape = 'u32[]', space=smem, size = 0x4, offset = 0x4, fixed_abs, tag = 'smem constant byte address 0x4 - core index']
  #allocation1 [shape = 'u32[72,128]{1,0:T(1,128)}', space=vmem, size = 0x9000, scoped, tag = 'internal scratch']
  %s0 = inlined_call_operand.hbm [shape: f32[128,768], index: 0, kind: input, shape index: {}]
  %s1 = inlined_call_operand.hbm [shape: bf16[768,512], index: 1, kind: input, shape index: {}]
  %s2 = inlined_call_operand.hbm [shape: f32[1,512], index: 2, kind: input, shape index: {}]
  %s3 = inlined_call_operand.hbm [shape: bf16[512,256], index: 3, kind: input, shape index: {}]
  %s4 = inlined_call_operand.vmem [shape: f32[1,256], index: 4, kind: input, shape index: {}]
  %s5 = inlined_call_operand.hbm [shape: bf16[256,128], index: 5, kind: input, shape index: {}]
  %s6 = inlined_call_operand.vmem [shape: f32[1,128], index: 6, kind: input, shape index: {}]
  %s7 = inlined_call_operand.hbm [shape: f32[1,128], index: 7, kind: input, shape index: {}]
  %s8 = inlined_call_operand.hbm [shape: f32[1,128], index: 8, kind: input, shape index: {}]
  %s9 = inlined_call_operand.hbm [shape: bf16[128,768], index: 9, kind: input, shape index: {}]
  %s10 = inlined_call_operand.vmem [shape: f32[1,768], index: 10, kind: input, shape index: {}]
  %s11 = inlined_call_operand.hbm [shape: bf16[128,128], index: 11, kind: output, shape index: {0}]
  %s12 = inlined_call_operand.hbm [shape: bf16[128,768], index: 12, kind: output, shape index: {1}]
  %13 = xla_tuple %s11, %s12
  %s14 = sld [smem:[#allocation0]]
  $region117: #{tpu_custom_call.1} parent=0
    _
  %s16 = ssub.s32 1, %s14
  %s17 = scalar_select 0, %s16, %s14
  $region1: #{tpu_custom_call.1} parent=0
    #allocation2 [shape = 'u8[393216]{0}', space=vmem, size = 0x60000, scoped, tag = 'input window, operand 0']
    #allocation3 [shape = 's32[2]{0}', space=sflag, size = 0x8, scoped, tag = 'scoped memory for tpu_custom_call.1']
    #allocation4 [shape = 's32[2]{0}', space=sflag, size = 0x8, scoped, tag = 'scoped memory for tpu_custom_call.1']
    #allocation5 [shape = 'u8[786432]{0}', space=vmem, size = 0xc0000, scoped, tag = 'input window, operand 1, single buffered']
    #allocation6 [shape = 's32[1]{0}', space=sflag, size = 0x4, scoped, tag = 'scoped memory for tpu_custom_call.1']
    #allocation7 [shape = 'u8[2048]{0}', space=vmem, size = 0x800, scoped, tag = 'input window, operand 2, single buffered']
    #allocation8 [shape = 'u8[262144]{0}', space=vmem, size = 0x40000, scoped, tag = 'input window, operand 3, single buffered']
    #allocation9 [shape = 's32[1]{0}', space=sflag, size = 0x4, scoped, tag = 'scoped memory for tpu_custom_call.1']
    #allocation10 [shape = 'u8[65536]{0}', space=vmem, size = 0x10000, scoped, tag = 'input window, operand 5, single buffered']
    #allocation11 [shape = 'u8[512]{0}', space=vmem, size = 0x400, scoped, tag = 'input window, operand 7, single buffered']
    #allocation12 [shape = 's32[1]{0}', space=sflag, size = 0x4, scoped, tag = 'scoped memory for tpu_custom_call.1']
    #allocation13 [shape = 'u8[512]{0}', space=vmem, size = 0x400, scoped, tag = 'input window, operand 8, single buffered']
    #allocation14 [shape = 'u8[196608]{0}', space=vmem, size = 0x30000, scoped, tag = 'input window, operand 9, single buffered']
    #allocation15 [shape = 's32[1]{0}', space=sflag, size = 0x4, scoped, tag = 'scoped memory for tpu_custom_call.1']
    #allocation16 [shape = 'u8[32768]{0}', space=vmem, size = 0x8000, scoped, tag = 'output window, operand 0']
    #allocation17 [shape = 'u8[196608]{0}', space=vmem, size = 0x30000, scoped, tag = 'output window, operand 1']
    #allocation18 [shape = 's32[2]{0}', space=sflag, size = 0x8, scoped, tag = 'scoped memory for tpu_custom_call.1']
    %18 = vsyncpa [#allocation3], 0
    %s19 = scalar_lea.sflag [#allocation3], 1
    %20 = vsyncpa %s19, 0
    %21 = vsyncpa [#allocation6], 0
    %22 = vsyncpa [#allocation9], 0
    %23 = vsyncpa [#allocation12], 0
    %24 = vsyncpa [#allocation15], 0
    %25 = vsyncpa [#allocation4], 0
    %s26 = scalar_lea.sflag [#allocation4], 1
    %27 = vsyncpa %s26, 0
    %28 = vsyncpa [#allocation18], 0
    %s29 = scalar_lea.sflag [#allocation18], 1
    %30 = vsyncpa %s29, 0
    loop: start=0, step=1, limit=4
    $region2: #{tpu_custom_call.1} parent=1 // loop_pre_header
      _
    $region3: #{tpu_custom_call.1} parent=1 // loop_header
      %s32 = sphi 0, %s36
      %p33 = scmp.ge.s32.totalorder %s32, 4
      %s42 = sphi 0, %s44
      %s45 = sphi 0, %s42
      %s46 = sphi 0, %s45
      %s62 = sphi 0, %s46
      %s66 = sphi 0, %s66
      %s68 = sphi 0, %s66
      %s69 = sphi 0, %s68
      %s83 = sphi 0, %s69
      %s87 = sphi 0, %s87
      %s89 = sphi 0, %s87
      %s90 = sphi 0, %s89
      %s104 = sphi 0, %s90
      %s108 = sphi 0, %s108
      %s110 = sphi 0, %s108
      %s111 = sphi 0, %s110
      %s125 = sphi 0, %s111
      %s129 = sphi 0, %s129
      %s131 = sphi 0, %s129
      %s132 = sphi 0, %s131
      %s146 = sphi 0, %s132
      %s150 = sphi 0, %s150
      %s152 = sphi 0, %s150
      %s153 = sphi 0, %s152
      %s167 = sphi 0, %s153
      %s171 = sphi 0, %s171
      %s173 = sphi 0, %s171
      %s174 = sphi 0, %s173
      %s188 = sphi 0, %s174
      %s192 = sphi 0, %s192
      %s194 = sphi 0, %s192
      %s195 = sphi 0, %s194
      %s209 = sphi 0, %s195
      %s213 = sphi 0, %s213
      %s215 = sphi 0, %s213
      %s216 = sphi 0, %s215
      %s230 = sphi 0, %s216
      %s234 = sphi 0, %s234
      %s236 = sphi 0, %s234
      %s237 = sphi 0, %s236
      %s251 = sphi 0, %s237
      %s255 = sphi 0, %s255
      %s257 = sphi 0, %s255
      %s258 = sphi 0, %s257
      %s272 = sphi 0, %s258
      %s278 = sphi 0, %s280
      %s281 = sphi 0, %s278
      %s282 = sphi 0, %s281
      %s298 = sphi 0, %s282
      %s304 = sphi 0, %s306
      %s307 = sphi 0, %s304
      %s308 = sphi 0, %s307
      %s324 = sphi 0, %s308
    $region4: #{tpu_custom_call.1} parent=1 // loop_header_branch
      %35 = sbr.rel (%p33) target = $region8
    $region5: #{tpu_custom_call.1} parent=1 // loop_body
      %s37 = ssub.s32 %s32, 1
      %s38 = ssub.s32 %s32, 2
      %s39 = sadd.s32 %s32, 1
      %s40 = ssub.s32 %s32, %s39
      %p41 = scmp.eq.s32.totalorder %s40, 0
      %s43 = sadd.s32 %s42, 1
      %s44 = scalar_select %p41, %s42, %s43
      %p47 = pneg %p41
      %p48 = scmp.eq.s32.totalorder %s32, 1
      %p49 = por %p47, %p48
      %p50 = scmp.ne.s32.totalorder %s42, %s45
      %p51 = scmp.eq.s32.totalorder %s32, 0
      %p52 = por %p50, %p51
      %p53 = scmp.ne.s32.totalorder %s42, %s45
      %p54 = scmp.eq.s32.totalorder %s37, 1
      %p55 = por %p53, %p54
      %p56 = scmp.ne.s32.totalorder %s45, %s46
      %p57 = scmp.eq.s32.totalorder %s37, 0
      %p58 = por %p56, %p57
      %p59 = scmp.ne.s32.totalorder %s45, %s46
      %p60 = scmp.eq.s32.totalorder %s38, 1
      %p61 = por %p59, %p60
      %p63 = scmp.ne.s32.totalorder %s46, %s62
      %p64 = scmp.eq.s32.totalorder %s38, 0
      %p65 = por %p63, %p64
      %s67 = sadd.s32 %s66, 1
      %p70 = scmp.eq.s32.totalorder %s32, 1
      %p71 = scmp.ne.s32.totalorder %s66, %s68
      %p72 = scmp.eq.s32.totalorder %s32, 0
      %p73 = por %p71, %p72
      %p74 = scmp.ne.s32.totalorder %s66, %s68
      %p75 = scmp.eq.s32.totalorder %s37, 1
      %p76 = por %p74, %p75
      %p77 = scmp.ne.s32.totalorder %s68, %s69
      %p78 = scmp.eq.s32.totalorder %s37, 0
      %p79 = por %p77, %p78
      %p80 = scmp.ne.s32.totalorder %s68, %s69
      %p81 = scmp.eq.s32.totalorder %s38, 1
      %p82 = por %p80, %p81
      %p84 = scmp.ne.s32.totalorder %s69, %s83
      %p85 = scmp.eq.s32.totalorder %s38, 0
      %p86 = por %p84, %p85
      %s88 = sadd.s32 %s87, 1
      %p91 = scmp.eq.s32.totalorder %s32, 1
      %p92 = scmp.ne.s32.totalorder %s87, %s89
      %p93 = scmp.eq.s32.totalorder %s32, 0
      %p94 = por %p92, %p93
      %p95 = scmp.ne.s32.totalorder %s87, %s89
      %p96 = scmp.eq.s32.totalorder %s37, 1
      %p97 = por %p95, %p96
      %p98 = scmp.ne.s32.totalorder %s89, %s90
      %p99 = scmp.eq.s32.totalorder %s37, 0
      %p100 = por %p98, %p99
      %p101 = scmp.ne.s32.totalorder %s89, %s90
      %p102 = scmp.eq.s32.totalorder %s38, 1
      %p103 = por %p101, %p102
      %p105 = scmp.ne.s32.totalorder %s90, %s104
      %p106 = scmp.eq.s32.totalorder %s38, 0
      %p107 = por %p105, %p106
      %s109 = sadd.s32 %s108, 1
      %p112 = scmp.eq.s32.totalorder %s32, 1
      %p113 = scmp.ne.s32.totalorder %s108, %s110
      %p114 = scmp.eq.s32.totalorder %s32, 0
      %p115 = por %p113, %p114
      %p116 = scmp.ne.s32.totalorder %s108, %s110
      %p117 = scmp.eq.s32.totalorder %s37, 1
      %p118 = por %p116, %p117
      %p119 = scmp.ne.s32.totalorder %s110, %s111
      %p120 = scmp.eq.s32.totalorder %s37, 0
      %p121 = por %p119, %p120
      %p122 = scmp.ne.s32.totalorder %s110, %s111
      %p123 = scmp.eq.s32.totalorder %s38, 1
      %p124 = por %p122, %p123
      %p126 = scmp.ne.s32.totalorder %s111, %s125
      %p127 = scmp.eq.s32.totalorder %s38, 0
      %p128 = por %p126, %p127
      %s130 = sadd.s32 %s129, 1
      %p133 = scmp.eq.s32.totalorder %s32, 1
      %p134 = scmp.ne.s32.totalorder %s129, %s131
      %p135 = scmp.eq.s32.totalorder %s32, 0
      %p136 = por %p134, %p135
      %p137 = scmp.ne.s32.totalorder %s129, %s131
      %p138 = scmp.eq.s32.totalorder %s37, 1
      %p139 = por %p137, %p138
      %p140 = scmp.ne.s32.totalorder %s131, %s132
      %p141 = scmp.eq.s32.totalorder %s37, 0
      %p142 = por %p140, %p141
      %p143 = scmp.ne.s32.totalorder %s131, %s132
      %p144 = scmp.eq.s32.totalorder %s38, 1
      %p145 = por %p143, %p144
      %p147 = scmp.ne.s32.totalorder %s132, %s146
      %p148 = scmp.eq.s32.totalorder %s38, 0
      %p149 = por %p147, %p148
      %s151 = sadd.s32 %s150, 1
      %p154 = scmp.eq.s32.totalorder %s32, 1
      %p155 = scmp.ne.s32.totalorder %s150, %s152
      %p156 = scmp.eq.s32.totalorder %s32, 0
      %p157 = por %p155, %p156
      %p158 = scmp.ne.s32.totalorder %s150, %s152
      %p159 = scmp.eq.s32.totalorder %s37, 1
      %p160 = por %p158, %p159
      %p161 = scmp.ne.s32.totalorder %s152, %s153
      %p162 = scmp.eq.s32.totalorder %s37, 0
      %p163 = por %p161, %p162
      %p164 = scmp.ne.s32.totalorder %s152, %s153
      %p165 = scmp.eq.s32.totalorder %s38, 1
      %p166 = por %p164, %p165
      %p168 = scmp.ne.s32.totalorder %s153, %s167
      %p169 = scmp.eq.s32.totalorder %s38, 0
      %p170 = por %p168, %p169
      %s172 = sadd.s32 %s171, 1
      %p175 = scmp.eq.s32.totalorder %s32, 1
      %p176 = scmp.ne.s32.totalorder %s171, %s173
      %p177 = scmp.eq.s32.totalorder %s32, 0
      %p178 = por %p176, %p177
      %p179 = scmp.ne.s32.totalorder %s171, %s173
      %p180 = scmp.eq.s32.totalorder %s37, 1
      %p181 = por %p179, %p180
      %p182 = scmp.ne.s32.totalorder %s173, %s174
      %p183 = scmp.eq.s32.totalorder %s37, 0
      %p184 = por %p182, %p183
      %p185 = scmp.ne.s32.totalorder %s173, %s174
      %p186 = scmp.eq.s32.totalorder %s38, 1
      %p187 = por %p185, %p186
      %p189 = scmp.ne.s32.totalorder %s174, %s188
      %p190 = scmp.eq.s32.totalorder %s38, 0
      %p191 = por %p189, %p190
      %s193 = sadd.s32 %s192, 1
      %p196 = scmp.eq.s32.totalorder %s32, 1
      %p197 = scmp.ne.s32.totalorder %s192, %s194
      %p198 = scmp.eq.s32.totalorder %s32, 0
      %p199 = por %p197, %p198
      %p200 = scmp.ne.s32.totalorder %s192, %s194
      %p201 = scmp.eq.s32.totalorder %s37, 1
      %p202 = por %p200, %p201
      %p203 = scmp.ne.s32.totalorder %s194, %s195
      %p204 = scmp.eq.s32.totalorder %s37, 0
      %p205 = por %p203, %p204
      %p206 = scmp.ne.s32.totalorder %s194, %s195
      %p207 = scmp.eq.s32.totalorder %s38, 1
      %p208 = por %p206, %p207
      %p210 = scmp.ne.s32.totalorder %s195, %s209
      %p211 = scmp.eq.s32.totalorder %s38, 0
      %p212 = por %p210, %p211
      %s214 = sadd.s32 %s213, 1
      %p217 = scmp.eq.s32.totalorder %s32, 1
      %p218 = scmp.ne.s32.totalorder %s213, %s215
      %p219 = scmp.eq.s32.totalorder %s32, 0
      %p220 = por %p218, %p219
      %p221 = scmp.ne.s32.totalorder %s213, %s215
      %p222 = scmp.eq.s32.totalorder %s37, 1
      %p223 = por %p221, %p222
      %p224 = scmp.ne.s32.totalorder %s215, %s216
      %p225 = scmp.eq.s32.totalorder %s37, 0
      %p226 = por %p224, %p225
      %p227 = scmp.ne.s32.totalorder %s215, %s216
      %p228 = scmp.eq.s32.totalorder %s38, 1
      %p229 = por %p227, %p228
      %p231 = scmp.ne.s32.totalorder %s216, %s230
      %p232 = scmp.eq.s32.totalorder %s38, 0
      %p233 = por %p231, %p232
      %s235 = sadd.s32 %s234, 1
      %p238 = scmp.eq.s32.totalorder %s32, 1
      %p239 = scmp.ne.s32.totalorder %s234, %s236
      %p240 = scmp.eq.s32.totalorder %s32, 0
      %p241 = por %p239, %p240
      %p242 = scmp.ne.s32.totalorder %s234, %s236
      %p243 = scmp.eq.s32.totalorder %s37, 1
      %p244 = por %p242, %p243
      %p245 = scmp.ne.s32.totalorder %s236, %s237
      %p246 = scmp.eq.s32.totalorder %s37, 0
      %p247 = por %p245, %p246
      %p248 = scmp.ne.s32.totalorder %s236, %s237
      %p249 = scmp.eq.s32.totalorder %s38, 1
      %p250 = por %p248, %p249
      %p252 = scmp.ne.s32.totalorder %s237, %s251
      %p253 = scmp.eq.s32.totalorder %s38, 0
      %p254 = por %p252, %p253
      %s256 = sadd.s32 %s255, 1
      %p259 = scmp.eq.s32.totalorder %s32, 1
      %p260 = scmp.ne.s32.totalorder %s255, %s257
      %p261 = scmp.eq.s32.totalorder %s32, 0
      %p262 = por %p260, %p261
      %p263 = scmp.ne.s32.totalorder %s255, %s257
      %p264 = scmp.eq.s32.totalorder %s37, 1
      %p265 = por %p263, %p264
      %p266 = scmp.ne.s32.totalorder %s257, %s258
      %p267 = scmp.eq.s32.totalorder %s37, 0
      %p268 = por %p266, %p267
      %p269 = scmp.ne.s32.totalorder %s257, %s258
      %p270 = scmp.eq.s32.totalorder %s38, 1
      %p271 = por %p269, %p270
      %p273 = scmp.ne.s32.totalorder %s258, %s272
      %p274 = scmp.eq.s32.totalorder %s38, 0
      %p275 = por %p273, %p274
      %s276 = ssub.s32 %s32, %s39
      %p277 = scmp.eq.s32.totalorder %s276, 0
      %s279 = sadd.s32 %s278, 1
      %s280 = scalar_select %p277, %s278, %s279
      %p283 = pneg %p277
      %p284 = scmp.eq.s32.totalorder %s32, 1
      %p285 = por %p283, %p284
      %p286 = scmp.ne.s32.totalorder %s278, %s281
      %p287 = scmp.eq.s32.totalorder %s32, 0
      %p288 = por %p286, %p287
      %p289 = scmp.ne.s32.totalorder %s278, %s281
      %p290 = scmp.eq.s32.totalorder %s37, 1
      %p291 = por %p289, %p290
      %p292 = scmp.ne.s32.totalorder %s281, %s282
      %p293 = scmp.eq.s32.totalorder %s37, 0
      %p294 = por %p292, %p293
      %p295 = scmp.ne.s32.totalorder %s281, %s282
      %p296 = scmp.eq.s32.totalorder %s38, 1
      %p297 = por %p295, %p296
      %p299 = scmp.ne.s32.totalorder %s282, %s298
      %p300 = scmp.eq.s32.totalorder %s38, 0
      %p301 = por %p299, %p300
      %s302 = ssub.s32 %s32, %s39
      %p303 = scmp.eq.s32.totalorder %s302, 0
      %s305 = sadd.s32 %s304, 1
      %s306 = scalar_select %p303, %s304, %s305
      %p309 = pneg %p303
      %p310 = scmp.eq.s32.totalorder %s32, 1
      %p311 = por %p309, %p310
      %p312 = scmp.ne.s32.totalorder %s304, %s307
      %p313 = scmp.eq.s32.totalorder %s32, 0
      %p314 = por %p312, %p313
      %p315 = scmp.ne.s32.totalorder %s304, %s307
      %p316 = scmp.eq.s32.totalorder %s37, 1
      %p317 = por %p315, %p316
      %p318 = scmp.ne.s32.totalorder %s307, %s308
      %p319 = scmp.eq.s32.totalorder %s37, 0
      %p320 = por %p318, %p319
      %p321 = scmp.ne.s32.totalorder %s307, %s308
      %p322 = scmp.eq.s32.totalorder %s38, 1
      %p323 = por %p321, %p322
      %p325 = scmp.ne.s32.totalorder %s308, %s324
      %p326 = scmp.eq.s32.totalorder %s38, 0
      %p327 = por %p325, %p326
      %p328 = scmp.le.s32.totalorder 1, %s32
      %p329 = scmp.lt.s32.totalorder %s32, 3
      %p330 = pnand %p328, %p329
      %p331 = pneg %p330
      // Predicated region
      $region9: #{tpu_custom_call.1} parent=5 // pred_check
        _
      $region10: #{tpu_custom_call.1} parent=5 // pred_check_branch
        %333 = sbr.rel (%p330) target = $region12
      $region11: #{tpu_custom_call.1} parent=5 // pred_region
        %s334 = ssub.s32 %s32, 1
        // Predicated region
        $region13: #{tpu_custom_call.1} parent=11 // pred_check
          %p335 = pneg %p79
        $region14: #{tpu_custom_call.1} parent=11 // pred_check_branch
          %337 = sbr.rel (%p335) target = $region16
        $region15: #{tpu_custom_call.1} parent=11 // pred_region
          %339 = vsyncadd [#allocation6], 0
          %s340 = sshll.u32 %s1, 4
          %s341 = int_to_ptr.hbm [resolvable:$true] %s340
          %s342 = sshll.u32 [#allocation5], 4
          %s343 = int_to_ptr.vmem [resolvable:$true] %s342
          %348 = dma.hbm_to_vmem [thread:$0]  %s341, 24576, %s343, [#allocation6], 256, 256, 16
        $region16: #{tpu_custom_call.1} parent=11 // pred_fallthru
          _
        // Predicated region
        $region17: #{tpu_custom_call.1} parent=11 // pred_check
          %p349 = pneg %p100
        $region18: #{tpu_custom_call.1} parent=11 // pred_check_branch
          %351 = sbr.rel (%p349) target = $region20
        $region19: #{tpu_custom_call.1} parent=11 // pred_region
          %353 = vsyncadd [#allocation6], 0
          %s355 = sshll.u32 %s2, 4
          %s356 = int_to_ptr.hbm [resolvable:$true] %s355
          %s357 = sshll.u32 [#allocation7], 4
          %s358 = int_to_ptr.vmem [resolvable:$true] %s357
          %360 = dma.hbm_to_vmem [thread:$0]  %s356, 64, %s358, [#allocation6]
        $region20: #{tpu_custom_call.1} parent=11 // pred_fallthru
          _
        // Predicated region
        $region21: #{tpu_custom_call.1} parent=11 // pred_check
          %p361 = pneg %p121
        $region22: #{tpu_custom_call.1} parent=11 // pred_check_branch
          %363 = sbr.rel (%p361) target = $region24
        $region23: #{tpu_custom_call.1} parent=11 // pred_region
          %365 = vsyncadd [#allocation9], 0
          %s366 = sshll.u32 %s3, 4
          %s367 = int_to_ptr.hbm [resolvable:$true] %s366
          %s368 = sshll.u32 [#allocation8], 4
          %s369 = int_to_ptr.vmem [resolvable:$true] %s368
          %374 = dma.hbm_to_vmem [thread:$0]  %s367, 8192, %s369, [#allocation9], 128, 128, 8
        $region24: #{tpu_custom_call.1} parent=11 // pred_fallthru
          _
        // Predicated region
        $region25: #{tpu_custom_call.1} parent=11 // pred_check
          %p375 = pneg %p142
        $region26: #{tpu_custom_call.1} parent=11 // pred_check_branch
          %377 = sbr.rel (%p375) target = $region28
        $region27: #{tpu_custom_call.1} parent=11 // pred_region
          _
        $region28: #{tpu_custom_call.1} parent=11 // pred_fallthru
          _
        // Predicated region
        $region29: #{tpu_custom_call.1} parent=11 // pred_check
          %p378 = pneg %p163
        $region30: #{tpu_custom_call.1} parent=11 // pred_check_branch
          %380 = sbr.rel (%p378) target = $region32
        $region31: #{tpu_custom_call.1} parent=11 // pred_region
          %382 = vsyncadd [#allocation9], 0
          %s383 = sshll.u32 %s5, 4
          %s384 = int_to_ptr.hbm [resolvable:$true] %s383
          %s385 = sshll.u32 [#allocation10], 4
          %s386 = int_to_ptr.vmem [resolvable:$true] %s385
          %391 = dma.hbm_to_vmem [thread:$0]  %s384, 2048, %s386, [#allocation9], 64, 64, 4
        $region32: #{tpu_custom_call.1} parent=11 // pred_fallthru
          _
        // Predicated region
        $region33: #{tpu_custom_call.1} parent=11 // pred_check
          %p392 = pneg %p184
        $region34: #{tpu_custom_call.1} parent=11 // pred_check_branch
          %394 = sbr.rel (%p392) target = $region36
        $region35: #{tpu_custom_call.1} parent=11 // pred_region
          _
        $region36: #{tpu_custom_call.1} parent=11 // pred_fallthru
          _
        // Predicated region
        $region37: #{tpu_custom_call.1} parent=11 // pred_check
          %p395 = pneg %p205
        $region38: #{tpu_custom_call.1} parent=11 // pred_check_branch
          %397 = sbr.rel (%p395) target = $region40
        $region39: #{tpu_custom_call.1} parent=11 // pred_region
          %399 = vsyncadd [#allocation12], 0
          %s401 = sshll.u32 %s7, 4
          %s402 = int_to_ptr.hbm [resolvable:$true] %s401
          %s403 = sshll.u32 [#allocation11], 4
          %s404 = int_to_ptr.vmem [resolvable:$true] %s403
          %406 = dma.hbm_to_vmem [thread:$0]  %s402, 16, %s404, [#allocation12]
        $region40: #{tpu_custom_call.1} parent=11 // pred_fallthru
          _
        // Predicated region
        $region41: #{tpu_custom_call.1} parent=11 // pred_check
          %p407 = pneg %p226
        $region42: #{tpu_custom_call.1} parent=11 // pred_check_branch
          %409 = sbr.rel (%p407) target = $region44
        $region43: #{tpu_custom_call.1} parent=11 // pred_region
          %411 = vsyncadd [#allocation12], 0
          %s413 = sshll.u32 %s8, 4
          %s414 = int_to_ptr.hbm [resolvable:$true] %s413
          %s415 = sshll.u32 [#allocation13], 4
          %s416 = int_to_ptr.vmem [resolvable:$true] %s415
          %418 = dma.hbm_to_vmem [thread:$0]  %s414, 16, %s416, [#allocation12]
        $region44: #{tpu_custom_call.1} parent=11 // pred_fallthru
          _
        // Predicated region
        $region45: #{tpu_custom_call.1} parent=11 // pred_check
          %p419 = pneg %p247
        $region46: #{tpu_custom_call.1} parent=11 // pred_check_branch
          %421 = sbr.rel (%p419) target = $region48
        $region47: #{tpu_custom_call.1} parent=11 // pred_region
          %423 = vsyncadd [#allocation15], 0
          %s424 = sshll.u32 %s9, 4
          %s425 = int_to_ptr.hbm [resolvable:$true] %s424
          %s426 = sshll.u32 [#allocation14], 4
          %s427 = int_to_ptr.vmem [resolvable:$true] %s426
          %432 = dma.hbm_to_vmem [thread:$0]  %s425, 6144, %s427, [#allocation15], 384, 384, 24
        $region48: #{tpu_custom_call.1} parent=11 // pred_fallthru
          _
        // Predicated region
        $region49: #{tpu_custom_call.1} parent=11 // pred_check
          %p433 = pneg %p268
        $region50: #{tpu_custom_call.1} parent=11 // pred_check_branch
          %435 = sbr.rel (%p433) target = $region52
        $region51: #{tpu_custom_call.1} parent=11 // pred_region
          _
        $region52: #{tpu_custom_call.1} parent=11 // pred_fallthru
          _
      $region12: #{tpu_custom_call.1} parent=5 // pred_fallthru
        _
      %p436 = scmp.lt.s32.totalorder %s32, 2
      // Predicated region
      $region53: #{tpu_custom_call.1} parent=5 // pred_check
        %p437 = pneg %p436
      $region54: #{tpu_custom_call.1} parent=5 // pred_check_branch
        %439 = sbr.rel (%p437) target = $region56
      $region55: #{tpu_custom_call.1} parent=5 // pred_region
        // Predicated region
        $region57: #{tpu_custom_call.1} parent=55 // pred_check
          %p440 = pneg %p52
        $region58: #{tpu_custom_call.1} parent=55 // pred_check_branch
          %442 = sbr.rel (%p440) target = $region60
        $region59: #{tpu_custom_call.1} parent=55 // pred_region
          %s443 = sand.u32 %s42, 1
          %s444 = scalar_lea.sflag [#allocation3], %s443
          %s445 = sand.u32 %s42, 1
          %s446 = smul.addr %s445, 384
          %s447 = scalar_lea.vmem [#allocation2], %s446
          %s448 = smul.u32 8, %s32
          %450 = vsyncadd %s444, 0
          %s451 = smul.addr %s448, 6
          %s452 = smul.addr %s451, 8
          %s453 = scalar_lea.hbm %s0, %s452
          %s454 = sshll.u32 %s453, 4
          %s455 = int_to_ptr.hbm [resolvable:$true] %s454
          %s456 = sshll.u32 %s447, 4
          %s457 = int_to_ptr.vmem [resolvable:$true] %s456
          %462 = dma.hbm_to_vmem [thread:$0]  %s455, 6144, %s457, %s444, 768, 768, 48
        $region60: #{tpu_custom_call.1} parent=55 // pred_fallthru
          _
      $region56: #{tpu_custom_call.1} parent=5 // pred_fallthru
        _
      %p463 = scmp.le.s32.totalorder 1, %s32
      %p464 = scmp.lt.s32.totalorder %s32, 3
      %p465 = pnand %p463, %p464
      %p466 = pneg %p465
      // Predicated region
      $region61: #{tpu_custom_call.1} parent=5 // pred_check
        _
      $region62: #{tpu_custom_call.1} parent=5 // pred_check_branch
        %468 = sbr.rel (%p465) target = $region64
      $region63: #{tpu_custom_call.1} parent=5 // pred_region
        %s469 = ssub.s32 %s32, 1
        %s470 = sand.u32 %s45, 1
        %s471 = scalar_lea.sflag [#allocation3], %s470
        %s472 = sand.u32 %s45, 1
        %s473 = smul.addr %s472, 384
        %s474 = scalar_lea.vmem [#allocation2], %s473
        // Predicated region
        $region65: #{tpu_custom_call.1} parent=63 // pred_check
          %p475 = pneg %p58
        $region66: #{tpu_custom_call.1} parent=63 // pred_check_branch
          %477 = sbr.rel (%p475) target = $region68
        $region67: #{tpu_custom_call.1} parent=63 // pred_region
          %479 = dma.done %s471, 6144
        $region68: #{tpu_custom_call.1} parent=63 // pred_fallthru
          _
        // Predicated region
        $region69: #{tpu_custom_call.1} parent=63 // pred_check
          %p480 = pneg %p79
        $region70: #{tpu_custom_call.1} parent=63 // pred_check_branch
          %482 = sbr.rel (%p480) target = $region72
        $region71: #{tpu_custom_call.1} parent=63 // pred_region
          %484 = dma.done [#allocation6], 24576
        $region72: #{tpu_custom_call.1} parent=63 // pred_fallthru
          _
        // Predicated region
        $region73: #{tpu_custom_call.1} parent=63 // pred_check
          %p485 = pneg %p100
        $region74: #{tpu_custom_call.1} parent=63 // pred_check_branch
          %487 = sbr.rel (%p485) target = $region76
        $region75: #{tpu_custom_call.1} parent=63 // pred_region
          %489 = dma.done [#allocation6], 64
        $region76: #{tpu_custom_call.1} parent=63 // pred_fallthru
          _
        // Predicated region
        $region77: #{tpu_custom_call.1} parent=63 // pred_check
          %p490 = pneg %p121
        $region78: #{tpu_custom_call.1} parent=63 // pred_check_branch
          %492 = sbr.rel (%p490) target = $region80
        $region79: #{tpu_custom_call.1} parent=63 // pred_region
          %494 = dma.done [#allocation9], 8192
        $region80: #{tpu_custom_call.1} parent=63 // pred_fallthru
          _
        // Predicated region
        $region81: #{tpu_custom_call.1} parent=63 // pred_check
          %p495 = pneg %p163
        $region82: #{tpu_custom_call.1} parent=63 // pred_check_branch
          %497 = sbr.rel (%p495) target = $region84
        $region83: #{tpu_custom_call.1} parent=63 // pred_region
          %499 = dma.done [#allocation9], 2048
        $region84: #{tpu_custom_call.1} parent=63 // pred_fallthru
          _
        // Predicated region
        $region85: #{tpu_custom_call.1} parent=63 // pred_check
          %p500 = pneg %p205
        $region86: #{tpu_custom_call.1} parent=63 // pred_check_branch
          %502 = sbr.rel (%p500) target = $region88
        $region87: #{tpu_custom_call.1} parent=63 // pred_region
          %504 = dma.done [#allocation12], 16
        $region88: #{tpu_custom_call.1} parent=63 // pred_fallthru
          _
        // Predicated region
        $region89: #{tpu_custom_call.1} parent=63 // pred_check
          %p505 = pneg %p226
        $region90: #{tpu_custom_call.1} parent=63 // pred_check_branch
          %507 = sbr.rel (%p505) target = $region92
        $region91: #{tpu_custom_call.1} parent=63 // pred_region
          %509 = dma.done [#allocation12], 16
        $region92: #{tpu_custom_call.1} parent=63 // pred_fallthru
          _
        // Predicated region
        $region93: #{tpu_custom_call.1} parent=63 // pred_check
          %p510 = pneg %p247
        $region94: #{tpu_custom_call.1} parent=63 // pred_check_branch
          %512 = sbr.rel (%p510) target = $region96
        $region95: #{tpu_custom_call.1} parent=63 // pred_region
          %514 = dma.done [#allocation15], 6144
        $region96: #{tpu_custom_call.1} parent=63 // pred_fallthru
          _
        %s515 = sand.u32 %s45, 1
        %s516 = scalar_lea.sflag [#allocation3], %s515
        %s517 = sand.u32 %s45, 1
        %s518 = smul.addr %s517, 384
        %s519 = scalar_lea.vmem [#allocation2], %s518
        %p520 = pneg %p58
        %p521 = pneg %p55
        %p522 = pneg %p79
        %p523 = pneg %p76
        %p524 = pneg %p100
        %p525 = pneg %p97
        %p526 = pneg %p121
        %p527 = pneg %p118
        %p528 = pneg %p142
        %p529 = pneg %p139
        %p530 = pneg %p163
        %p531 = pneg %p160
        %p532 = pneg %p184
        %p533 = pneg %p181
        %p534 = pneg %p205
        %p535 = pneg %p202
        %p536 = pneg %p226
        %p537 = pneg %p223
        %p538 = pneg %p247
        %p539 = pneg %p244
        %p540 = pneg %p268
        %p541 = pneg %p265
        %p542 = pneg %p294
        %p543 = pneg %p291
        %s544 = sand.u32 %s281, 1
        %s545 = scalar_lea.sflag [#allocation4], %s544
        %s546 = sand.u32 %s281, 1
        %s547 = smul.addr %s546, 32
        %s548 = scalar_lea.vmem [#allocation16], %s547
        %p549 = pneg %p320
        %p550 = pneg %p317
        %s551 = sand.u32 %s307, 1
        %s552 = scalar_lea.sflag [#allocation18], %s551
        %s553 = sand.u32 %s307, 1
        %s554 = smul.addr %s553, 192
        %s555 = scalar_lea.vmem [#allocation17], %s554
        %s556 = smul.u32 8, %s37
        %s557 = smul.u32 8, %s37
        %s558 = smul.u32 8, %s37
        %v559 = vld [vmem:[%s474] sm:$0xff]
        %v560 = vld [vmem:[%s474 + $0x8] sm:$0xff]
        %v561 = vld [vmem:[%s474 + $0x10] sm:$0xff]
        %v562 = vld [vmem:[%s474 + $0x18] sm:$0xff]
        %v563 = vld [vmem:[%s474 + $0x20] sm:$0xff]
        %v564 = vld [vmem:[%s474 + $0x28] sm:$0xff]
        %v565 = vld [vmem:[%s474 + $0x30] sm:$0xff]
        %v566 = vld [vmem:[%s474 + $0x38] sm:$0xff]
        %v567 = vld [vmem:[%s474 + $0x40] sm:$0xff]
        %v568 = vld [vmem:[%s474 + $0x48] sm:$0xff]
        %v569 = vld [vmem:[%s474 + $0x50] sm:$0xff]
        %v570 = vld [vmem:[%s474 + $0x58] sm:$0xff]
        %v571 = vld [vmem:[%s474 + $0x60] sm:$0xff]
        %v572 = vld [vmem:[%s474 + $0x68] sm:$0xff]
        %v573 = vld [vmem:[%s474 + $0x70] sm:$0xff]
        %v574 = vld [vmem:[%s474 + $0x78] sm:$0xff]
        %v575 = vld [vmem:[%s474 + $0x80] sm:$0xff]
        %v576 = vld [vmem:[%s474 + $0x88] sm:$0xff]
        %v577 = vld [vmem:[%s474 + $0x90] sm:$0xff]
        %v578 = vld [vmem:[%s474 + $0x98] sm:$0xff]
        %v579 = vld [vmem:[%s474 + $0xa0] sm:$0xff]
        %v580 = vld [vmem:[%s474 + $0xa8] sm:$0xff]
        %v581 = vld [vmem:[%s474 + $0xb0] sm:$0xff]
        %v582 = vld [vmem:[%s474 + $0xb8] sm:$0xff]
        %v583 = vld [vmem:[%s474 + $0xc0] sm:$0xff]
        %v584 = vld [vmem:[%s474 + $0xc8] sm:$0xff]
        %v585 = vld [vmem:[%s474 + $0xd0] sm:$0xff]
        %v586 = vld [vmem:[%s474 + $0xd8] sm:$0xff]
        %v587 = vld [vmem:[%s474 + $0xe0] sm:$0xff]
        %v588 = vld [vmem:[%s474 + $0xe8] sm:$0xff]
        %v589 = vld [vmem:[%s474 + $0xf0] sm:$0xff]
        %v590 = vld [vmem:[%s474 + $0xf8] sm:$0xff]
        %v591 = vld [vmem:[%s474 + $0x100] sm:$0xff]
        %v592 = vld [vmem:[%s474 + $0x108] sm:$0xff]
        %v593 = vld [vmem:[%s474 + $0x110] sm:$0xff]
        %v594 = vld [vmem:[%s474 + $0x118] sm:$0xff]
        %v595 = vld [vmem:[%s474 + $0x120] sm:$0xff]
        %v596 = vld [vmem:[%s474 + $0x128] sm:$0xff]
        %v597 = vld [vmem:[%s474 + $0x130] sm:$0xff]
        %v598 = vld [vmem:[%s474 + $0x138] sm:$0xff]
        %v599 = vld [vmem:[%s474 + $0x140] sm:$0xff]
        %v600 = vld [vmem:[%s474 + $0x148] sm:$0xff]
        %v601 = vld [vmem:[%s474 + $0x150] sm:$0xff]
        %v602 = vld [vmem:[%s474 + $0x158] sm:$0xff]
        %v603 = vld [vmem:[%s474 + $0x160] sm:$0xff]
        %v604 = vld [vmem:[%s474 + $0x168] sm:$0xff]
        %v605 = vld [vmem:[%s474 + $0x170] sm:$0xff]
        %v606 = vld [vmem:[%s474 + $0x178] sm:$0xff]
        %v607 = vpack.c.bf16 %v565, %v559
        %v608 = vpack.c.bf16 %v566, %v560
        %v609 = vpack.c.bf16 %v567, %v561
        %v610 = vpack.c.bf16 %v568, %v562
        %v611 = vpack.c.bf16 %v569, %v563
        %v612 = vpack.c.bf16 %v570, %v564
        %v613 = vpack.c.bf16 %v577, %v571
        %v614 = vpack.c.bf16 %v578, %v572
        %v615 = vpack.c.bf16 %v579, %v573
        %v616 = vpack.c.bf16 %v580, %v574
        %v617 = vpack.c.bf16 %v581, %v575
        %v618 = vpack.c.bf16 %v582, %v576
        %v619 = vpack.c.bf16 %v589, %v583
        %v620 = vpack.c.bf16 %v590, %v584
        %v621 = vpack.c.bf16 %v591, %v585
        %v622 = vpack.c.bf16 %v592, %v586
        %v623 = vpack.c.bf16 %v593, %v587
        %v624 = vpack.c.bf16 %v594, %v588
        %v625 = vpack.c.bf16 %v601, %v595
        %v626 = vpack.c.bf16 %v602, %v596
        %v627 = vpack.c.bf16 %v603, %v597
        %v628 = vpack.c.bf16 %v604, %v598
        %v629 = vpack.c.bf16 %v605, %v599
        %v630 = vpack.c.bf16 %v606, %v600
        %v631 = vld [vmem:[#allocation5] sm:$0xff]
        %v632 = vld [vmem:[#allocation5 + $0x8] sm:$0xff]
        %v633 = vld [vmem:[#allocation5 + $0x10] sm:$0xff]
        %v634 = vld [vmem:[#allocation5 + $0x18] sm:$0xff]
        %v635 = vld [vmem:[#allocation5 + $0x20] sm:$0xff]
        %v636 = vld [vmem:[#allocation5 + $0x28] sm:$0xff]
        %v637 = vld [vmem:[#allocation5 + $0x30] sm:$0xff]
        %v638 = vld [vmem:[#allocation5 + $0x38] sm:$0xff]
        %v639 = vld [vmem:[#allocation5 + $0x40] sm:$0xff]
        %v640 = vld [vmem:[#allocation5 + $0x48] sm:$0xff]
        %v641 = vld [vmem:[#allocation5 + $0x50] sm:$0xff]
        %v642 = vld [vmem:[#allocation5 + $0x58] sm:$0xff]
        %v643 = vld [vmem:[#allocation5 + $0x60] sm:$0xff]
        %v644 = vld [vmem:[#allocation5 + $0x68] sm:$0xff]
        %v645 = vld [vmem:[#allocation5 + $0x70] sm:$0xff]
        %v646 = vld [vmem:[#allocation5 + $0x78] sm:$0xff]
        %v647 = vld [vmem:[#allocation5 + $0x80] sm:$0xff]
        %v648 = vld [vmem:[#allocation5 + $0x88] sm:$0xff]
        %v649 = vld [vmem:[#allocation5 + $0x90] sm:$0xff]
        %v650 = vld [vmem:[#allocation5 + $0x98] sm:$0xff]
        %v651 = vld [vmem:[#allocation5 + $0xa0] sm:$0xff]
        %v652 = vld [vmem:[#allocation5 + $0xa8] sm:$0xff]
        %v653 = vld [vmem:[#allocation5 + $0xb0] sm:$0xff]
        %v654 = vld [vmem:[#allocation5 + $0xb8] sm:$0xff]
        %v655 = vld [vmem:[#allocation5 + $0xc0] sm:$0xff]
        %v656 = vld [vmem:[#allocation5 + $0xc8] sm:$0xff]
        %v657 = vld [vmem:[#allocation5 + $0xd0] sm:$0xff]
        %v658 = vld [vmem:[#allocation5 + $0xd8] sm:$0xff]
        %v659 = vld [vmem:[#allocation5 + $0xe0] sm:$0xff]
        %v660 = vld [vmem:[#allocation5 + $0xe8] sm:$0xff]
        %v661 = vld [vmem:[#allocation5 + $0xf0] sm:$0xff]
        %v662 = vld [vmem:[#allocation5 + $0xf8] sm:$0xff]
        %v663 = vld [vmem:[#allocation5 + $0x100] sm:$0xff]
        %v664 = vld [vmem:[#allocation5 + $0x108] sm:$0xff]
        %v665 = vld [vmem:[#allocation5 + $0x110] sm:$0xff]
        %v666 = vld [vmem:[#allocation5 + $0x118] sm:$0xff]
        %v667 = vld [vmem:[#allocation5 + $0x120] sm:$0xff]
        %v668 = vld [vmem:[#allocation5 + $0x128] sm:$0xff]
        %v669 = vld [vmem:[#allocation5 + $0x130] sm:$0xff]
        %v670 = vld [vmem:[#allocation5 + $0x138] sm:$0xff]
        %v671 = vld [vmem:[#allocation5 + $0x140] sm:$0xff]
        %v672 = vld [vmem:[#allocation5 + $0x148] sm:$0xff]
        %v673 = vld [vmem:[#allocation5 + $0x150] sm:$0xff]
        %v674 = vld [vmem:[#allocation5 + $0x158] sm:$0xff]
        %v675 = vld [vmem:[#allocation5 + $0x160] sm:$0xff]
        %v676 = vld [vmem:[#allocation5 + $0x168] sm:$0xff]
        %v677 = vld [vmem:[#allocation5 + $0x170] sm:$0xff]
        %v678 = vld [vmem:[#allocation5 + $0x178] sm:$0xff]
        %v679 = vld [vmem:[#allocation5 + $0x180] sm:$0xff]
        %v680 = vld [vmem:[#allocation5 + $0x188] sm:$0xff]
        %v681 = vld [vmem:[#allocation5 + $0x190] sm:$0xff]
        %v682 = vld [vmem:[#allocation5 + $0x198] sm:$0xff]
        %v683 = vld [vmem:[#allocation5 + $0x1a0] sm:$0xff]
        %v684 = vld [vmem:[#allocation5 + $0x1a8] sm:$0xff]
        %v685 = vld [vmem:[#allocation5 + $0x1b0] sm:$0xff]
        %v686 = vld [vmem:[#allocation5 + $0x1b8] sm:$0xff]
        %v687 = vld [vmem:[#allocation5 + $0x1c0] sm:$0xff]
        %v688 = vld [vmem:[#allocation5 + $0x1c8] sm:$0xff]
        %v689 = vld [vmem:[#allocation5 + $0x1d0] sm:$0xff]
        %v690 = vld [vmem:[#allocation5 + $0x1d8] sm:$0xff]
        %v691 = vld [vmem:[#allocation5 + $0x1e0] sm:$0xff]
        %v692 = vld [vmem:[#allocation5 + $0x1e8] sm:$0xff]
        %v693 = vld [vmem:[#allocation5 + $0x1f0] sm:$0xff]
        %v694 = vld [vmem:[#allocation5 + $0x1f8] sm:$0xff]
        %v695 = vld [vmem:[#allocation5 + $0x200] sm:$0xff]
        %v696 = vld [vmem:[#allocation5 + $0x208] sm:$0xff]
        %v697 = vld [vmem:[#allocation5 + $0x210] sm:$0xff]
        %v698 = vld [vmem:[#allocation5 + $0x218] sm:$0xff]
        %v699 = vld [vmem:[#allocation5 + $0x220] sm:$0xff]
        %v700 = vld [vmem:[#allocation5 + $0x228] sm:$0xff]
        %v701 = vld [vmem:[#allocation5 + $0x230] sm:$0xff]
        %v702 = vld [vmem:[#allocation5 + $0x238] sm:$0xff]
        %v703 = vld [vmem:[#allocation5 + $0x240] sm:$0xff]
        %v704 = vld [vmem:[#allocation5 + $0x248] sm:$0xff]
        %v705 = vld [vmem:[#allocation5 + $0x250] sm:$0xff]
        %v706 = vld [vmem:[#allocation5 + $0x258] sm:$0xff]
        %v707 = vld [vmem:[#allocation5 + $0x260] sm:$0xff]
        %v708 = vld [vmem:[#allocation5 + $0x268] sm:$0xff]
        %v709 = vld [vmem:[#allocation5 + $0x270] sm:$0xff]
        %v710 = vld [vmem:[#allocation5 + $0x278] sm:$0xff]
        %v711 = vld [vmem:[#allocation5 + $0x280] sm:$0xff]
        %v712 = vld [vmem:[#allocation5 + $0x288] sm:$0xff]
        %v713 = vld [vmem:[#allocation5 + $0x290] sm:$0xff]
        %v714 = vld [vmem:[#allocation5 + $0x298] sm:$0xff]
        %v715 = vld [vmem:[#allocation5 + $0x2a0] sm:$0xff]
        %v716 = vld [vmem:[#allocation5 + $0x2a8] sm:$0xff]
        %v717 = vld [vmem:[#allocation5 + $0x2b0] sm:$0xff]
        %v718 = vld [vmem:[#allocation5 + $0x2b8] sm:$0xff]
        %v719 = vld [vmem:[#allocation5 + $0x2c0] sm:$0xff]
        %v720 = vld [vmem:[#allocation5 + $0x2c8] sm:$0xff]
        %v721 = vld [vmem:[#allocation5 + $0x2d0] sm:$0xff]
        %v722 = vld [vmem:[#allocation5 + $0x2d8] sm:$0xff]
        %v723 = vld [vmem:[#allocation5 + $0x2e0] sm:$0xff]
        %v724 = vld [vmem:[#allocation5 + $0x2e8] sm:$0xff]
        %v725 = vld [vmem:[#allocation5 + $0x2f0] sm:$0xff]
        %v726 = vld [vmem:[#allocation5 + $0x2f8] sm:$0xff]
        %v727 = vld [vmem:[#allocation5 + $0x300] sm:$0xff]
        %v728 = vld [vmem:[#allocation5 + $0x308] sm:$0xff]
        %v729 = vld [vmem:[#allocation5 + $0x310] sm:$0xff]
        %v730 = vld [vmem:[#allocation5 + $0x318] sm:$0xff]
        %v731 = vld [vmem:[#allocation5 + $0x320] sm:$0xff]
        %v732 = vld [vmem:[#allocation5 + $0x328] sm:$0xff]
        %v733 = vld [vmem:[#allocation5 + $0x330] sm:$0xff]
        %v734 = vld [vmem:[#allocation5 + $0x338] sm:$0xff]
        %v735 = vld [vmem:[#allocation5 + $0x340] sm:$0xff]
        %v736 = vld [vmem:[#allocation5 + $0x348] sm:$0xff]
        %v737 = vld [vmem:[#allocation5 + $0x350] sm:$0xff]
        %v738 = vld [vmem:[#allocation5 + $0x358] sm:$0xff]
        %v739 = vld [vmem:[#allocation5 + $0x360] sm:$0xff]
        %v740 = vld [vmem:[#allocation5 + $0x368] sm:$0xff]
        %v741 = vld [vmem:[#allocation5 + $0x370] sm:$0xff]
        %v742 = vld [vmem:[#allocation5 + $0x378] sm:$0xff]
        %v743 = vld [vmem:[#allocation5 + $0x380] sm:$0xff]
        %v744 = vld [vmem:[#allocation5 + $0x388] sm:$0xff]
        %v745 = vld [vmem:[#allocation5 + $0x390] sm:$0xff]
        %v746 = vld [vmem:[#allocation5 + $0x398] sm:$0xff]
        %v747 = vld [vmem:[#allocation5 + $0x3a0] sm:$0xff]
        %v748 = vld [vmem:[#allocation5 + $0x3a8] sm:$0xff]
        %v749 = vld [vmem:[#allocation5 + $0x3b0] sm:$0xff]
        %v750 = vld [vmem:[#allocation5 + $0x3b8] sm:$0xff]
        %v751 = vld [vmem:[#allocation5 + $0x3c0] sm:$0xff]
        %v752 = vld [vmem:[#allocation5 + $0x3c8] sm:$0xff]
        %v753 = vld [vmem:[#allocation5 + $0x3d0] sm:$0xff]
        %v754 = vld [vmem:[#allocation5 + $0x3d8] sm:$0xff]
        %v755 = vld [vmem:[#allocation5 + $0x3e0] sm:$0xff]
        %v756 = vld [vmem:[#allocation5 + $0x3e8] sm:$0xff]
        %v757 = vld [vmem:[#allocation5 + $0x3f0] sm:$0xff]
        %v758 = vld [vmem:[#allocation5 + $0x3f8] sm:$0xff]
        %v759 = vld [vmem:[#allocation5 + $0x400] sm:$0xff]
        %v760 = vld [vmem:[#allocation5 + $0x408] sm:$0xff]
        %v761 = vld [vmem:[#allocation5 + $0x410] sm:$0xff]
        %v762 = vld [vmem:[#allocation5 + $0x418] sm:$0xff]
        %v763 = vld [vmem:[#allocation5 + $0x420] sm:$0xff]
        %v764 = vld [vmem:[#allocation5 + $0x428] sm:$0xff]
        %v765 = vld [vmem:[#allocation5 + $0x430] sm:$0xff]
        %v766 = vld [vmem:[#allocation5 + $0x438] sm:$0xff]
        %v767 = vld [vmem:[#allocation5 + $0x440] sm:$0xff]
        %v768 = vld [vmem:[#allocation5 + $0x448] sm:$0xff]
        %v769 = vld [vmem:[#allocation5 + $0x450] sm:$0xff]
        %v770 = vld [vmem:[#allocation5 + $0x458] sm:$0xff]
        %v771 = vld [vmem:[#allocation5 + $0x460] sm:$0xff]
        %v772 = vld [vmem:[#allocation5 + $0x468] sm:$0xff]
        %v773 = vld [vmem:[#allocation5 + $0x470] sm:$0xff]
        %v774 = vld [vmem:[#allocation5 + $0x478] sm:$0xff]
        %v775 = vld [vmem:[#allocation5 + $0x480] sm:$0xff]
        %v776 = vld [vmem:[#allocation5 + $0x488] sm:$0xff]
        %v777 = vld [vmem:[#allocation5 + $0x490] sm:$0xff]
        %v778 = vld [vmem:[#allocation5 + $0x498] sm:$0xff]
        %v779 = vld [vmem:[#allocation5 + $0x4a0] sm:$0xff]
        %v780 = vld [vmem:[#allocation5 + $0x4a8] sm:$0xff]
        %v781 = vld [vmem:[#allocation5 + $0x4b0] sm:$0xff]
        %v782 = vld [vmem:[#allocation5 + $0x4b8] sm:$0xff]
        %v783 = vld [vmem:[#allocation5 + $0x4c0] sm:$0xff]
        %v784 = vld [vmem:[#allocation5 + $0x4c8] sm:$0xff]
        %v785 = vld [vmem:[#allocation5 + $0x4d0] sm:$0xff]
        %v786 = vld [vmem:[#allocation5 + $0x4d8] sm:$0xff]
        %v787 = vld [vmem:[#allocation5 + $0x4e0] sm:$0xff]
        %v788 = vld [vmem:[#allocation5 + $0x4e8] sm:$0xff]
        %v789 = vld [vmem:[#allocation5 + $0x4f0] sm:$0xff]
        %v790 = vld [vmem:[#allocation5 + $0x4f8] sm:$0xff]
        %v791 = vld [vmem:[#allocation5 + $0x500] sm:$0xff]
        %v792 = vld [vmem:[#allocation5 + $0x508] sm:$0xff]
        %v793 = vld [vmem:[#allocation5 + $0x510] sm:$0xff]
        %v794 = vld [vmem:[#allocation5 + $0x518] sm:$0xff]
        %v795 = vld [vmem:[#allocation5 + $0x520] sm:$0xff]
        %v796 = vld [vmem:[#allocation5 + $0x528] sm:$0xff]
        %v797 = vld [vmem:[#allocation5 + $0x530] sm:$0xff]
        %v798 = vld [vmem:[#allocation5 + $0x538] sm:$0xff]
        %v799 = vld [vmem:[#allocation5 + $0x540] sm:$0xff]
        %v800 = vld [vmem:[#allocation5 + $0x548] sm:$0xff]
        %v801 = vld [vmem:[#allocation5 + $0x550] sm:$0xff]
        %v802 = vld [vmem:[#allocation5 + $0x558] sm:$0xff]
        %v803 = vld [vmem:[#allocation5 + $0x560] sm:$0xff]
        %v804 = vld [vmem:[#allocation5 + $0x568] sm:$0xff]
        %v805 = vld [vmem:[#allocation5 + $0x570] sm:$0xff]
        %v806 = vld [vmem:[#allocation5 + $0x578] sm:$0xff]
        %v807 = vld [vmem:[#allocation5 + $0x580] sm:$0xff]
        %v808 = vld [vmem:[#allocation5 + $0x588] sm:$0xff]
        %v809 = vld [vmem:[#allocation5 + $0x590] sm:$0xff]
        %v810 = vld [vmem:[#allocation5 + $0x598] sm:$0xff]
        %v811 = vld [vmem:[#allocation5 + $0x5a0] sm:$0xff]
        %v812 = vld [vmem:[#allocation5 + $0x5a8] sm:$0xff]
        %v813 = vld [vmem:[#allocation5 + $0x5b0] sm:$0xff]
        %v814 = vld [vmem:[#allocation5 + $0x5b8] sm:$0xff]
        %v815 = vld [vmem:[#allocation5 + $0x5c0] sm:$0xff]
        %v816 = vld [vmem:[#allocation5 + $0x5c8] sm:$0xff]
        %v817 = vld [vmem:[#allocation5 + $0x5d0] sm:$0xff]
        %v818 = vld [vmem:[#allocation5 + $0x5d8] sm:$0xff]
        %v819 = vld [vmem:[#allocation5 + $0x5e0] sm:$0xff]
        %v820 = vld [vmem:[#allocation5 + $0x5e8] sm:$0xff]
        %v821 = vld [vmem:[#allocation5 + $0x5f0] sm:$0xff]
        %v822 = vld [vmem:[#allocation5 + $0x5f8] sm:$0xff]
        %v823 = vld [vmem:[#allocation7] sm:$0xf]
        %v825 = vperm.slane %v823, 0
        %v826 = vperm.slane %v823, 1
        %v827 = vperm.slane %v823, 2
        %v828 = vperm.slane %v823, 3
        %v1025 = vunpack.c.l.b16 %v631
        %v1026 = vunpack.c.h.b16 %v631
        %v1027 = vunpack.c.l.b16 %v632
        %v1028 = vunpack.c.h.b16 %v632
        %v1029 = vunpack.c.l.b16 %v633
        %v1030 = vunpack.c.h.b16 %v633
        %v1031 = vunpack.c.l.b16 %v634
        %v1032 = vunpack.c.h.b16 %v634
        %v1033 = vunpack.c.l.b16 %v635
        %v1034 = vunpack.c.h.b16 %v635
        %v1035 = vunpack.c.l.b16 %v636
        %v1036 = vunpack.c.h.b16 %v636
        %v1037 = vunpack.c.l.b16 %v637
        %v1038 = vunpack.c.h.b16 %v637
        %v1039 = vunpack.c.l.b16 %v638
        %v1040 = vunpack.c.h.b16 %v638
        %v1041 = vunpack.c.l.b16 %v639
        %v1042 = vunpack.c.h.b16 %v639
        %v1043 = vunpack.c.l.b16 %v640
        %v1044 = vunpack.c.h.b16 %v640
        %v1045 = vunpack.c.l.b16 %v641
        %v1046 = vunpack.c.h.b16 %v641
        %v1047 = vunpack.c.l.b16 %v642
        %v1048 = vunpack.c.h.b16 %v642
        %v1049 = vunpack.c.l.b16 %v643
        %v1050 = vunpack.c.h.b16 %v643
        %v1051 = vunpack.c.l.b16 %v644
        %v1052 = vunpack.c.h.b16 %v644
        %v1053 = vunpack.c.l.b16 %v645
        %v1054 = vunpack.c.h.b16 %v645
        %v1055 = vunpack.c.l.b16 %v646
        %v1056 = vunpack.c.h.b16 %v646
        %v1057 = vunpack.c.l.b16 %v647
        %v1058 = vunpack.c.h.b16 %v647
        %v1059 = vunpack.c.l.b16 %v648
        %v1060 = vunpack.c.h.b16 %v648
        %v1061 = vunpack.c.l.b16 %v649
        %v1062 = vunpack.c.h.b16 %v649
        %v1063 = vunpack.c.l.b16 %v650
        %v1064 = vunpack.c.h.b16 %v650
        %v1065 = vunpack.c.l.b16 %v651
        %v1066 = vunpack.c.h.b16 %v651
        %v1067 = vunpack.c.l.b16 %v652
        %v1068 = vunpack.c.h.b16 %v652
        %v1069 = vunpack.c.l.b16 %v653
        %v1070 = vunpack.c.h.b16 %v653
        %v1071 = vunpack.c.l.b16 %v654
        %v1072 = vunpack.c.h.b16 %v654
        %v1073 = vunpack.c.l.b16 %v655
        %v1074 = vunpack.c.h.b16 %v655
        %v1075 = vunpack.c.l.b16 %v656
        %v1076 = vunpack.c.h.b16 %v656
        %v1077 = vunpack.c.l.b16 %v657
        %v1078 = vunpack.c.h.b16 %v657
        %v1079 = vunpack.c.l.b16 %v658
        %v1080 = vunpack.c.h.b16 %v658
        %v1081 = vunpack.c.l.b16 %v659
        %v1082 = vunpack.c.h.b16 %v659
        %v1083 = vunpack.c.l.b16 %v660
        %v1084 = vunpack.c.h.b16 %v660
        %v1085 = vunpack.c.l.b16 %v661
        %v1086 = vunpack.c.h.b16 %v661
        %v1087 = vunpack.c.l.b16 %v662
        %v1088 = vunpack.c.h.b16 %v662
        %v1089 = vunpack.c.l.b16 %v663
        %v1090 = vunpack.c.h.b16 %v663
        %v1091 = vunpack.c.l.b16 %v664
        %v1092 = vunpack.c.h.b16 %v664
        %v1093 = vunpack.c.l.b16 %v665
        %v1094 = vunpack.c.h.b16 %v665
        %v1095 = vunpack.c.l.b16 %v666
        %v1096 = vunpack.c.h.b16 %v666
        %v1097 = vunpack.c.l.b16 %v667
        %v1098 = vunpack.c.h.b16 %v667
        %v1099 = vunpack.c.l.b16 %v668
        %v1100 = vunpack.c.h.b16 %v668
        %v1101 = vunpack.c.l.b16 %v669
        %v1102 = vunpack.c.h.b16 %v669
        %v1103 = vunpack.c.l.b16 %v670
        %v1104 = vunpack.c.h.b16 %v670
        %v1105 = vunpack.c.l.b16 %v671
        %v1106 = vunpack.c.h.b16 %v671
        %v1107 = vunpack.c.l.b16 %v672
        %v1108 = vunpack.c.h.b16 %v672
        %v1109 = vunpack.c.l.b16 %v673
        %v1110 = vunpack.c.h.b16 %v673
        %v1111 = vunpack.c.l.b16 %v674
        %v1112 = vunpack.c.h.b16 %v674
        %v1113 = vunpack.c.l.b16 %v675
        %v1114 = vunpack.c.h.b16 %v675
        %v1115 = vunpack.c.l.b16 %v676
        %v1116 = vunpack.c.h.b16 %v676
        %v1117 = vunpack.c.l.b16 %v677
        %v1118 = vunpack.c.h.b16 %v677
        %v1119 = vunpack.c.l.b16 %v678
        %v1120 = vunpack.c.h.b16 %v678
        %v1121 = vunpack.c.l.b16 %v679
        %v1122 = vunpack.c.h.b16 %v679
        %v1123 = vunpack.c.l.b16 %v680
        %v1124 = vunpack.c.h.b16 %v680
        %v1125 = vunpack.c.l.b16 %v681
        %v1126 = vunpack.c.h.b16 %v681
        %v1127 = vunpack.c.l.b16 %v682
        %v1128 = vunpack.c.h.b16 %v682
        %v1129 = vunpack.c.l.b16 %v683
        %v1130 = vunpack.c.h.b16 %v683
        %v1131 = vunpack.c.l.b16 %v684
        %v1132 = vunpack.c.h.b16 %v684
        %v1133 = vunpack.c.l.b16 %v685
        %v1134 = vunpack.c.h.b16 %v685
        %v1135 = vunpack.c.l.b16 %v686
        %v1136 = vunpack.c.h.b16 %v686
        %v1137 = vunpack.c.l.b16 %v687
        %v1138 = vunpack.c.h.b16 %v687
        %v1139 = vunpack.c.l.b16 %v688
        %v1140 = vunpack.c.h.b16 %v688
        %v1141 = vunpack.c.l.b16 %v689
        %v1142 = vunpack.c.h.b16 %v689
        %v1143 = vunpack.c.l.b16 %v690
        %v1144 = vunpack.c.h.b16 %v690
        %v1145 = vunpack.c.l.b16 %v691
        %v1146 = vunpack.c.h.b16 %v691
        %v1147 = vunpack.c.l.b16 %v692
        %v1148 = vunpack.c.h.b16 %v692
        %v1149 = vunpack.c.l.b16 %v693
        %v1150 = vunpack.c.h.b16 %v693
        %v1151 = vunpack.c.l.b16 %v694
        %v1152 = vunpack.c.h.b16 %v694
        %v1153 = vunpack.c.l.b16 %v695
        %v1154 = vunpack.c.h.b16 %v695
        %v1155 = vunpack.c.l.b16 %v696
        %v1156 = vunpack.c.h.b16 %v696
        %v1157 = vunpack.c.l.b16 %v697
        %v1158 = vunpack.c.h.b16 %v697
        %v1159 = vunpack.c.l.b16 %v698
        %v1160 = vunpack.c.h.b16 %v698
        %v1161 = vunpack.c.l.b16 %v699
        %v1162 = vunpack.c.h.b16 %v699
        %v1163 = vunpack.c.l.b16 %v700
        %v1164 = vunpack.c.h.b16 %v700
        %v1165 = vunpack.c.l.b16 %v701
        %v1166 = vunpack.c.h.b16 %v701
        %v1167 = vunpack.c.l.b16 %v702
        %v1168 = vunpack.c.h.b16 %v702
        %v1169 = vunpack.c.l.b16 %v703
        %v1170 = vunpack.c.h.b16 %v703
        %v1171 = vunpack.c.l.b16 %v704
        %v1172 = vunpack.c.h.b16 %v704
        %v1173 = vunpack.c.l.b16 %v705
        %v1174 = vunpack.c.h.b16 %v705
        %v1175 = vunpack.c.l.b16 %v706
        %v1176 = vunpack.c.h.b16 %v706
        %v1177 = vunpack.c.l.b16 %v707
        %v1178 = vunpack.c.h.b16 %v707
        %v1179 = vunpack.c.l.b16 %v708
        %v1180 = vunpack.c.h.b16 %v708
        %v1181 = vunpack.c.l.b16 %v709
        %v1182 = vunpack.c.h.b16 %v709
        %v1183 = vunpack.c.l.b16 %v710
        %v1184 = vunpack.c.h.b16 %v710
        %v1185 = vunpack.c.l.b16 %v711
        %v1186 = vunpack.c.h.b16 %v711
        %v1187 = vunpack.c.l.b16 %v712
        %v1188 = vunpack.c.h.b16 %v712
        %v1189 = vunpack.c.l.b16 %v713
        %v1190 = vunpack.c.h.b16 %v713
        %v1191 = vunpack.c.l.b16 %v714
        %v1192 = vunpack.c.h.b16 %v714
        %v1193 = vunpack.c.l.b16 %v715
        %v1194 = vunpack.c.h.b16 %v715
        %v1195 = vunpack.c.l.b16 %v716
        %v1196 = vunpack.c.h.b16 %v716
        %v1197 = vunpack.c.l.b16 %v717
        %v1198 = vunpack.c.h.b16 %v717
        %v1199 = vunpack.c.l.b16 %v718
        %v1200 = vunpack.c.h.b16 %v718
        %v1201 = vunpack.c.l.b16 %v719
        %v1202 = vunpack.c.h.b16 %v719
        %v1203 = vunpack.c.l.b16 %v720
        %v1204 = vunpack.c.h.b16 %v720
        %v1205 = vunpack.c.l.b16 %v721
        %v1206 = vunpack.c.h.b16 %v721
        %v1207 = vunpack.c.l.b16 %v722
        %v1208 = vunpack.c.h.b16 %v722
        %v1209 = vunpack.c.l.b16 %v723
        %v1210 = vunpack.c.h.b16 %v723
        %v1211 = vunpack.c.l.b16 %v724
        %v1212 = vunpack.c.h.b16 %v724
        %v1213 = vunpack.c.l.b16 %v725
        %v1214 = vunpack.c.h.b16 %v725
        %v1215 = vunpack.c.l.b16 %v726
        %v1216 = vunpack.c.h.b16 %v726
        %v1217 = vunpack.c.l.b16 %v727
        %v1218 = vunpack.c.h.b16 %v727
        %v1219 = vunpack.c.l.b16 %v728
        %v1220 = vunpack.c.h.b16 %v728
        %v1221 = vunpack.c.l.b16 %v729
        %v1222 = vunpack.c.h.b16 %v729
        %v1223 = vunpack.c.l.b16 %v730
        %v1224 = vunpack.c.h.b16 %v730
        %v1225 = vunpack.c.l.b16 %v731
        %v1226 = vunpack.c.h.b16 %v731
        %v1227 = vunpack.c.l.b16 %v732
        %v1228 = vunpack.c.h.b16 %v732
        %v1229 = vunpack.c.l.b16 %v733
        %v1230 = vunpack.c.h.b16 %v733
        %v1231 = vunpack.c.l.b16 %v734
        %v1232 = vunpack.c.h.b16 %v734
        %v1233 = vunpack.c.l.b16 %v735
        %v1234 = vunpack.c.h.b16 %v735
        %v1235 = vunpack.c.l.b16 %v736
        %v1236 = vunpack.c.h.b16 %v736
        %v1237 = vunpack.c.l.b16 %v737
        %v1238 = vunpack.c.h.b16 %v737
        %v1239 = vunpack.c.l.b16 %v738
        %v1240 = vunpack.c.h.b16 %v738
        %v1241 = vunpack.c.l.b16 %v739
        %v1242 = vunpack.c.h.b16 %v739
        %v1243 = vunpack.c.l.b16 %v740
        %v1244 = vunpack.c.h.b16 %v740
        %v1245 = vunpack.c.l.b16 %v741
        %v1246 = vunpack.c.h.b16 %v741
        %v1247 = vunpack.c.l.b16 %v742
        %v1248 = vunpack.c.h.b16 %v742
        %v1249 = vunpack.c.l.b16 %v743
        %v1250 = vunpack.c.h.b16 %v743
        %v1251 = vunpack.c.l.b16 %v744
        %v1252 = vunpack.c.h.b16 %v744
        %v1253 = vunpack.c.l.b16 %v745
        %v1254 = vunpack.c.h.b16 %v745
        %v1255 = vunpack.c.l.b16 %v746
        %v1256 = vunpack.c.h.b16 %v746
        %v1257 = vunpack.c.l.b16 %v747
        %v1258 = vunpack.c.h.b16 %v747
        %v1259 = vunpack.c.l.b16 %v748
        %v1260 = vunpack.c.h.b16 %v748
        %v1261 = vunpack.c.l.b16 %v749
        %v1262 = vunpack.c.h.b16 %v749
        %v1263 = vunpack.c.l.b16 %v750
        %v1264 = vunpack.c.h.b16 %v750
        %v1265 = vunpack.c.l.b16 %v751
        %v1266 = vunpack.c.h.b16 %v751
        %v1267 = vunpack.c.l.b16 %v752
        %v1268 = vunpack.c.h.b16 %v752
        %v1269 = vunpack.c.l.b16 %v753
        %v1270 = vunpack.c.h.b16 %v753
        %v1271 = vunpack.c.l.b16 %v754
        %v1272 = vunpack.c.h.b16 %v754
        %v1273 = vunpack.c.l.b16 %v755
        %v1274 = vunpack.c.h.b16 %v755
        %v1275 = vunpack.c.l.b16 %v756
        %v1276 = vunpack.c.h.b16 %v756
        %v1277 = vunpack.c.l.b16 %v757
        %v1278 = vunpack.c.h.b16 %v757
        %v1279 = vunpack.c.l.b16 %v758
        %v1280 = vunpack.c.h.b16 %v758
        %v1281 = vunpack.c.l.b16 %v759
        %v1282 = vunpack.c.h.b16 %v759
        %v1283 = vunpack.c.l.b16 %v760
        %v1284 = vunpack.c.h.b16 %v760
        %v1285 = vunpack.c.l.b16 %v761
        %v1286 = vunpack.c.h.b16 %v761
        %v1287 = vunpack.c.l.b16 %v762
        %v1288 = vunpack.c.h.b16 %v762
        %v1289 = vunpack.c.l.b16 %v763
        %v1290 = vunpack.c.h.b16 %v763
        %v1291 = vunpack.c.l.b16 %v764
        %v1292 = vunpack.c.h.b16 %v764
        %v1293 = vunpack.c.l.b16 %v765
        %v1294 = vunpack.c.h.b16 %v765
        %v1295 = vunpack.c.l.b16 %v766
        %v1296 = vunpack.c.h.b16 %v766
        %v1297 = vunpack.c.l.b16 %v767
        %v1298 = vunpack.c.h.b16 %v767
        %v1299 = vunpack.c.l.b16 %v768
        %v1300 = vunpack.c.h.b16 %v768
        %v1301 = vunpack.c.l.b16 %v769
        %v1302 = vunpack.c.h.b16 %v769
        %v1303 = vunpack.c.l.b16 %v770
        %v1304 = vunpack.c.h.b16 %v770
        %v1305 = vunpack.c.l.b16 %v771
        %v1306 = vunpack.c.h.b16 %v771
        %v1307 = vunpack.c.l.b16 %v772
        %v1308 = vunpack.c.h.b16 %v772
        %v1309 = vunpack.c.l.b16 %v773
        %v1310 = vunpack.c.h.b16 %v773
        %v1311 = vunpack.c.l.b16 %v774
        %v1312 = vunpack.c.h.b16 %v774
        %v1313 = vunpack.c.l.b16 %v775
        %v1314 = vunpack.c.h.b16 %v775
        %v1315 = vunpack.c.l.b16 %v776
        %v1316 = vunpack.c.h.b16 %v776
        %v1317 = vunpack.c.l.b16 %v777
        %v1318 = vunpack.c.h.b16 %v777
        %v1319 = vunpack.c.l.b16 %v778
        %v1320 = vunpack.c.h.b16 %v778
        %v1321 = vunpack.c.l.b16 %v779
        %v1322 = vunpack.c.h.b16 %v779
        %v1323 = vunpack.c.l.b16 %v780
        %v1324 = vunpack.c.h.b16 %v780
        %v1325 = vunpack.c.l.b16 %v781
        %v1326 = vunpack.c.h.b16 %v781
        %v1327 = vunpack.c.l.b16 %v782
        %v1328 = vunpack.c.h.b16 %v782
        %v1329 = vunpack.c.l.b16 %v783
        %v1330 = vunpack.c.h.b16 %v783
        %v1331 = vunpack.c.l.b16 %v784
        %v1332 = vunpack.c.h.b16 %v784
        %v1333 = vunpack.c.l.b16 %v785
        %v1334 = vunpack.c.h.b16 %v785
        %v1335 = vunpack.c.l.b16 %v786
        %v1336 = vunpack.c.h.b16 %v786
        %v1337 = vunpack.c.l.b16 %v787
        %v1338 = vunpack.c.h.b16 %v787
        %v1339 = vunpack.c.l.b16 %v788
        %v1340 = vunpack.c.h.b16 %v788
        %v1341 = vunpack.c.l.b16 %v789
        %v1342 = vunpack.c.h.b16 %v789
        %v1343 = vunpack.c.l.b16 %v790
        %v1344 = vunpack.c.h.b16 %v790
        %v1345 = vunpack.c.l.b16 %v791
        %v1346 = vunpack.c.h.b16 %v791
        %v1347 = vunpack.c.l.b16 %v792
        %v1348 = vunpack.c.h.b16 %v792
        %v1349 = vunpack.c.l.b16 %v793
        %v1350 = vunpack.c.h.b16 %v793
        %v1351 = vunpack.c.l.b16 %v794
        %v1352 = vunpack.c.h.b16 %v794
        %v1353 = vunpack.c.l.b16 %v795
        %v1354 = vunpack.c.h.b16 %v795
        %v1355 = vunpack.c.l.b16 %v796
        %v1356 = vunpack.c.h.b16 %v796
        %v1357 = vunpack.c.l.b16 %v797
        %v1358 = vunpack.c.h.b16 %v797
        %v1359 = vunpack.c.l.b16 %v798
        %v1360 = vunpack.c.h.b16 %v798
        %v1361 = vunpack.c.l.b16 %v799
        %v1362 = vunpack.c.h.b16 %v799
        %v1363 = vunpack.c.l.b16 %v800
        %v1364 = vunpack.c.h.b16 %v800
        %v1365 = vunpack.c.l.b16 %v801
        %v1366 = vunpack.c.h.b16 %v801
        %v1367 = vunpack.c.l.b16 %v802
        %v1368 = vunpack.c.h.b16 %v802
        %v1369 = vunpack.c.l.b16 %v803
        %v1370 = vunpack.c.h.b16 %v803
        %v1371 = vunpack.c.l.b16 %v804
        %v1372 = vunpack.c.h.b16 %v804
        %v1373 = vunpack.c.l.b16 %v805
        %v1374 = vunpack.c.h.b16 %v805
        %v1375 = vunpack.c.l.b16 %v806
        %v1376 = vunpack.c.h.b16 %v806
        %v1377 = vunpack.c.l.b16 %v807
        %v1378 = vunpack.c.h.b16 %v807
        %v1379 = vunpack.c.l.b16 %v808
        %v1380 = vunpack.c.h.b16 %v808
        %v1381 = vunpack.c.l.b16 %v809
        %v1382 = vunpack.c.h.b16 %v809
        %v1383 = vunpack.c.l.b16 %v810
        %v1384 = vunpack.c.h.b16 %v810
        %v1385 = vunpack.c.l.b16 %v811
        %v1386 = vunpack.c.h.b16 %v811
        %v1387 = vunpack.c.l.b16 %v812
        %v1388 = vunpack.c.h.b16 %v812
        %v1389 = vunpack.c.l.b16 %v813
        %v1390 = vunpack.c.h.b16 %v813
        %v1391 = vunpack.c.l.b16 %v814
        %v1392 = vunpack.c.h.b16 %v814
        %v1393 = vunpack.c.l.b16 %v815
        %v1394 = vunpack.c.h.b16 %v815
        %v1395 = vunpack.c.l.b16 %v816
        %v1396 = vunpack.c.h.b16 %v816
        %v1397 = vunpack.c.l.b16 %v817
        %v1398 = vunpack.c.h.b16 %v817
        %v1399 = vunpack.c.l.b16 %v818
        %v1400 = vunpack.c.h.b16 %v818
        %v1401 = vunpack.c.l.b16 %v819
        %v1402 = vunpack.c.h.b16 %v819
        %v1403 = vunpack.c.l.b16 %v820
        %v1404 = vunpack.c.h.b16 %v820
        %v1405 = vunpack.c.l.b16 %v821
        %v1406 = vunpack.c.h.b16 %v821
        %v1407 = vunpack.c.l.b16 %v822
        %v1408 = vunpack.c.h.b16 %v822
        %v1409 = vpack.c.b16 %v1029, %v1025
        %v1410 = vpack.c.b16 %v1030, %v1026
        %v1411 = vpack.c.b16 %v1031, %v1027
        %v1412 = vpack.c.b16 %v1032, %v1028
        %v1413 = vpack.c.b16 %v1037, %v1033
        %v1414 = vpack.c.b16 %v1038, %v1034
        %v1415 = vpack.c.b16 %v1039, %v1035
        %v1416 = vpack.c.b16 %v1040, %v1036
        %v1417 = vpack.c.b16 %v1045, %v1041
        %v1418 = vpack.c.b16 %v1046, %v1042
        %v1419 = vpack.c.b16 %v1047, %v1043
        %v1420 = vpack.c.b16 %v1048, %v1044
        %v1421 = vpack.c.b16 %v1053, %v1049
        %v1422 = vpack.c.b16 %v1054, %v1050
        %v1423 = vpack.c.b16 %v1055, %v1051
        %v1424 = vpack.c.b16 %v1056, %v1052
        %v1425 = vpack.c.b16 %v1061, %v1057
        %v1426 = vpack.c.b16 %v1062, %v1058
        %v1427 = vpack.c.b16 %v1063, %v1059
        %v1428 = vpack.c.b16 %v1064, %v1060
        %v1429 = vpack.c.b16 %v1069, %v1065
        %v1430 = vpack.c.b16 %v1070, %v1066
        %v1431 = vpack.c.b16 %v1071, %v1067
        %v1432 = vpack.c.b16 %v1072, %v1068
        %v1433 = vpack.c.b16 %v1077, %v1073
        %v1434 = vpack.c.b16 %v1078, %v1074
        %v1435 = vpack.c.b16 %v1079, %v1075
        %v1436 = vpack.c.b16 %v1080, %v1076
        %v1437 = vpack.c.b16 %v1085, %v1081
        %v1438 = vpack.c.b16 %v1086, %v1082
        %v1439 = vpack.c.b16 %v1087, %v1083
        %v1440 = vpack.c.b16 %v1088, %v1084
        %v1441 = vpack.c.b16 %v1093, %v1089
        %v1442 = vpack.c.b16 %v1094, %v1090
        %v1443 = vpack.c.b16 %v1095, %v1091
        %v1444 = vpack.c.b16 %v1096, %v1092
        %v1445 = vpack.c.b16 %v1101, %v1097
        %v1446 = vpack.c.b16 %v1102, %v1098
        %v1447 = vpack.c.b16 %v1103, %v1099
        %v1448 = vpack.c.b16 %v1104, %v1100
        %v1449 = vpack.c.b16 %v1109, %v1105
        %v1450 = vpack.c.b16 %v1110, %v1106
        %v1451 = vpack.c.b16 %v1111, %v1107
        %v1452 = vpack.c.b16 %v1112, %v1108
        %v1453 = vpack.c.b16 %v1117, %v1113
        %v1454 = vpack.c.b16 %v1118, %v1114
        %v1455 = vpack.c.b16 %v1119, %v1115
        %v1456 = vpack.c.b16 %v1120, %v1116
        %v1457 = vpack.c.b16 %v1125, %v1121
        %v1458 = vpack.c.b16 %v1126, %v1122
        %v1459 = vpack.c.b16 %v1127, %v1123
        %v1460 = vpack.c.b16 %v1128, %v1124
        %v1461 = vpack.c.b16 %v1133, %v1129
        %v1462 = vpack.c.b16 %v1134, %v1130
        %v1463 = vpack.c.b16 %v1135, %v1131
        %v1464 = vpack.c.b16 %v1136, %v1132
        %v1465 = vpack.c.b16 %v1141, %v1137
        %v1466 = vpack.c.b16 %v1142, %v1138
        %v1467 = vpack.c.b16 %v1143, %v1139
        %v1468 = vpack.c.b16 %v1144, %v1140
        %v1469 = vpack.c.b16 %v1149, %v1145
        %v1470 = vpack.c.b16 %v1150, %v1146
        %v1471 = vpack.c.b16 %v1151, %v1147
        %v1472 = vpack.c.b16 %v1152, %v1148
        %v1473 = vpack.c.b16 %v1157, %v1153
        %v1474 = vpack.c.b16 %v1158, %v1154
        %v1475 = vpack.c.b16 %v1159, %v1155
        %v1476 = vpack.c.b16 %v1160, %v1156
        %v1477 = vpack.c.b16 %v1165, %v1161
        %v1478 = vpack.c.b16 %v1166, %v1162
        %v1479 = vpack.c.b16 %v1167, %v1163
        %v1480 = vpack.c.b16 %v1168, %v1164
        %v1481 = vpack.c.b16 %v1173, %v1169
        %v1482 = vpack.c.b16 %v1174, %v1170
        %v1483 = vpack.c.b16 %v1175, %v1171
        %v1484 = vpack.c.b16 %v1176, %v1172
        %v1485 = vpack.c.b16 %v1181, %v1177
        %v1486 = vpack.c.b16 %v1182, %v1178
        %v1487 = vpack.c.b16 %v1183, %v1179
        %v1488 = vpack.c.b16 %v1184, %v1180
        %v1489 = vpack.c.b16 %v1189, %v1185
        %v1490 = vpack.c.b16 %v1190, %v1186
        %v1491 = vpack.c.b16 %v1191, %v1187
        %v1492 = vpack.c.b16 %v1192, %v1188
        %v1493 = vpack.c.b16 %v1197, %v1193
        %v1494 = vpack.c.b16 %v1198, %v1194
        %v1495 = vpack.c.b16 %v1199, %v1195
        %v1496 = vpack.c.b16 %v1200, %v1196
        %v1497 = vpack.c.b16 %v1205, %v1201
        %v1498 = vpack.c.b16 %v1206, %v1202
        %v1499 = vpack.c.b16 %v1207, %v1203
        %v1500 = vpack.c.b16 %v1208, %v1204
        %v1501 = vpack.c.b16 %v1213, %v1209
        %v1502 = vpack.c.b16 %v1214, %v1210
        %v1503 = vpack.c.b16 %v1215, %v1211
        %v1504 = vpack.c.b16 %v1216, %v1212
        %v1505 = vpack.c.b16 %v1221, %v1217
        %v1506 = vpack.c.b16 %v1222, %v1218
        %v1507 = vpack.c.b16 %v1223, %v1219
        %v1508 = vpack.c.b16 %v1224, %v1220
        %v1509 = vpack.c.b16 %v1229, %v1225
        %v1510 = vpack.c.b16 %v1230, %v1226
        %v1511 = vpack.c.b16 %v1231, %v1227
        %v1512 = vpack.c.b16 %v1232, %v1228
        %v1513 = vpack.c.b16 %v1237, %v1233
        %v1514 = vpack.c.b16 %v1238, %v1234
        %v1515 = vpack.c.b16 %v1239, %v1235
        %v1516 = vpack.c.b16 %v1240, %v1236
        %v1517 = vpack.c.b16 %v1245, %v1241
        %v1518 = vpack.c.b16 %v1246, %v1242
        %v1519 = vpack.c.b16 %v1247, %v1243
        %v1520 = vpack.c.b16 %v1248, %v1244
        %v1521 = vpack.c.b16 %v1253, %v1249
        %v1522 = vpack.c.b16 %v1254, %v1250
        %v1523 = vpack.c.b16 %v1255, %v1251
        %v1524 = vpack.c.b16 %v1256, %v1252
        %v1525 = vpack.c.b16 %v1261, %v1257
        %v1526 = vpack.c.b16 %v1262, %v1258
        %v1527 = vpack.c.b16 %v1263, %v1259
        %v1528 = vpack.c.b16 %v1264, %v1260
        %v1529 = vpack.c.b16 %v1269, %v1265
        %v1530 = vpack.c.b16 %v1270, %v1266
        %v1531 = vpack.c.b16 %v1271, %v1267
        %v1532 = vpack.c.b16 %v1272, %v1268
        %v1533 = vpack.c.b16 %v1277, %v1273
        %v1534 = vpack.c.b16 %v1278, %v1274
        %v1535 = vpack.c.b16 %v1279, %v1275
        %v1536 = vpack.c.b16 %v1280, %v1276
        %v1537 = vpack.c.b16 %v1285, %v1281
        %v1538 = vpack.c.b16 %v1286, %v1282
        %v1539 = vpack.c.b16 %v1287, %v1283
        %v1540 = vpack.c.b16 %v1288, %v1284
        %v1541 = vpack.c.b16 %v1293, %v1289
        %v1542 = vpack.c.b16 %v1294, %v1290
        %v1543 = vpack.c.b16 %v1295, %v1291
        %v1544 = vpack.c.b16 %v1296, %v1292
        %v1545 = vpack.c.b16 %v1301, %v1297
        %v1546 = vpack.c.b16 %v1302, %v1298
        %v1547 = vpack.c.b16 %v1303, %v1299
        %v1548 = vpack.c.b16 %v1304, %v1300
        %v1549 = vpack.c.b16 %v1309, %v1305
        %v1550 = vpack.c.b16 %v1310, %v1306
        %v1551 = vpack.c.b16 %v1311, %v1307
        %v1552 = vpack.c.b16 %v1312, %v1308
        %v1553 = vpack.c.b16 %v1317, %v1313
        %v1554 = vpack.c.b16 %v1318, %v1314
        %v1555 = vpack.c.b16 %v1319, %v1315
        %v1556 = vpack.c.b16 %v1320, %v1316
        %v1557 = vpack.c.b16 %v1325, %v1321
        %v1558 = vpack.c.b16 %v1326, %v1322
        %v1559 = vpack.c.b16 %v1327, %v1323
        %v1560 = vpack.c.b16 %v1328, %v1324
        %v1561 = vpack.c.b16 %v1333, %v1329
        %v1562 = vpack.c.b16 %v1334, %v1330
        %v1563 = vpack.c.b16 %v1335, %v1331
        %v1564 = vpack.c.b16 %v1336, %v1332
        %v1565 = vpack.c.b16 %v1341, %v1337
        %v1566 = vpack.c.b16 %v1342, %v1338
        %v1567 = vpack.c.b16 %v1343, %v1339
        %v1568 = vpack.c.b16 %v1344, %v1340
        %v1569 = vpack.c.b16 %v1349, %v1345
        %v1570 = vpack.c.b16 %v1350, %v1346
        %v1571 = vpack.c.b16 %v1351, %v1347
        %v1572 = vpack.c.b16 %v1352, %v1348
        %v1573 = vpack.c.b16 %v1357, %v1353
        %v1574 = vpack.c.b16 %v1358, %v1354
        %v1575 = vpack.c.b16 %v1359, %v1355
        %v1576 = vpack.c.b16 %v1360, %v1356
        %v1577 = vpack.c.b16 %v1365, %v1361
        %v1578 = vpack.c.b16 %v1366, %v1362
        %v1579 = vpack.c.b16 %v1367, %v1363
        %v1580 = vpack.c.b16 %v1368, %v1364
        %v1581 = vpack.c.b16 %v1373, %v1369
        %v1582 = vpack.c.b16 %v1374, %v1370
        %v1583 = vpack.c.b16 %v1375, %v1371
        %v1584 = vpack.c.b16 %v1376, %v1372
        %v1585 = vpack.c.b16 %v1381, %v1377
        %v1586 = vpack.c.b16 %v1382, %v1378
        %v1587 = vpack.c.b16 %v1383, %v1379
        %v1588 = vpack.c.b16 %v1384, %v1380
        %v1589 = vpack.c.b16 %v1389, %v1385
        %v1590 = vpack.c.b16 %v1390, %v1386
        %v1591 = vpack.c.b16 %v1391, %v1387
        %v1592 = vpack.c.b16 %v1392, %v1388
        %v1593 = vpack.c.b16 %v1397, %v1393
        %v1594 = vpack.c.b16 %v1398, %v1394
        %v1595 = vpack.c.b16 %v1399, %v1395
        %v1596 = vpack.c.b16 %v1400, %v1396
        %v1597 = vpack.c.b16 %v1405, %v1401
        %v1598 = vpack.c.b16 %v1406, %v1402
        %v1599 = vpack.c.b16 %v1407, %v1403
        %v1600 = vpack.c.b16 %v1408, %v1404
        %1793 = vmatpush.bf16.msra.mxu0 %v1437
        %1794 = vmatpush.bf16.msra.mxu0 %v1433
        %1795 = vmatpush.bf16.msra.mxu0 %v1429
        %1796 = vmatpush.bf16.msra.mxu0 %v1425
        %1797 = vmatpush.bf16.msra.mxu0 %v1421
        %1798 = vmatpush.bf16.msra.mxu0 %v1417
        %1799 = vmatpush.bf16.msra.mxu0 %v1413
        %1800 = vmatpush.bf16.msra.mxu0 %v1409
        %1801 = vmatmul.bf16.gmra.mxu0 %v607
        %v1802 = vpop.f32.mrf.mxu0
        %v1803 = vadd.f32 %v825, %v1802
        %v1804 = vpop.f32.mrf.mxu0
        %v1805 = vadd.f32 %v825, %v1804
        %1806 = vmatmul.bf16.gmra.mxu0 %v613
        %v1807 = vpop.f32.mrf.mxu0
        %v1808 = vadd.f32 %v825, %v1807
        %v1809 = vpop.f32.mrf.mxu0
        %v1810 = vadd.f32 %v825, %v1809
        %1811 = vmatmul.bf16.gmra.mxu0 %v619
        %v1812 = vpop.f32.mrf.mxu0
        %v1813 = vadd.f32 %v825, %v1812
        %v1814 = vpop.f32.mrf.mxu0
        %v1815 = vadd.f32 %v825, %v1814
        %1816 = vmatmul.bf16.gmra.mxu0 %v625
        %v1817 = vpop.f32.mrf.mxu0
        %v1818 = vadd.f32 %v825, %v1817
        %v1819 = vpop.f32.mrf.mxu0
        %v1820 = vadd.f32 %v825, %v1819
        %1821 = vdwg.mxu0
        %1822 = vmatpush.bf16.msra.mxu0 %v1469
        %1823 = vmatpush.bf16.msra.mxu0 %v1465
        %1824 = vmatpush.bf16.msra.mxu0 %v1461
        %1825 = vmatpush.bf16.msra.mxu0 %v1457
        %1826 = vmatpush.bf16.msra.mxu0 %v1453
        %1827 = vmatpush.bf16.msra.mxu0 %v1449
        %1828 = vmatpush.bf16.msra.mxu0 %v1445
        %1829 = vmatpush.bf16.msra.mxu0 %v1441
        %1830 = vmatmul.bf16.gmra.mxu0 %v608
        %v1831 = vpop.f32.mrf.mxu0
        %v1832 = vadd.f32 %v1803, %v1831
        %v1833 = vpop.f32.mrf.mxu0
        %v1834 = vadd.f32 %v1805, %v1833
        %1835 = vmatmul.bf16.gmra.mxu0 %v614
        %v1836 = vpop.f32.mrf.mxu0
        %v1837 = vadd.f32 %v1808, %v1836
        %v1838 = vpop.f32.mrf.mxu0
        %v1839 = vadd.f32 %v1810, %v1838
        %1840 = vmatmul.bf16.gmra.mxu0 %v620
        %v1841 = vpop.f32.mrf.mxu0
        %v1842 = vadd.f32 %v1813, %v1841
        %v1843 = vpop.f32.mrf.mxu0
        %v1844 = vadd.f32 %v1815, %v1843
        %1845 = vmatmul.bf16.gmra.mxu0 %v626
        %v1846 = vpop.f32.mrf.mxu0
        %v1847 = vadd.f32 %v1818, %v1846
        %v1848 = vpop.f32.mrf.mxu0
        %v1849 = vadd.f32 %v1820, %v1848
        %1850 = vdwg.mxu0
        %1851 = vmatpush.bf16.msra.mxu0 %v1501
        %1852 = vmatpush.bf16.msra.mxu0 %v1497
        %1853 = vmatpush.bf16.msra.mxu0 %v1493
        %1854 = vmatpush.bf16.msra.mxu0 %v1489
        %1855 = vmatpush.bf16.msra.mxu0 %v1485
        %1856 = vmatpush.bf16.msra.mxu0 %v1481
        %1857 = vmatpush.bf16.msra.mxu0 %v1477
        %1858 = vmatpush.bf16.msra.mxu0 %v1473
        %1859 = vmatmul.bf16.gmra.mxu0 %v609
        %v1860 = vpop.f32.mrf.mxu0
        %v1861 = vadd.f32 %v1832, %v1860
        %v1862 = vpop.f32.mrf.mxu0
        %v1863 = vadd.f32 %v1834, %v1862
        %1864 = vmatmul.bf16.gmra.mxu0 %v615
        %v1865 = vpop.f32.mrf.mxu0
        %v1866 = vadd.f32 %v1837, %v1865
        %v1867 = vpop.f32.mrf.mxu0
        %v1868 = vadd.f32 %v1839, %v1867
        %1869 = vmatmul.bf16.gmra.mxu0 %v621
        %v1870 = vpop.f32.mrf.mxu0
        %v1871 = vadd.f32 %v1842, %v1870
        %v1872 = vpop.f32.mrf.mxu0
        %v1873 = vadd.f32 %v1844, %v1872
        %1874 = vmatmul.bf16.gmra.mxu0 %v627
        %v1875 = vpop.f32.mrf.mxu0
        %v1876 = vadd.f32 %v1847, %v1875
        %v1877 = vpop.f32.mrf.mxu0
        %v1878 = vadd.f32 %v1849, %v1877
        %1879 = vdwg.mxu0
        %1880 = vmatpush.bf16.msra.mxu0 %v1533
        %1881 = vmatpush.bf16.msra.mxu0 %v1529
        %1882 = vmatpush.bf16.msra.mxu0 %v1525
        %1883 = vmatpush.bf16.msra.mxu0 %v1521
        %1884 = vmatpush.bf16.msra.mxu0 %v1517
        %1885 = vmatpush.bf16.msra.mxu0 %v1513
        %1886 = vmatpush.bf16.msra.mxu0 %v1509
        %1887 = vmatpush.bf16.msra.mxu0 %v1505
        %1888 = vmatmul.bf16.gmra.mxu0 %v610
        %v1889 = vpop.f32.mrf.mxu0
        %v1890 = vadd.f32 %v1861, %v1889
        %v1891 = vpop.f32.mrf.mxu0
        %v1892 = vadd.f32 %v1863, %v1891
        %1893 = vmatmul.bf16.gmra.mxu0 %v616
        %v1894 = vpop.f32.mrf.mxu0
        %v1895 = vadd.f32 %v1866, %v1894
        %v1896 = vpop.f32.mrf.mxu0
        %v1897 = vadd.f32 %v1868, %v1896
        %1898 = vmatmul.bf16.gmra.mxu0 %v622
        %v1899 = vpop.f32.mrf.mxu0
        %v1900 = vadd.f32 %v1871, %v1899
        %v1901 = vpop.f32.mrf.mxu0
        %v1902 = vadd.f32 %v1873, %v1901
        %1903 = vmatmul.bf16.gmra.mxu0 %v628
        %v1904 = vpop.f32.mrf.mxu0
        %v1905 = vadd.f32 %v1876, %v1904
        %v1906 = vpop.f32.mrf.mxu0
        %v1907 = vadd.f32 %v1878, %v1906
        %1908 = vdwg.mxu0
        %1909 = vmatpush.bf16.msra.mxu0 %v1565
        %1910 = vmatpush.bf16.msra.mxu0 %v1561
        %1911 = vmatpush.bf16.msra.mxu0 %v1557
        %1912 = vmatpush.bf16.msra.mxu0 %v1553
        %1913 = vmatpush.bf16.msra.mxu0 %v1549
        %1914 = vmatpush.bf16.msra.mxu0 %v1545
        %1915 = vmatpush.bf16.msra.mxu0 %v1541
        %1916 = vmatpush.bf16.msra.mxu0 %v1537
        %1917 = vmatmul.bf16.gmra.mxu0 %v611
        %v1918 = vpop.f32.mrf.mxu0
        %v1919 = vadd.f32 %v1890, %v1918
        %v1920 = vpop.f32.mrf.mxu0
        %v1921 = vadd.f32 %v1892, %v1920
        %1922 = vmatmul.bf16.gmra.mxu0 %v617
        %v1923 = vpop.f32.mrf.mxu0
        %v1924 = vadd.f32 %v1895, %v1923
        %v1925 = vpop.f32.mrf.mxu0
        %v1926 = vadd.f32 %v1897, %v1925
        %1927 = vmatmul.bf16.gmra.mxu0 %v623
        %v1928 = vpop.f32.mrf.mxu0
        %v1929 = vadd.f32 %v1900, %v1928
        %v1930 = vpop.f32.mrf.mxu0
        %v1931 = vadd.f32 %v1902, %v1930
        %1932 = vmatmul.bf16.gmra.mxu0 %v629
        %v1933 = vpop.f32.mrf.mxu0
        %v1934 = vadd.f32 %v1905, %v1933
        %v1935 = vpop.f32.mrf.mxu0
        %v1936 = vadd.f32 %v1907, %v1935
        %1937 = vdwg.mxu0
        %1938 = vmatpush.bf16.msra.mxu0 %v1597
        %1939 = vmatpush.bf16.msra.mxu0 %v1593
        %1940 = vmatpush.bf16.msra.mxu0 %v1589
        %1941 = vmatpush.bf16.msra.mxu0 %v1585
        %1942 = vmatpush.bf16.msra.mxu0 %v1581
        %1943 = vmatpush.bf16.msra.mxu0 %v1577
        %1944 = vmatpush.bf16.msra.mxu0 %v1573
        %1945 = vmatpush.bf16.msra.mxu0 %v1569
        %1946 = vmatmul.bf16.gmra.mxu0 %v612
        %v1947 = vpop.f32.mrf.mxu0
        %v1948 = vadd.f32 %v1919, %v1947
        %v1949 = vpop.f32.mrf.mxu0
        %v1950 = vadd.f32 %v1921, %v1949
        %1951 = vmatmul.bf16.gmra.mxu0 %v618
        %v1952 = vpop.f32.mrf.mxu0
        %v1953 = vadd.f32 %v1924, %v1952
        %v1954 = vpop.f32.mrf.mxu0
        %v1955 = vadd.f32 %v1926, %v1954
        %1956 = vmatmul.bf16.gmra.mxu0 %v624
        %v1957 = vpop.f32.mrf.mxu0
        %v1958 = vadd.f32 %v1929, %v1957
        %v1959 = vpop.f32.mrf.mxu0
        %v1960 = vadd.f32 %v1931, %v1959
        %1961 = vmatmul.bf16.gmra.mxu0 %v630
        %v1962 = vpop.f32.mrf.mxu0
        %v1963 = vadd.f32 %v1934, %v1962
        %v1964 = vpop.f32.mrf.mxu0
        %v1965 = vadd.f32 %v1936, %v1964
        %1966 = vdwg.mxu0
        %1967 = vmatpush.bf16.msra.mxu0 %v1438
        %1968 = vmatpush.bf16.msra.mxu0 %v1434
        %1969 = vmatpush.bf16.msra.mxu0 %v1430
        %1970 = vmatpush.bf16.msra.mxu0 %v1426
        %1971 = vmatpush.bf16.msra.mxu0 %v1422
        %1972 = vmatpush.bf16.msra.mxu0 %v1418
        %1973 = vmatpush.bf16.msra.mxu0 %v1414
        %1974 = vmatpush.bf16.msra.mxu0 %v1410
        %1975 = vmatmul.bf16.gmra.mxu0 %v607
        %v1976 = vpop.f32.mrf.mxu0
        %v1977 = vadd.f32 %v826, %v1976
        %v1978 = vpop.f32.mrf.mxu0
        %v1979 = vadd.f32 %v826, %v1978
        %1980 = vmatmul.bf16.gmra.mxu0 %v613
        %v1981 = vpop.f32.mrf.mxu0
        %v1982 = vadd.f32 %v826, %v1981
        %v1983 = vpop.f32.mrf.mxu0
        %v1984 = vadd.f32 %v826, %v1983
        %1985 = vmatmul.bf16.gmra.mxu0 %v619
        %v1986 = vpop.f32.mrf.mxu0
        %v1987 = vadd.f32 %v826, %v1986
        %v1988 = vpop.f32.mrf.mxu0
        %v1989 = vadd.f32 %v826, %v1988
        %1990 = vmatmul.bf16.gmra.mxu0 %v625
        %v1991 = vpop.f32.mrf.mxu0
        %v1992 = vadd.f32 %v826, %v1991
        %v1993 = vpop.f32.mrf.mxu0
        %v1994 = vadd.f32 %v826, %v1993
        %1995 = vdwg.mxu0
        %1996 = vmatpush.bf16.msra.mxu0 %v1470
        %1997 = vmatpush.bf16.msra.mxu0 %v1466
        %1998 = vmatpush.bf16.msra.mxu0 %v1462
        %1999 = vmatpush.bf16.msra.mxu0 %v1458
        %2000 = vmatpush.bf16.msra.mxu0 %v1454
        %2001 = vmatpush.bf16.msra.mxu0 %v1450
        %2002 = vmatpush.bf16.msra.mxu0 %v1446
        %2003 = vmatpush.bf16.msra.mxu0 %v1442
        %2004 = vmatmul.bf16.gmra.mxu0 %v608
        %v2005 = vpop.f32.mrf.mxu0
        %v2006 = vadd.f32 %v1977, %v2005
        %v2007 = vpop.f32.mrf.mxu0
        %v2008 = vadd.f32 %v1979, %v2007
        %2009 = vmatmul.bf16.gmra.mxu0 %v614
        %v2010 = vpop.f32.mrf.mxu0
        %v2011 = vadd.f32 %v1982, %v2010
        %v2012 = vpop.f32.mrf.mxu0
        %v2013 = vadd.f32 %v1984, %v2012
        %2014 = vmatmul.bf16.gmra.mxu0 %v620
        %v2015 = vpop.f32.mrf.mxu0
        %v2016 = vadd.f32 %v1987, %v2015
        %v2017 = vpop.f32.mrf.mxu0
        %v2018 = vadd.f32 %v1989, %v2017
        %2019 = vmatmul.bf16.gmra.mxu0 %v626
        %v2020 = vpop.f32.mrf.mxu0
        %v2021 = vadd.f32 %v1992, %v2020
        %v2022 = vpop.f32.mrf.mxu0
        %v2023 = vadd.f32 %v1994, %v2022
        %2024 = vdwg.mxu0
        %2025 = vmatpush.bf16.msra.mxu0 %v1502
        %2026 = vmatpush.bf16.msra.mxu0 %v1498
        %2027 = vmatpush.bf16.msra.mxu0 %v1494
        %2028 = vmatpush.bf16.msra.mxu0 %v1490
        %2029 = vmatpush.bf16.msra.mxu0 %v1486
        %2030 = vmatpush.bf16.msra.mxu0 %v1482
        %2031 = vmatpush.bf16.msra.mxu0 %v1478
        %2032 = vmatpush.bf16.msra.mxu0 %v1474
        %2033 = vmatmul.bf16.gmra.mxu0 %v609
        %v2034 = vpop.f32.mrf.mxu0
        %v2035 = vadd.f32 %v2006, %v2034
        %v2036 = vpop.f32.mrf.mxu0
        %v2037 = vadd.f32 %v2008, %v2036
        %2038 = vmatmul.bf16.gmra.mxu0 %v615
        %v2039 = vpop.f32.mrf.mxu0
        %v2040 = vadd.f32 %v2011, %v2039
        %v2041 = vpop.f32.mrf.mxu0
        %v2042 = vadd.f32 %v2013, %v2041
        %2043 = vmatmul.bf16.gmra.mxu0 %v621
        %v2044 = vpop.f32.mrf.mxu0
        %v2045 = vadd.f32 %v2016, %v2044
        %v2046 = vpop.f32.mrf.mxu0
        %v2047 = vadd.f32 %v2018, %v2046
        %2048 = vmatmul.bf16.gmra.mxu0 %v627
        %v2049 = vpop.f32.mrf.mxu0
        %v2050 = vadd.f32 %v2021, %v2049
        %v2051 = vpop.f32.mrf.mxu0
        %v2052 = vadd.f32 %v2023, %v2051
        %2053 = vdwg.mxu0
        %2054 = vmatpush.bf16.msra.mxu0 %v1534
        %2055 = vmatpush.bf16.msra.mxu0 %v1530
        %2056 = vmatpush.bf16.msra.mxu0 %v1526
        %2057 = vmatpush.bf16.msra.mxu0 %v1522
        %2058 = vmatpush.bf16.msra.mxu0 %v1518
        %2059 = vmatpush.bf16.msra.mxu0 %v1514
        %2060 = vmatpush.bf16.msra.mxu0 %v1510
        %2061 = vmatpush.bf16.msra.mxu0 %v1506
        %2062 = vmatmul.bf16.gmra.mxu0 %v610
        %v2063 = vpop.f32.mrf.mxu0
        %v2064 = vadd.f32 %v2035, %v2063
        %v2065 = vpop.f32.mrf.mxu0
        %v2066 = vadd.f32 %v2037, %v2065
        %2067 = vmatmul.bf16.gmra.mxu0 %v616
        %v2068 = vpop.f32.mrf.mxu0
        %v2069 = vadd.f32 %v2040, %v2068
        %v2070 = vpop.f32.mrf.mxu0
        %v2071 = vadd.f32 %v2042, %v2070
        %2072 = vmatmul.bf16.gmra.mxu0 %v622
        %v2073 = vpop.f32.mrf.mxu0
        %v2074 = vadd.f32 %v2045, %v2073
        %v2075 = vpop.f32.mrf.mxu0
        %v2076 = vadd.f32 %v2047, %v2075
        %2077 = vmatmul.bf16.gmra.mxu0 %v628
        %v2078 = vpop.f32.mrf.mxu0
        %v2079 = vadd.f32 %v2050, %v2078
        %v2080 = vpop.f32.mrf.mxu0
        %v2081 = vadd.f32 %v2052, %v2080
        %2082 = vdwg.mxu0
        %2083 = vmatpush.bf16.msra.mxu0 %v1566
        %2084 = vmatpush.bf16.msra.mxu0 %v1562
        %2085 = vmatpush.bf16.msra.mxu0 %v1558
        %2086 = vmatpush.bf16.msra.mxu0 %v1554
        %2087 = vmatpush.bf16.msra.mxu0 %v1550
        %2088 = vmatpush.bf16.msra.mxu0 %v1546
        %2089 = vmatpush.bf16.msra.mxu0 %v1542
        %2090 = vmatpush.bf16.msra.mxu0 %v1538
        %2091 = vmatmul.bf16.gmra.mxu0 %v611
        %v2092 = vpop.f32.mrf.mxu0
        %v2093 = vadd.f32 %v2064, %v2092
        %v2094 = vpop.f32.mrf.mxu0
        %v2095 = vadd.f32 %v2066, %v2094
        %2096 = vmatmul.bf16.gmra.mxu0 %v617
        %v2097 = vpop.f32.mrf.mxu0
        %v2098 = vadd.f32 %v2069, %v2097
        %v2099 = vpop.f32.mrf.mxu0
        %v2100 = vadd.f32 %v2071, %v2099
        %2101 = vmatmul.bf16.gmra.mxu0 %v623
        %v2102 = vpop.f32.mrf.mxu0
        %v2103 = vadd.f32 %v2074, %v2102
        %v2104 = vpop.f32.mrf.mxu0
        %v2105 = vadd.f32 %v2076, %v2104
        %2106 = vmatmul.bf16.gmra.mxu0 %v629
        %v2107 = vpop.f32.mrf.mxu0
        %v2108 = vadd.f32 %v2079, %v2107
        %v2109 = vpop.f32.mrf.mxu0
        %v2110 = vadd.f32 %v2081, %v2109
        %2111 = vdwg.mxu0
        %2112 = vmatpush.bf16.msra.mxu0 %v1598
        %2113 = vmatpush.bf16.msra.mxu0 %v1594
        %2114 = vmatpush.bf16.msra.mxu0 %v1590
        %2115 = vmatpush.bf16.msra.mxu0 %v1586
        %2116 = vmatpush.bf16.msra.mxu0 %v1582
        %2117 = vmatpush.bf16.msra.mxu0 %v1578
        %2118 = vmatpush.bf16.msra.mxu0 %v1574
        %2119 = vmatpush.bf16.msra.mxu0 %v1570
        %2120 = vmatmul.bf16.gmra.mxu0 %v612
        %v2121 = vpop.f32.mrf.mxu0
        %v2122 = vadd.f32 %v2093, %v2121
        %v2123 = vpop.f32.mrf.mxu0
        %v2124 = vadd.f32 %v2095, %v2123
        %2125 = vmatmul.bf16.gmra.mxu0 %v618
        %v2126 = vpop.f32.mrf.mxu0
        %v2127 = vadd.f32 %v2098, %v2126
        %v2128 = vpop.f32.mrf.mxu0
        %v2129 = vadd.f32 %v2100, %v2128
        %2130 = vmatmul.bf16.gmra.mxu0 %v624
        %v2131 = vpop.f32.mrf.mxu0
        %v2132 = vadd.f32 %v2103, %v2131
        %v2133 = vpop.f32.mrf.mxu0
        %v2134 = vadd.f32 %v2105, %v2133
        %2135 = vmatmul.bf16.gmra.mxu0 %v630
        %v2136 = vpop.f32.mrf.mxu0
        %v2137 = vadd.f32 %v2108, %v2136
        %v2138 = vpop.f32.mrf.mxu0
        %v2139 = vadd.f32 %v2110, %v2138
        %2140 = vdwg.mxu0
        %2141 = vmatpush.bf16.msra.mxu0 %v1439
        %2142 = vmatpush.bf16.msra.mxu0 %v1435
        %2143 = vmatpush.bf16.msra.mxu0 %v1431
        %2144 = vmatpush.bf16.msra.mxu0 %v1427
        %2145 = vmatpush.bf16.msra.mxu0 %v1423
        %2146 = vmatpush.bf16.msra.mxu0 %v1419
        %2147 = vmatpush.bf16.msra.mxu0 %v1415
        %2148 = vmatpush.bf16.msra.mxu0 %v1411
        %2149 = vmatmul.bf16.gmra.mxu0 %v607
        %v2150 = vpop.f32.mrf.mxu0
        %v2151 = vadd.f32 %v827, %v2150
        %v2152 = vpop.f32.mrf.mxu0
        %v2153 = vadd.f32 %v827, %v2152
        %2154 = vmatmul.bf16.gmra.mxu0 %v613
        %v2155 = vpop.f32.mrf.mxu0
        %v2156 = vadd.f32 %v827, %v2155
        %v2157 = vpop.f32.mrf.mxu0
        %v2158 = vadd.f32 %v827, %v2157
        %2159 = vmatmul.bf16.gmra.mxu0 %v619
        %v2160 = vpop.f32.mrf.mxu0
        %v2161 = vadd.f32 %v827, %v2160
        %v2162 = vpop.f32.mrf.mxu0
        %v2163 = vadd.f32 %v827, %v2162
        %2164 = vmatmul.bf16.gmra.mxu0 %v625
        %v2165 = vpop.f32.mrf.mxu0
        %v2166 = vadd.f32 %v827, %v2165
        %v2167 = vpop.f32.mrf.mxu0
        %v2168 = vadd.f32 %v827, %v2167
        %2169 = vdwg.mxu0
        %2170 = vmatpush.bf16.msra.mxu0 %v1471
        %2171 = vmatpush.bf16.msra.mxu0 %v1467
        %2172 = vmatpush.bf16.msra.mxu0 %v1463
        %2173 = vmatpush.bf16.msra.mxu0 %v1459
        %2174 = vmatpush.bf16.msra.mxu0 %v1455
        %2175 = vmatpush.bf16.msra.mxu0 %v1451
        %2176 = vmatpush.bf16.msra.mxu0 %v1447
        %2177 = vmatpush.bf16.msra.mxu0 %v1443
        %2178 = vmatmul.bf16.gmra.mxu0 %v608
        %v2179 = vpop.f32.mrf.mxu0
        %v2180 = vadd.f32 %v2151, %v2179
        %v2181 = vpop.f32.mrf.mxu0
        %v2182 = vadd.f32 %v2153, %v2181
        %2183 = vmatmul.bf16.gmra.mxu0 %v614
        %v2184 = vpop.f32.mrf.mxu0
        %v2185 = vadd.f32 %v2156, %v2184
        %v2186 = vpop.f32.mrf.mxu0
        %v2187 = vadd.f32 %v2158, %v2186
        %2188 = vmatmul.bf16.gmra.mxu0 %v620
        %v2189 = vpop.f32.mrf.mxu0
        %v2190 = vadd.f32 %v2161, %v2189
        %v2191 = vpop.f32.mrf.mxu0
        %v2192 = vadd.f32 %v2163, %v2191
        %2193 = vmatmul.bf16.gmra.mxu0 %v626
        %v2194 = vpop.f32.mrf.mxu0
        %v2195 = vadd.f32 %v2166, %v2194
        %v2196 = vpop.f32.mrf.mxu0
        %v2197 = vadd.f32 %v2168, %v2196
        %2198 = vdwg.mxu0
        %2199 = vmatpush.bf16.msra.mxu0 %v1503
        %2200 = vmatpush.bf16.msra.mxu0 %v1499
        %2201 = vmatpush.bf16.msra.mxu0 %v1495
        %2202 = vmatpush.bf16.msra.mxu0 %v1491
        %2203 = vmatpush.bf16.msra.mxu0 %v1487
        %2204 = vmatpush.bf16.msra.mxu0 %v1483
        %2205 = vmatpush.bf16.msra.mxu0 %v1479
        %2206 = vmatpush.bf16.msra.mxu0 %v1475
        %2207 = vmatmul.bf16.gmra.mxu0 %v609
        %v2208 = vpop.f32.mrf.mxu0
        %v2209 = vadd.f32 %v2180, %v2208
        %v2210 = vpop.f32.mrf.mxu0
        %v2211 = vadd.f32 %v2182, %v2210
        %2212 = vmatmul.bf16.gmra.mxu0 %v615
        %v2213 = vpop.f32.mrf.mxu0
        %v2214 = vadd.f32 %v2185, %v2213
        %v2215 = vpop.f32.mrf.mxu0
        %v2216 = vadd.f32 %v2187, %v2215
        %2217 = vmatmul.bf16.gmra.mxu0 %v621
        %v2218 = vpop.f32.mrf.mxu0
        %v2219 = vadd.f32 %v2190, %v2218
        %v2220 = vpop.f32.mrf.mxu0
        %v2221 = vadd.f32 %v2192, %v2220
        %2222 = vmatmul.bf16.gmra.mxu0 %v627
        %v2223 = vpop.f32.mrf.mxu0
        %v2224 = vadd.f32 %v2195, %v2223
        %v2225 = vpop.f32.mrf.mxu0
        %v2226 = vadd.f32 %v2197, %v2225
        %2227 = vdwg.mxu0
        %2228 = vmatpush.bf16.msra.mxu0 %v1535
        %2229 = vmatpush.bf16.msra.mxu0 %v1531
        %2230 = vmatpush.bf16.msra.mxu0 %v1527
        %2231 = vmatpush.bf16.msra.mxu0 %v1523
        %2232 = vmatpush.bf16.msra.mxu0 %v1519
        %2233 = vmatpush.bf16.msra.mxu0 %v1515
        %2234 = vmatpush.bf16.msra.mxu0 %v1511
        %2235 = vmatpush.bf16.msra.mxu0 %v1507
        %2236 = vmatmul.bf16.gmra.mxu0 %v610
        %v2237 = vpop.f32.mrf.mxu0
        %v2238 = vadd.f32 %v2209, %v2237
        %v2239 = vpop.f32.mrf.mxu0
        %v2240 = vadd.f32 %v2211, %v2239
        %2241 = vmatmul.bf16.gmra.mxu0 %v616
        %v2242 = vpop.f32.mrf.mxu0
        %v2243 = vadd.f32 %v2214, %v2242
        %v2244 = vpop.f32.mrf.mxu0
        %v2245 = vadd.f32 %v2216, %v2244
        %2246 = vmatmul.bf16.gmra.mxu0 %v622
        %v2247 = vpop.f32.mrf.mxu0
        %v2248 = vadd.f32 %v2219, %v2247
        %v2249 = vpop.f32.mrf.mxu0
        %v2250 = vadd.f32 %v2221, %v2249
        %2251 = vmatmul.bf16.gmra.mxu0 %v628
        %v2252 = vpop.f32.mrf.mxu0
        %v2253 = vadd.f32 %v2224, %v2252
        %v2254 = vpop.f32.mrf.mxu0
        %v2255 = vadd.f32 %v2226, %v2254
        %2256 = vdwg.mxu0
        %2257 = vmatpush.bf16.msra.mxu0 %v1567
        %2258 = vmatpush.bf16.msra.mxu0 %v1563
        %2259 = vmatpush.bf16.msra.mxu0 %v1559
        %2260 = vmatpush.bf16.msra.mxu0 %v1555
        %2261 = vmatpush.bf16.msra.mxu0 %v1551
        %2262 = vmatpush.bf16.msra.mxu0 %v1547
        %2263 = vmatpush.bf16.msra.mxu0 %v1543
        %2264 = vmatpush.bf16.msra.mxu0 %v1539
        %2265 = vmatmul.bf16.gmra.mxu0 %v611
        %v2266 = vpop.f32.mrf.mxu0
        %v2267 = vadd.f32 %v2238, %v2266
        %v2268 = vpop.f32.mrf.mxu0
        %v2269 = vadd.f32 %v2240, %v2268
        %2270 = vmatmul.bf16.gmra.mxu0 %v617
        %v2271 = vpop.f32.mrf.mxu0
        %v2272 = vadd.f32 %v2243, %v2271
        %v2273 = vpop.f32.mrf.mxu0
        %v2274 = vadd.f32 %v2245, %v2273
        %2275 = vmatmul.bf16.gmra.mxu0 %v623
        %v2276 = vpop.f32.mrf.mxu0
        %v2277 = vadd.f32 %v2248, %v2276
        %v2278 = vpop.f32.mrf.mxu0
        %v2279 = vadd.f32 %v2250, %v2278
        %2280 = vmatmul.bf16.gmra.mxu0 %v629
        %v2281 = vpop.f32.mrf.mxu0
        %v2282 = vadd.f32 %v2253, %v2281
        %v2283 = vpop.f32.mrf.mxu0
        %v2284 = vadd.f32 %v2255, %v2283
        %2285 = vdwg.mxu0
        %2286 = vmatpush.bf16.msra.mxu0 %v1599
        %2287 = vmatpush.bf16.msra.mxu0 %v1595
        %2288 = vmatpush.bf16.msra.mxu0 %v1591
        %2289 = vmatpush.bf16.msra.mxu0 %v1587
        %2290 = vmatpush.bf16.msra.mxu0 %v1583
        %2291 = vmatpush.bf16.msra.mxu0 %v1579
        %2292 = vmatpush.bf16.msra.mxu0 %v1575
        %2293 = vmatpush.bf16.msra.mxu0 %v1571
        %2294 = vmatmul.bf16.gmra.mxu0 %v612
        %v2295 = vpop.f32.mrf.mxu0
        %v2296 = vadd.f32 %v2267, %v2295
        %v2297 = vpop.f32.mrf.mxu0
        %v2298 = vadd.f32 %v2269, %v2297
        %2299 = vmatmul.bf16.gmra.mxu0 %v618
        %v2300 = vpop.f32.mrf.mxu0
        %v2301 = vadd.f32 %v2272, %v2300
        %v2302 = vpop.f32.mrf.mxu0
        %v2303 = vadd.f32 %v2274, %v2302
        %2304 = vmatmul.bf16.gmra.mxu0 %v624
        %v2305 = vpop.f32.mrf.mxu0
        %v2306 = vadd.f32 %v2277, %v2305
        %v2307 = vpop.f32.mrf.mxu0
        %v2308 = vadd.f32 %v2279, %v2307
        %2309 = vmatmul.bf16.gmra.mxu0 %v630
        %v2310 = vpop.f32.mrf.mxu0
        %v2311 = vadd.f32 %v2282, %v2310
        %v2312 = vpop.f32.mrf.mxu0
        %v2313 = vadd.f32 %v2284, %v2312
        %2314 = vdwg.mxu0
        %2315 = vmatpush.bf16.msra.mxu0 %v1440
        %2316 = vmatpush.bf16.msra.mxu0 %v1436
        %2317 = vmatpush.bf16.msra.mxu0 %v1432
        %2318 = vmatpush.bf16.msra.mxu0 %v1428
        %2319 = vmatpush.bf16.msra.mxu0 %v1424
        %2320 = vmatpush.bf16.msra.mxu0 %v1420
        %2321 = vmatpush.bf16.msra.mxu0 %v1416
        %2322 = vmatpush.bf16.msra.mxu0 %v1412
        %2323 = vmatmul.bf16.gmra.mxu0 %v607
        %v2324 = vpop.f32.mrf.mxu0
        %v2325 = vadd.f32 %v828, %v2324
        %v2326 = vpop.f32.mrf.mxu0
        %v2327 = vadd.f32 %v828, %v2326
        %2328 = vmatmul.bf16.gmra.mxu0 %v613
        %v2329 = vpop.f32.mrf.mxu0
        %v2330 = vadd.f32 %v828, %v2329
        %v2331 = vpop.f32.mrf.mxu0
        %v2332 = vadd.f32 %v828, %v2331
        %2333 = vmatmul.bf16.gmra.mxu0 %v619
        %v2334 = vpop.f32.mrf.mxu0
        %v2335 = vadd.f32 %v828, %v2334
        %v2336 = vpop.f32.mrf.mxu0
        %v2337 = vadd.f32 %v828, %v2336
        %2338 = vmatmul.bf16.gmra.mxu0 %v625
        %v2339 = vpop.f32.mrf.mxu0
        %v2340 = vadd.f32 %v828, %v2339
        %v2341 = vpop.f32.mrf.mxu0
        %v2342 = vadd.f32 %v828, %v2341
        %2343 = vdwg.mxu0
        %2344 = vmatpush.bf16.msra.mxu0 %v1472
        %2345 = vmatpush.bf16.msra.mxu0 %v1468
        %2346 = vmatpush.bf16.msra.mxu0 %v1464
        %2347 = vmatpush.bf16.msra.mxu0 %v1460
        %2348 = vmatpush.bf16.msra.mxu0 %v1456
        %2349 = vmatpush.bf16.msra.mxu0 %v1452
        %2350 = vmatpush.bf16.msra.mxu0 %v1448
        %2351 = vmatpush.bf16.msra.mxu0 %v1444
        %2352 = vmatmul.bf16.gmra.mxu0 %v608
        %v2353 = vpop.f32.mrf.mxu0
        %v2354 = vadd.f32 %v2325, %v2353
        %v2355 = vpop.f32.mrf.mxu0
        %v2356 = vadd.f32 %v2327, %v2355
        %2357 = vmatmul.bf16.gmra.mxu0 %v614
        %v2358 = vpop.f32.mrf.mxu0
        %v2359 = vadd.f32 %v2330, %v2358
        %v2360 = vpop.f32.mrf.mxu0
        %v2361 = vadd.f32 %v2332, %v2360
        %2362 = vmatmul.bf16.gmra.mxu0 %v620
        %v2363 = vpop.f32.mrf.mxu0
        %v2364 = vadd.f32 %v2335, %v2363
        %v2365 = vpop.f32.mrf.mxu0
        %v2366 = vadd.f32 %v2337, %v2365
        %2367 = vmatmul.bf16.gmra.mxu0 %v626
        %v2368 = vpop.f32.mrf.mxu0
        %v2369 = vadd.f32 %v2340, %v2368
        %v2370 = vpop.f32.mrf.mxu0
        %v2371 = vadd.f32 %v2342, %v2370
        %2372 = vdwg.mxu0
        %2373 = vmatpush.bf16.msra.mxu0 %v1504
        %2374 = vmatpush.bf16.msra.mxu0 %v1500
        %2375 = vmatpush.bf16.msra.mxu0 %v1496
        %2376 = vmatpush.bf16.msra.mxu0 %v1492
        %2377 = vmatpush.bf16.msra.mxu0 %v1488
        %2378 = vmatpush.bf16.msra.mxu0 %v1484
        %2379 = vmatpush.bf16.msra.mxu0 %v1480
        %2380 = vmatpush.bf16.msra.mxu0 %v1476
        %2381 = vmatmul.bf16.gmra.mxu0 %v609
        %v2382 = vpop.f32.mrf.mxu0
        %v2383 = vadd.f32 %v2354, %v2382
        %v2384 = vpop.f32.mrf.mxu0
        %v2385 = vadd.f32 %v2356, %v2384
        %2386 = vmatmul.bf16.gmra.mxu0 %v615
        %v2387 = vpop.f32.mrf.mxu0
        %v2388 = vadd.f32 %v2359, %v2387
        %v2389 = vpop.f32.mrf.mxu0
        %v2390 = vadd.f32 %v2361, %v2389
        %2391 = vmatmul.bf16.gmra.mxu0 %v621
        %v2392 = vpop.f32.mrf.mxu0
        %v2393 = vadd.f32 %v2364, %v2392
        %v2394 = vpop.f32.mrf.mxu0
        %v2395 = vadd.f32 %v2366, %v2394
        %2396 = vmatmul.bf16.gmra.mxu0 %v627
        %v2397 = vpop.f32.mrf.mxu0
        %v2398 = vadd.f32 %v2369, %v2397
        %v2399 = vpop.f32.mrf.mxu0
        %v2400 = vadd.f32 %v2371, %v2399
        %2401 = vdwg.mxu0
        %2402 = vmatpush.bf16.msra.mxu0 %v1536
        %2403 = vmatpush.bf16.msra.mxu0 %v1532
        %2404 = vmatpush.bf16.msra.mxu0 %v1528
        %2405 = vmatpush.bf16.msra.mxu0 %v1524
        %2406 = vmatpush.bf16.msra.mxu0 %v1520
        %2407 = vmatpush.bf16.msra.mxu0 %v1516
        %2408 = vmatpush.bf16.msra.mxu0 %v1512
        %2409 = vmatpush.bf16.msra.mxu0 %v1508
        %2410 = vmatmul.bf16.gmra.mxu0 %v610
        %v2411 = vpop.f32.mrf.mxu0
        %v2412 = vadd.f32 %v2383, %v2411
        %v2413 = vpop.f32.mrf.mxu0
        %v2414 = vadd.f32 %v2385, %v2413
        %2415 = vmatmul.bf16.gmra.mxu0 %v616
        %v2416 = vpop.f32.mrf.mxu0
        %v2417 = vadd.f32 %v2388, %v2416
        %v2418 = vpop.f32.mrf.mxu0
        %v2419 = vadd.f32 %v2390, %v2418
        %2420 = vmatmul.bf16.gmra.mxu0 %v622
        %v2421 = vpop.f32.mrf.mxu0
        %v2422 = vadd.f32 %v2393, %v2421
        %v2423 = vpop.f32.mrf.mxu0
        %v2424 = vadd.f32 %v2395, %v2423
        %2425 = vmatmul.bf16.gmra.mxu0 %v628
        %v2426 = vpop.f32.mrf.mxu0
        %v2427 = vadd.f32 %v2398, %v2426
        %v2428 = vpop.f32.mrf.mxu0
        %v2429 = vadd.f32 %v2400, %v2428
        %2430 = vdwg.mxu0
        %2431 = vmatpush.bf16.msra.mxu0 %v1568
        %2432 = vmatpush.bf16.msra.mxu0 %v1564
        %2433 = vmatpush.bf16.msra.mxu0 %v1560
        %2434 = vmatpush.bf16.msra.mxu0 %v1556
        %2435 = vmatpush.bf16.msra.mxu0 %v1552
        %2436 = vmatpush.bf16.msra.mxu0 %v1548
        %2437 = vmatpush.bf16.msra.mxu0 %v1544
        %2438 = vmatpush.bf16.msra.mxu0 %v1540
        %2439 = vmatmul.bf16.gmra.mxu0 %v611
        %v2440 = vpop.f32.mrf.mxu0
        %v2441 = vadd.f32 %v2412, %v2440
        %v2442 = vpop.f32.mrf.mxu0
        %v2443 = vadd.f32 %v2414, %v2442
        %2444 = vmatmul.bf16.gmra.mxu0 %v617
        %v2445 = vpop.f32.mrf.mxu0
        %v2446 = vadd.f32 %v2417, %v2445
        %v2447 = vpop.f32.mrf.mxu0
        %v2448 = vadd.f32 %v2419, %v2447
        %2449 = vmatmul.bf16.gmra.mxu0 %v623
        %v2450 = vpop.f32.mrf.mxu0
        %v2451 = vadd.f32 %v2422, %v2450
        %v2452 = vpop.f32.mrf.mxu0
        %v2453 = vadd.f32 %v2424, %v2452
        %2454 = vmatmul.bf16.gmra.mxu0 %v629
        %v2455 = vpop.f32.mrf.mxu0
        %v2456 = vadd.f32 %v2427, %v2455
        %v2457 = vpop.f32.mrf.mxu0
        %v2458 = vadd.f32 %v2429, %v2457
        %2459 = vdwg.mxu0
        %2460 = vmatpush.bf16.msra.mxu0 %v1600
        %2461 = vmatpush.bf16.msra.mxu0 %v1596
        %2462 = vmatpush.bf16.msra.mxu0 %v1592
        %2463 = vmatpush.bf16.msra.mxu0 %v1588
        %2464 = vmatpush.bf16.msra.mxu0 %v1584
        %2465 = vmatpush.bf16.msra.mxu0 %v1580
        %2466 = vmatpush.bf16.msra.mxu0 %v1576
        %2467 = vmatpush.bf16.msra.mxu0 %v1572
        %2468 = vmatmul.bf16.gmra.mxu0 %v612
        %v2469 = vpop.f32.mrf.mxu0
        %v2470 = vadd.f32 %v2441, %v2469
        %v2471 = vpop.f32.mrf.mxu0
        %v2472 = vadd.f32 %v2443, %v2471
        %2473 = vmatmul.bf16.gmra.mxu0 %v618
        %v2474 = vpop.f32.mrf.mxu0
        %v2475 = vadd.f32 %v2446, %v2474
        %v2476 = vpop.f32.mrf.mxu0
        %v2477 = vadd.f32 %v2448, %v2476
        %2478 = vmatmul.bf16.gmra.mxu0 %v624
        %v2479 = vpop.f32.mrf.mxu0
        %v2480 = vadd.f32 %v2451, %v2479
        %v2481 = vpop.f32.mrf.mxu0
        %v2482 = vadd.f32 %v2453, %v2481
        %2483 = vmatmul.bf16.gmra.mxu0 %v630
        %v2484 = vpop.f32.mrf.mxu0
        %v2485 = vadd.f32 %v2456, %v2484
        %v2486 = vpop.f32.mrf.mxu0
        %v2487 = vadd.f32 %v2458, %v2486
        %2488 = vdwg.mxu0
        %v2489 = vmax.f32 %v1948, 0.0
        %v2490 = vmax.f32 %v2122, 0.0
        %v2491 = vmax.f32 %v2296, 0.0
        %v2492 = vmax.f32 %v2470, 0.0
        %v2493 = vmax.f32 %v1950, 0.0
        %v2494 = vmax.f32 %v2124, 0.0
        %v2495 = vmax.f32 %v2298, 0.0
        %v2496 = vmax.f32 %v2472, 0.0
        %v2497 = vmax.f32 %v1953, 0.0
        %v2498 = vmax.f32 %v2127, 0.0
        %v2499 = vmax.f32 %v2301, 0.0
        %v2500 = vmax.f32 %v2475, 0.0
        %v2501 = vmax.f32 %v1955, 0.0
        %v2502 = vmax.f32 %v2129, 0.0
        %v2503 = vmax.f32 %v2303, 0.0
        %v2504 = vmax.f32 %v2477, 0.0
        %v2505 = vmax.f32 %v1958, 0.0
        %v2506 = vmax.f32 %v2132, 0.0
        %v2507 = vmax.f32 %v2306, 0.0
        %v2508 = vmax.f32 %v2480, 0.0
        %v2509 = vmax.f32 %v1960, 0.0
        %v2510 = vmax.f32 %v2134, 0.0
        %v2511 = vmax.f32 %v2308, 0.0
        %v2512 = vmax.f32 %v2482, 0.0
        %v2513 = vmax.f32 %v1963, 0.0
        %v2514 = vmax.f32 %v2137, 0.0
        %v2515 = vmax.f32 %v2311, 0.0
        %v2516 = vmax.f32 %v2485, 0.0
        %v2517 = vmax.f32 %v1965, 0.0
        %v2518 = vmax.f32 %v2139, 0.0
        %v2519 = vmax.f32 %v2313, 0.0
        %v2520 = vmax.f32 %v2487, 0.0
        %v2521 = vpack.c.bf16 %v2493, %v2489
        %v2522 = vpack.c.bf16 %v2494, %v2490
        %v2523 = vpack.c.bf16 %v2495, %v2491
        %v2524 = vpack.c.bf16 %v2496, %v2492
        %v2525 = vpack.c.bf16 %v2501, %v2497
        %v2526 = vpack.c.bf16 %v2502, %v2498
        %v2527 = vpack.c.bf16 %v2503, %v2499
        %v2528 = vpack.c.bf16 %v2504, %v2500
        %v2529 = vpack.c.bf16 %v2509, %v2505
        %v2530 = vpack.c.bf16 %v2510, %v2506
        %v2531 = vpack.c.bf16 %v2511, %v2507
        %v2532 = vpack.c.bf16 %v2512, %v2508
        %v2533 = vpack.c.bf16 %v2517, %v2513
        %v2534 = vpack.c.bf16 %v2518, %v2514
        %v2535 = vpack.c.bf16 %v2519, %v2515
        %v2536 = vpack.c.bf16 %v2520, %v2516
        %v2537 = vld [vmem:[#allocation8] sm:$0xff]
        %v2538 = vld [vmem:[#allocation8 + $0x8] sm:$0xff]
        %v2539 = vld [vmem:[#allocation8 + $0x10] sm:$0xff]
        %v2540 = vld [vmem:[#allocation8 + $0x18] sm:$0xff]
        %v2541 = vld [vmem:[#allocation8 + $0x20] sm:$0xff]
        %v2542 = vld [vmem:[#allocation8 + $0x28] sm:$0xff]
        %v2543 = vld [vmem:[#allocation8 + $0x30] sm:$0xff]
        %v2544 = vld [vmem:[#allocation8 + $0x38] sm:$0xff]
        %v2545 = vld [vmem:[#allocation8 + $0x40] sm:$0xff]
        %v2546 = vld [vmem:[#allocation8 + $0x48] sm:$0xff]
        %v2547 = vld [vmem:[#allocation8 + $0x50] sm:$0xff]
        %v2548 = vld [vmem:[#allocation8 + $0x58] sm:$0xff]
        %v2549 = vld [vmem:[#allocation8 + $0x60] sm:$0xff]
        %v2550 = vld [vmem:[#allocation8 + $0x68] sm:$0xff]
        %v2551 = vld [vmem:[#allocation8 + $0x70] sm:$0xff]
        %v2552 = vld [vmem:[#allocation8 + $0x78] sm:$0xff]
        %v2553 = vld [vmem:[#allocation8 + $0x80] sm:$0xff]
        %v2554 = vld [vmem:[#allocation8 + $0x88] sm:$0xff]
        %v2555 = vld [vmem:[#allocation8 + $0x90] sm:$0xff]
        %v2556 = vld [vmem:[#allocation8 + $0x98] sm:$0xff]
        %v2557 = vld [vmem:[#allocation8 + $0xa0] sm:$0xff]
        %v2558 = vld [vmem:[#allocation8 + $0xa8] sm:$0xff]
        %v2559 = vld [vmem:[#allocation8 + $0xb0] sm:$0xff]
        %v2560 = vld [vmem:[#allocation8 + $0xb8] sm:$0xff]
        %v2561 = vld [vmem:[#allocation8 + $0xc0] sm:$0xff]
        %v2562 = vld [vmem:[#allocation8 + $0xc8] sm:$0xff]
        %v2563 = vld [vmem:[#allocation8 + $0xd0] sm:$0xff]
        %v2564 = vld [vmem:[#allocation8 + $0xd8] sm:$0xff]
        %v2565 = vld [vmem:[#allocation8 + $0xe0] sm:$0xff]
        %v2566 = vld [vmem:[#allocation8 + $0xe8] sm:$0xff]
        %v2567 = vld [vmem:[#allocation8 + $0xf0] sm:$0xff]
        %v2568 = vld [vmem:[#allocation8 + $0xf8] sm:$0xff]
        %v2569 = vld [vmem:[#allocation8 + $0x100] sm:$0xff]
        %v2570 = vld [vmem:[#allocation8 + $0x108] sm:$0xff]
        %v2571 = vld [vmem:[#allocation8 + $0x110] sm:$0xff]
        %v2572 = vld [vmem:[#allocation8 + $0x118] sm:$0xff]
        %v2573 = vld [vmem:[#allocation8 + $0x120] sm:$0xff]
        %v2574 = vld [vmem:[#allocation8 + $0x128] sm:$0xff]
        %v2575 = vld [vmem:[#allocation8 + $0x130] sm:$0xff]
        %v2576 = vld [vmem:[#allocation8 + $0x138] sm:$0xff]
        %v2577 = vld [vmem:[#allocation8 + $0x140] sm:$0xff]
        %v2578 = vld [vmem:[#allocation8 + $0x148] sm:$0xff]
        %v2579 = vld [vmem:[#allocation8 + $0x150] sm:$0xff]
        %v2580 = vld [vmem:[#allocation8 + $0x158] sm:$0xff]
        %v2581 = vld [vmem:[#allocation8 + $0x160] sm:$0xff]
        %v2582 = vld [vmem:[#allocation8 + $0x168] sm:$0xff]
        %v2583 = vld [vmem:[#allocation8 + $0x170] sm:$0xff]
        %v2584 = vld [vmem:[#allocation8 + $0x178] sm:$0xff]
        %v2585 = vld [vmem:[#allocation8 + $0x180] sm:$0xff]
        %v2586 = vld [vmem:[#allocation8 + $0x188] sm:$0xff]
        %v2587 = vld [vmem:[#allocation8 + $0x190] sm:$0xff]
        %v2588 = vld [vmem:[#allocation8 + $0x198] sm:$0xff]
        %v2589 = vld [vmem:[#allocation8 + $0x1a0] sm:$0xff]
        %v2590 = vld [vmem:[#allocation8 + $0x1a8] sm:$0xff]
        %v2591 = vld [vmem:[#allocation8 + $0x1b0] sm:$0xff]
        %v2592 = vld [vmem:[#allocation8 + $0x1b8] sm:$0xff]
        %v2593 = vld [vmem:[#allocation8 + $0x1c0] sm:$0xff]
        %v2594 = vld [vmem:[#allocation8 + $0x1c8] sm:$0xff]
        %v2595 = vld [vmem:[#allocation8 + $0x1d0] sm:$0xff]
        %v2596 = vld [vmem:[#allocation8 + $0x1d8] sm:$0xff]
        %v2597 = vld [vmem:[#allocation8 + $0x1e0] sm:$0xff]
        %v2598 = vld [vmem:[#allocation8 + $0x1e8] sm:$0xff]
        %v2599 = vld [vmem:[#allocation8 + $0x1f0] sm:$0xff]
        %v2600 = vld [vmem:[#allocation8 + $0x1f8] sm:$0xff]
        %v2601 = vld [vmem:[%s4] sm:$0x3]
        %v2603 = vperm.slane %v2601, 0
        %v2604 = vperm.slane %v2601, 1
        %v2671 = vunpack.c.l.b16 %v2537
        %v2672 = vunpack.c.h.b16 %v2537
        %v2673 = vunpack.c.l.b16 %v2538
        %v2674 = vunpack.c.h.b16 %v2538
        %v2675 = vunpack.c.l.b16 %v2539
        %v2676 = vunpack.c.h.b16 %v2539
        %v2677 = vunpack.c.l.b16 %v2540
        %v2678 = vunpack.c.h.b16 %v2540
        %v2679 = vunpack.c.l.b16 %v2541
        %v2680 = vunpack.c.h.b16 %v2541
        %v2681 = vunpack.c.l.b16 %v2542
        %v2682 = vunpack.c.h.b16 %v2542
        %v2683 = vunpack.c.l.b16 %v2543
        %v2684 = vunpack.c.h.b16 %v2543
        %v2685 = vunpack.c.l.b16 %v2544
        %v2686 = vunpack.c.h.b16 %v2544
        %v2687 = vunpack.c.l.b16 %v2545
        %v2688 = vunpack.c.h.b16 %v2545
        %v2689 = vunpack.c.l.b16 %v2546
        %v2690 = vunpack.c.h.b16 %v2546
        %v2691 = vunpack.c.l.b16 %v2547
        %v2692 = vunpack.c.h.b16 %v2547
        %v2693 = vunpack.c.l.b16 %v2548
        %v2694 = vunpack.c.h.b16 %v2548
        %v2695 = vunpack.c.l.b16 %v2549
        %v2696 = vunpack.c.h.b16 %v2549
        %v2697 = vunpack.c.l.b16 %v2550
        %v2698 = vunpack.c.h.b16 %v2550
        %v2699 = vunpack.c.l.b16 %v2551
        %v2700 = vunpack.c.h.b16 %v2551
        %v2701 = vunpack.c.l.b16 %v2552
        %v2702 = vunpack.c.h.b16 %v2552
        %v2703 = vunpack.c.l.b16 %v2553
        %v2704 = vunpack.c.h.b16 %v2553
        %v2705 = vunpack.c.l.b16 %v2554
        %v2706 = vunpack.c.h.b16 %v2554
        %v2707 = vunpack.c.l.b16 %v2555
        %v2708 = vunpack.c.h.b16 %v2555
        %v2709 = vunpack.c.l.b16 %v2556
        %v2710 = vunpack.c.h.b16 %v2556
        %v2711 = vunpack.c.l.b16 %v2557
        %v2712 = vunpack.c.h.b16 %v2557
        %v2713 = vunpack.c.l.b16 %v2558
        %v2714 = vunpack.c.h.b16 %v2558
        %v2715 = vunpack.c.l.b16 %v2559
        %v2716 = vunpack.c.h.b16 %v2559
        %v2717 = vunpack.c.l.b16 %v2560
        %v2718 = vunpack.c.h.b16 %v2560
        %v2719 = vunpack.c.l.b16 %v2561
        %v2720 = vunpack.c.h.b16 %v2561
        %v2721 = vunpack.c.l.b16 %v2562
        %v2722 = vunpack.c.h.b16 %v2562
        %v2723 = vunpack.c.l.b16 %v2563
        %v2724 = vunpack.c.h.b16 %v2563
        %v2725 = vunpack.c.l.b16 %v2564
        %v2726 = vunpack.c.h.b16 %v2564
        %v2727 = vunpack.c.l.b16 %v2565
        %v2728 = vunpack.c.h.b16 %v2565
        %v2729 = vunpack.c.l.b16 %v2566
        %v2730 = vunpack.c.h.b16 %v2566
        %v2731 = vunpack.c.l.b16 %v2567
        %v2732 = vunpack.c.h.b16 %v2567
        %v2733 = vunpack.c.l.b16 %v2568
        %v2734 = vunpack.c.h.b16 %v2568
        %v2735 = vunpack.c.l.b16 %v2569
        %v2736 = vunpack.c.h.b16 %v2569
        %v2737 = vunpack.c.l.b16 %v2570
        %v2738 = vunpack.c.h.b16 %v2570
        %v2739 = vunpack.c.l.b16 %v2571
        %v2740 = vunpack.c.h.b16 %v2571
        %v2741 = vunpack.c.l.b16 %v2572
        %v2742 = vunpack.c.h.b16 %v2572
        %v2743 = vunpack.c.l.b16 %v2573
        %v2744 = vunpack.c.h.b16 %v2573
        %v2745 = vunpack.c.l.b16 %v2574
        %v2746 = vunpack.c.h.b16 %v2574
        %v2747 = vunpack.c.l.b16 %v2575
        %v2748 = vunpack.c.h.b16 %v2575
        %v2749 = vunpack.c.l.b16 %v2576
        %v2750 = vunpack.c.h.b16 %v2576
        %v2751 = vunpack.c.l.b16 %v2577
        %v2752 = vunpack.c.h.b16 %v2577
        %v2753 = vunpack.c.l.b16 %v2578
        %v2754 = vunpack.c.h.b16 %v2578
        %v2755 = vunpack.c.l.b16 %v2579
        %v2756 = vunpack.c.h.b16 %v2579
        %v2757 = vunpack.c.l.b16 %v2580
        %v2758 = vunpack.c.h.b16 %v2580
        %v2759 = vunpack.c.l.b16 %v2581
        %v2760 = vunpack.c.h.b16 %v2581
        %v2761 = vunpack.c.l.b16 %v2582
        %v2762 = vunpack.c.h.b16 %v2582
        %v2763 = vunpack.c.l.b16 %v2583
        %v2764 = vunpack.c.h.b16 %v2583
        %v2765 = vunpack.c.l.b16 %v2584
        %v2766 = vunpack.c.h.b16 %v2584
        %v2767 = vunpack.c.l.b16 %v2585
        %v2768 = vunpack.c.h.b16 %v2585
        %v2769 = vunpack.c.l.b16 %v2586
        %v2770 = vunpack.c.h.b16 %v2586
        %v2771 = vunpack.c.l.b16 %v2587
        %v2772 = vunpack.c.h.b16 %v2587
        %v2773 = vunpack.c.l.b16 %v2588
        %v2774 = vunpack.c.h.b16 %v2588
        %v2775 = vunpack.c.l.b16 %v2589
        %v2776 = vunpack.c.h.b16 %v2589
        %v2777 = vunpack.c.l.b16 %v2590
        %v2778 = vunpack.c.h.b16 %v2590
        %v2779 = vunpack.c.l.b16 %v2591
        %v2780 = vunpack.c.h.b16 %v2591
        %v2781 = vunpack.c.l.b16 %v2592
        %v2782 = vunpack.c.h.b16 %v2592
        %v2783 = vunpack.c.l.b16 %v2593
        %v2784 = vunpack.c.h.b16 %v2593
        %v2785 = vunpack.c.l.b16 %v2594
        %v2786 = vunpack.c.h.b16 %v2594
        %v2787 = vunpack.c.l.b16 %v2595
        %v2788 = vunpack.c.h.b16 %v2595
        %v2789 = vunpack.c.l.b16 %v2596
        %v2790 = vunpack.c.h.b16 %v2596
        %v2791 = vunpack.c.l.b16 %v2597
        %v2792 = vunpack.c.h.b16 %v2597
        %v2793 = vunpack.c.l.b16 %v2598
        %v2794 = vunpack.c.h.b16 %v2598
        %v2795 = vunpack.c.l.b16 %v2599
        %v2796 = vunpack.c.h.b16 %v2599
        %v2797 = vunpack.c.l.b16 %v2600
        %v2798 = vunpack.c.h.b16 %v2600
        %v2799 = vpack.c.b16 %v2673, %v2671
        %v2800 = vpack.c.b16 %v2674, %v2672
        %v2801 = vpack.c.b16 %v2677, %v2675
        %v2802 = vpack.c.b16 %v2678, %v2676
        %v2803 = vpack.c.b16 %v2681, %v2679
        %v2804 = vpack.c.b16 %v2682, %v2680
        %v2805 = vpack.c.b16 %v2685, %v2683
        %v2806 = vpack.c.b16 %v2686, %v2684
        %v2807 = vpack.c.b16 %v2689, %v2687
        %v2808 = vpack.c.b16 %v2690, %v2688
        %v2809 = vpack.c.b16 %v2693, %v2691
        %v2810 = vpack.c.b16 %v2694, %v2692
        %v2811 = vpack.c.b16 %v2697, %v2695
        %v2812 = vpack.c.b16 %v2698, %v2696
        %v2813 = vpack.c.b16 %v2701, %v2699
        %v2814 = vpack.c.b16 %v2702, %v2700
        %v2815 = vpack.c.b16 %v2705, %v2703
        %v2816 = vpack.c.b16 %v2706, %v2704
        %v2817 = vpack.c.b16 %v2709, %v2707
        %v2818 = vpack.c.b16 %v2710, %v2708
        %v2819 = vpack.c.b16 %v2713, %v2711
        %v2820 = vpack.c.b16 %v2714, %v2712
        %v2821 = vpack.c.b16 %v2717, %v2715
        %v2822 = vpack.c.b16 %v2718, %v2716
        %v2823 = vpack.c.b16 %v2721, %v2719
        %v2824 = vpack.c.b16 %v2722, %v2720
        %v2825 = vpack.c.b16 %v2725, %v2723
        %v2826 = vpack.c.b16 %v2726, %v2724
        %v2827 = vpack.c.b16 %v2729, %v2727
        %v2828 = vpack.c.b16 %v2730, %v2728
        %v2829 = vpack.c.b16 %v2733, %v2731
        %v2830 = vpack.c.b16 %v2734, %v2732
        %v2831 = vpack.c.b16 %v2737, %v2735
        %v2832 = vpack.c.b16 %v2738, %v2736
        %v2833 = vpack.c.b16 %v2741, %v2739
        %v2834 = vpack.c.b16 %v2742, %v2740
        %v2835 = vpack.c.b16 %v2745, %v2743
        %v2836 = vpack.c.b16 %v2746, %v2744
        %v2837 = vpack.c.b16 %v2749, %v2747
        %v2838 = vpack.c.b16 %v2750, %v2748
        %v2839 = vpack.c.b16 %v2753, %v2751
        %v2840 = vpack.c.b16 %v2754, %v2752
        %v2841 = vpack.c.b16 %v2757, %v2755
        %v2842 = vpack.c.b16 %v2758, %v2756
        %v2843 = vpack.c.b16 %v2761, %v2759
        %v2844 = vpack.c.b16 %v2762, %v2760
        %v2845 = vpack.c.b16 %v2765, %v2763
        %v2846 = vpack.c.b16 %v2766, %v2764
        %v2847 = vpack.c.b16 %v2769, %v2767
        %v2848 = vpack.c.b16 %v2770, %v2768
        %v2849 = vpack.c.b16 %v2773, %v2771
        %v2850 = vpack.c.b16 %v2774, %v2772
        %v2851 = vpack.c.b16 %v2777, %v2775
        %v2852 = vpack.c.b16 %v2778, %v2776
        %v2853 = vpack.c.b16 %v2781, %v2779
        %v2854 = vpack.c.b16 %v2782, %v2780
        %v2855 = vpack.c.b16 %v2785, %v2783
        %v2856 = vpack.c.b16 %v2786, %v2784
        %v2857 = vpack.c.b16 %v2789, %v2787
        %v2858 = vpack.c.b16 %v2790, %v2788
        %v2859 = vpack.c.b16 %v2793, %v2791
        %v2860 = vpack.c.b16 %v2794, %v2792
        %v2861 = vpack.c.b16 %v2797, %v2795
        %v2862 = vpack.c.b16 %v2798, %v2796
        %2927 = vmatpush.bf16.msra.mxu0 %v2813
        %2928 = vmatpush.bf16.msra.mxu0 %v2811
        %2929 = vmatpush.bf16.msra.mxu0 %v2809
        %2930 = vmatpush.bf16.msra.mxu0 %v2807
        %2931 = vmatpush.bf16.msra.mxu0 %v2805
        %2932 = vmatpush.bf16.msra.mxu0 %v2803
        %2933 = vmatpush.bf16.msra.mxu0 %v2801
        %2934 = vmatpush.bf16.msra.mxu0 %v2799
        %2935 = vmatmul.bf16.gmra.mxu0 %v2521
        %v2936 = vpop.f32.mrf.mxu0
        %v2937 = vadd.f32 %v2603, %v2936
        %v2938 = vpop.f32.mrf.mxu0
        %v2939 = vadd.f32 %v2603, %v2938
        %2940 = vmatmul.bf16.gmra.mxu0 %v2525
        %v2941 = vpop.f32.mrf.mxu0
        %v2942 = vadd.f32 %v2603, %v2941
        %v2943 = vpop.f32.mrf.mxu0
        %v2944 = vadd.f32 %v2603, %v2943
        %2945 = vmatmul.bf16.gmra.mxu0 %v2529
        %v2946 = vpop.f32.mrf.mxu0
        %v2947 = vadd.f32 %v2603, %v2946
        %v2948 = vpop.f32.mrf.mxu0
        %v2949 = vadd.f32 %v2603, %v2948
        %2950 = vmatmul.bf16.gmra.mxu0 %v2533
        %v2951 = vpop.f32.mrf.mxu0
        %v2952 = vadd.f32 %v2603, %v2951
        %v2953 = vpop.f32.mrf.mxu0
        %v2954 = vadd.f32 %v2603, %v2953
        %2955 = vdwg.mxu0
        %2956 = vmatpush.bf16.msra.mxu0 %v2829
        %2957 = vmatpush.bf16.msra.mxu0 %v2827
        %2958 = vmatpush.bf16.msra.mxu0 %v2825
        %2959 = vmatpush.bf16.msra.mxu0 %v2823
        %2960 = vmatpush.bf16.msra.mxu0 %v2821
        %2961 = vmatpush.bf16.msra.mxu0 %v2819
        %2962 = vmatpush.bf16.msra.mxu0 %v2817
        %2963 = vmatpush.bf16.msra.mxu0 %v2815
        %2964 = vmatmul.bf16.gmra.mxu0 %v2522
        %v2965 = vpop.f32.mrf.mxu0
        %v2966 = vadd.f32 %v2937, %v2965
        %v2967 = vpop.f32.mrf.mxu0
        %v2968 = vadd.f32 %v2939, %v2967
        %2969 = vmatmul.bf16.gmra.mxu0 %v2526
        %v2970 = vpop.f32.mrf.mxu0
        %v2971 = vadd.f32 %v2942, %v2970
        %v2972 = vpop.f32.mrf.mxu0
        %v2973 = vadd.f32 %v2944, %v2972
        %2974 = vmatmul.bf16.gmra.mxu0 %v2530
        %v2975 = vpop.f32.mrf.mxu0
        %v2976 = vadd.f32 %v2947, %v2975
        %v2977 = vpop.f32.mrf.mxu0
        %v2978 = vadd.f32 %v2949, %v2977
        %2979 = vmatmul.bf16.gmra.mxu0 %v2534
        %v2980 = vpop.f32.mrf.mxu0
        %v2981 = vadd.f32 %v2952, %v2980
        %v2982 = vpop.f32.mrf.mxu0
        %v2983 = vadd.f32 %v2954, %v2982
        %2984 = vdwg.mxu0
        %2985 = vmatpush.bf16.msra.mxu0 %v2845
        %2986 = vmatpush.bf16.msra.mxu0 %v2843
        %2987 = vmatpush.bf16.msra.mxu0 %v2841
        %2988 = vmatpush.bf16.msra.mxu0 %v2839
        %2989 = vmatpush.bf16.msra.mxu0 %v2837
        %2990 = vmatpush.bf16.msra.mxu0 %v2835
        %2991 = vmatpush.bf16.msra.mxu0 %v2833
        %2992 = vmatpush.bf16.msra.mxu0 %v2831
        %2993 = vmatmul.bf16.gmra.mxu0 %v2523
        %v2994 = vpop.f32.mrf.mxu0
        %v2995 = vadd.f32 %v2966, %v2994
        %v2996 = vpop.f32.mrf.mxu0
        %v2997 = vadd.f32 %v2968, %v2996
        %2998 = vmatmul.bf16.gmra.mxu0 %v2527
        %v2999 = vpop.f32.mrf.mxu0
        %v3000 = vadd.f32 %v2971, %v2999
        %v3001 = vpop.f32.mrf.mxu0
        %v3002 = vadd.f32 %v2973, %v3001
        %3003 = vmatmul.bf16.gmra.mxu0 %v2531
        %v3004 = vpop.f32.mrf.mxu0
        %v3005 = vadd.f32 %v2976, %v3004
        %v3006 = vpop.f32.mrf.mxu0
        %v3007 = vadd.f32 %v2978, %v3006
        %3008 = vmatmul.bf16.gmra.mxu0 %v2535
        %v3009 = vpop.f32.mrf.mxu0
        %v3010 = vadd.f32 %v2981, %v3009
        %v3011 = vpop.f32.mrf.mxu0
        %v3012 = vadd.f32 %v2983, %v3011
        %3013 = vdwg.mxu0
        %3014 = vmatpush.bf16.msra.mxu0 %v2861
        %3015 = vmatpush.bf16.msra.mxu0 %v2859
        %3016 = vmatpush.bf16.msra.mxu0 %v2857
        %3017 = vmatpush.bf16.msra.mxu0 %v2855
        %3018 = vmatpush.bf16.msra.mxu0 %v2853
        %3019 = vmatpush.bf16.msra.mxu0 %v2851
        %3020 = vmatpush.bf16.msra.mxu0 %v2849
        %3021 = vmatpush.bf16.msra.mxu0 %v2847
        %3022 = vmatmul.bf16.gmra.mxu0 %v2524
        %v3023 = vpop.f32.mrf.mxu0
        %v3024 = vadd.f32 %v2995, %v3023
        %v3025 = vpop.f32.mrf.mxu0
        %v3026 = vadd.f32 %v2997, %v3025
        %3027 = vmatmul.bf16.gmra.mxu0 %v2528
        %v3028 = vpop.f32.mrf.mxu0
        %v3029 = vadd.f32 %v3000, %v3028
        %v3030 = vpop.f32.mrf.mxu0
        %v3031 = vadd.f32 %v3002, %v3030
        %3032 = vmatmul.bf16.gmra.mxu0 %v2532
        %v3033 = vpop.f32.mrf.mxu0
        %v3034 = vadd.f32 %v3005, %v3033
        %v3035 = vpop.f32.mrf.mxu0
        %v3036 = vadd.f32 %v3007, %v3035
        %3037 = vmatmul.bf16.gmra.mxu0 %v2536
        %v3038 = vpop.f32.mrf.mxu0
        %v3039 = vadd.f32 %v3010, %v3038
        %v3040 = vpop.f32.mrf.mxu0
        %v3041 = vadd.f32 %v3012, %v3040
        %3042 = vdwg.mxu0
        %3043 = vmatpush.bf16.msra.mxu0 %v2814
        %3044 = vmatpush.bf16.msra.mxu0 %v2812
        %3045 = vmatpush.bf16.msra.mxu0 %v2810
        %3046 = vmatpush.bf16.msra.mxu0 %v2808
        %3047 = vmatpush.bf16.msra.mxu0 %v2806
        %3048 = vmatpush.bf16.msra.mxu0 %v2804
        %3049 = vmatpush.bf16.msra.mxu0 %v2802
        %3050 = vmatpush.bf16.msra.mxu0 %v2800
        %3051 = vmatmul.bf16.gmra.mxu0 %v2521
        %v3052 = vpop.f32.mrf.mxu0
        %v3053 = vadd.f32 %v2604, %v3052
        %v3054 = vpop.f32.mrf.mxu0
        %v3055 = vadd.f32 %v2604, %v3054
        %3056 = vmatmul.bf16.gmra.mxu0 %v2525
        %v3057 = vpop.f32.mrf.mxu0
        %v3058 = vadd.f32 %v2604, %v3057
        %v3059 = vpop.f32.mrf.mxu0
        %v3060 = vadd.f32 %v2604, %v3059
        %3061 = vmatmul.bf16.gmra.mxu0 %v2529
        %v3062 = vpop.f32.mrf.mxu0
        %v3063 = vadd.f32 %v2604, %v3062
        %v3064 = vpop.f32.mrf.mxu0
        %v3065 = vadd.f32 %v2604, %v3064
        %3066 = vmatmul.bf16.gmra.mxu0 %v2533
        %v3067 = vpop.f32.mrf.mxu0
        %v3068 = vadd.f32 %v2604, %v3067
        %v3069 = vpop.f32.mrf.mxu0
        %v3070 = vadd.f32 %v2604, %v3069
        %3071 = vdwg.mxu0
        %3072 = vmatpush.bf16.msra.mxu0 %v2830
        %3073 = vmatpush.bf16.msra.mxu0 %v2828
        %3074 = vmatpush.bf16.msra.mxu0 %v2826
        %3075 = vmatpush.bf16.msra.mxu0 %v2824
        %3076 = vmatpush.bf16.msra.mxu0 %v2822
        %3077 = vmatpush.bf16.msra.mxu0 %v2820
        %3078 = vmatpush.bf16.msra.mxu0 %v2818
        %3079 = vmatpush.bf16.msra.mxu0 %v2816
        %3080 = vmatmul.bf16.gmra.mxu0 %v2522
        %v3081 = vpop.f32.mrf.mxu0
        %v3082 = vadd.f32 %v3053, %v3081
        %v3083 = vpop.f32.mrf.mxu0
        %v3084 = vadd.f32 %v3055, %v3083
        %3085 = vmatmul.bf16.gmra.mxu0 %v2526
        %v3086 = vpop.f32.mrf.mxu0
        %v3087 = vadd.f32 %v3058, %v3086
        %v3088 = vpop.f32.mrf.mxu0
        %v3089 = vadd.f32 %v3060, %v3088
        %3090 = vmatmul.bf16.gmra.mxu0 %v2530
        %v3091 = vpop.f32.mrf.mxu0
        %v3092 = vadd.f32 %v3063, %v3091
        %v3093 = vpop.f32.mrf.mxu0
        %v3094 = vadd.f32 %v3065, %v3093
        %3095 = vmatmul.bf16.gmra.mxu0 %v2534
        %v3096 = vpop.f32.mrf.mxu0
        %v3097 = vadd.f32 %v3068, %v3096
        %v3098 = vpop.f32.mrf.mxu0
        %v3099 = vadd.f32 %v3070, %v3098
        %3100 = vdwg.mxu0
        %3101 = vmatpush.bf16.msra.mxu0 %v2846
        %3102 = vmatpush.bf16.msra.mxu0 %v2844
        %3103 = vmatpush.bf16.msra.mxu0 %v2842
        %3104 = vmatpush.bf16.msra.mxu0 %v2840
        %3105 = vmatpush.bf16.msra.mxu0 %v2838
        %3106 = vmatpush.bf16.msra.mxu0 %v2836
        %3107 = vmatpush.bf16.msra.mxu0 %v2834
        %3108 = vmatpush.bf16.msra.mxu0 %v2832
        %3109 = vmatmul.bf16.gmra.mxu0 %v2523
        %v3110 = vpop.f32.mrf.mxu0
        %v3111 = vadd.f32 %v3082, %v3110
        %v3112 = vpop.f32.mrf.mxu0
        %v3113 = vadd.f32 %v3084, %v3112
        %3114 = vmatmul.bf16.gmra.mxu0 %v2527
        %v3115 = vpop.f32.mrf.mxu0
        %v3116 = vadd.f32 %v3087, %v3115
        %v3117 = vpop.f32.mrf.mxu0
        %v3118 = vadd.f32 %v3089, %v3117
        %3119 = vmatmul.bf16.gmra.mxu0 %v2531
        %v3120 = vpop.f32.mrf.mxu0
        %v3121 = vadd.f32 %v3092, %v3120
        %v3122 = vpop.f32.mrf.mxu0
        %v3123 = vadd.f32 %v3094, %v3122
        %3124 = vmatmul.bf16.gmra.mxu0 %v2535
        %v3125 = vpop.f32.mrf.mxu0
        %v3126 = vadd.f32 %v3097, %v3125
        %v3127 = vpop.f32.mrf.mxu0
        %v3128 = vadd.f32 %v3099, %v3127
        %3129 = vdwg.mxu0
        %3130 = vmatpush.bf16.msra.mxu0 %v2862
        %3131 = vmatpush.bf16.msra.mxu0 %v2860
        %3132 = vmatpush.bf16.msra.mxu0 %v2858
        %3133 = vmatpush.bf16.msra.mxu0 %v2856
        %3134 = vmatpush.bf16.msra.mxu0 %v2854
        %3135 = vmatpush.bf16.msra.mxu0 %v2852
        %3136 = vmatpush.bf16.msra.mxu0 %v2850
        %3137 = vmatpush.bf16.msra.mxu0 %v2848
        %3138 = vmatmul.bf16.gmra.mxu0 %v2524
        %v3139 = vpop.f32.mrf.mxu0
        %v3140 = vadd.f32 %v3111, %v3139
        %v3141 = vpop.f32.mrf.mxu0
        %v3142 = vadd.f32 %v3113, %v3141
        %3143 = vmatmul.bf16.gmra.mxu0 %v2528
        %v3144 = vpop.f32.mrf.mxu0
        %v3145 = vadd.f32 %v3116, %v3144
        %v3146 = vpop.f32.mrf.mxu0
        %v3147 = vadd.f32 %v3118, %v3146
        %3148 = vmatmul.bf16.gmra.mxu0 %v2532
        %v3149 = vpop.f32.mrf.mxu0
        %v3150 = vadd.f32 %v3121, %v3149
        %v3151 = vpop.f32.mrf.mxu0
        %v3152 = vadd.f32 %v3123, %v3151
        %3153 = vmatmul.bf16.gmra.mxu0 %v2536
        %v3154 = vpop.f32.mrf.mxu0
        %v3155 = vadd.f32 %v3126, %v3154
        %v3156 = vpop.f32.mrf.mxu0
        %v3157 = vadd.f32 %v3128, %v3156
        %3158 = vdwg.mxu0
        %v3159 = vmax.f32 %v3024, 0.0
        %v3160 = vmax.f32 %v3140, 0.0
        %v3161 = vmax.f32 %v3026, 0.0
        %v3162 = vmax.f32 %v3142, 0.0
        %v3163 = vmax.f32 %v3029, 0.0
        %v3164 = vmax.f32 %v3145, 0.0
        %v3165 = vmax.f32 %v3031, 0.0
        %v3166 = vmax.f32 %v3147, 0.0
        %v3167 = vmax.f32 %v3034, 0.0
        %v3168 = vmax.f32 %v3150, 0.0
        %v3169 = vmax.f32 %v3036, 0.0
        %v3170 = vmax.f32 %v3152, 0.0
        %v3171 = vmax.f32 %v3039, 0.0
        %v3172 = vmax.f32 %v3155, 0.0
        %v3173 = vmax.f32 %v3041, 0.0
        %v3174 = vmax.f32 %v3157, 0.0
        %v3175 = vpack.c.bf16 %v3161, %v3159
        %v3176 = vpack.c.bf16 %v3162, %v3160
        %v3177 = vpack.c.bf16 %v3165, %v3163
        %v3178 = vpack.c.bf16 %v3166, %v3164
        %v3179 = vpack.c.bf16 %v3169, %v3167
        %v3180 = vpack.c.bf16 %v3170, %v3168
        %v3181 = vpack.c.bf16 %v3173, %v3171
        %v3182 = vpack.c.bf16 %v3174, %v3172
        %v3183 = vld [vmem:[#allocation10] sm:$0xf]
        %v3184 = vld [vmem:[#allocation10 + $0x4] sm:$0xf]
        %v3185 = vld [vmem:[#allocation10 + $0x8] sm:$0xf]
        %v3186 = vld [vmem:[#allocation10 + $0xc] sm:$0xf]
        %v3187 = vld [vmem:[#allocation10 + $0x10] sm:$0xf]
        %v3188 = vld [vmem:[#allocation10 + $0x14] sm:$0xf]
        %v3189 = vld [vmem:[#allocation10 + $0x18] sm:$0xf]
        %v3190 = vld [vmem:[#allocation10 + $0x1c] sm:$0xf]
        %v3191 = vld [vmem:[#allocation10 + $0x20] sm:$0xf]
        %v3192 = vld [vmem:[#allocation10 + $0x24] sm:$0xf]
        %v3193 = vld [vmem:[#allocation10 + $0x28] sm:$0xf]
        %v3194 = vld [vmem:[#allocation10 + $0x2c] sm:$0xf]
        %v3195 = vld [vmem:[#allocation10 + $0x30] sm:$0xf]
        %v3196 = vld [vmem:[#allocation10 + $0x34] sm:$0xf]
        %v3197 = vld [vmem:[#allocation10 + $0x38] sm:$0xf]
        %v3198 = vld [vmem:[#allocation10 + $0x3c] sm:$0xf]
        %v3199 = vld [vmem:[#allocation10 + $0x40] sm:$0xf]
        %v3200 = vld [vmem:[#allocation10 + $0x44] sm:$0xf]
        %v3201 = vld [vmem:[#allocation10 + $0x48] sm:$0xf]
        %v3202 = vld [vmem:[#allocation10 + $0x4c] sm:$0xf]
        %v3203 = vld [vmem:[#allocation10 + $0x50] sm:$0xf]
        %v3204 = vld [vmem:[#allocation10 + $0x54] sm:$0xf]
        %v3205 = vld [vmem:[#allocation10 + $0x58] sm:$0xf]
        %v3206 = vld [vmem:[#allocation10 + $0x5c] sm:$0xf]
        %v3207 = vld [vmem:[#allocation10 + $0x60] sm:$0xf]
        %v3208 = vld [vmem:[#allocation10 + $0x64] sm:$0xf]
        %v3209 = vld [vmem:[#allocation10 + $0x68] sm:$0xf]
        %v3210 = vld [vmem:[#allocation10 + $0x6c] sm:$0xf]
        %v3211 = vld [vmem:[#allocation10 + $0x70] sm:$0xf]
        %v3212 = vld [vmem:[#allocation10 + $0x74] sm:$0xf]
        %v3213 = vld [vmem:[#allocation10 + $0x78] sm:$0xf]
        %v3214 = vld [vmem:[#allocation10 + $0x7c] sm:$0xf]
        %v3215 = vld [vmem:[%s6] sm:$0x1]
        %v3217 = vperm.slane %v3215, 0
        %v3251 = vunpack.c.l.b16 %v3183
        %v3252 = vunpack.c.l.b16 %v3184
        %v3253 = vunpack.c.l.b16 %v3185
        %v3254 = vunpack.c.l.b16 %v3186
        %v3255 = vunpack.c.l.b16 %v3187
        %v3256 = vunpack.c.l.b16 %v3188
        %v3257 = vunpack.c.l.b16 %v3189
        %v3258 = vunpack.c.l.b16 %v3190
        %v3259 = vunpack.c.l.b16 %v3191
        %v3260 = vunpack.c.l.b16 %v3192
        %v3261 = vunpack.c.l.b16 %v3193
        %v3262 = vunpack.c.l.b16 %v3194
        %v3263 = vunpack.c.l.b16 %v3195
        %v3264 = vunpack.c.l.b16 %v3196
        %v3265 = vunpack.c.l.b16 %v3197
        %v3266 = vunpack.c.l.b16 %v3198
        %v3267 = vunpack.c.l.b16 %v3199
        %v3268 = vunpack.c.l.b16 %v3200
        %v3269 = vunpack.c.l.b16 %v3201
        %v3270 = vunpack.c.l.b16 %v3202
        %v3271 = vunpack.c.l.b16 %v3203
        %v3272 = vunpack.c.l.b16 %v3204
        %v3273 = vunpack.c.l.b16 %v3205
        %v3274 = vunpack.c.l.b16 %v3206
        %v3275 = vunpack.c.l.b16 %v3207
        %v3276 = vunpack.c.l.b16 %v3208
        %v3277 = vunpack.c.l.b16 %v3209
        %v3278 = vunpack.c.l.b16 %v3210
        %v3279 = vunpack.c.l.b16 %v3211
        %v3280 = vunpack.c.l.b16 %v3212
        %v3281 = vunpack.c.l.b16 %v3213
        %v3282 = vunpack.c.l.b16 %v3214
        %v3283 = vpack.c.b16 %v3252, %v3251
        %v3284 = vpack.c.b16 %v3254, %v3253
        %v3285 = vpack.c.b16 %v3256, %v3255
        %v3286 = vpack.c.b16 %v3258, %v3257
        %v3287 = vpack.c.b16 %v3260, %v3259
        %v3288 = vpack.c.b16 %v3262, %v3261
        %v3289 = vpack.c.b16 %v3264, %v3263
        %v3290 = vpack.c.b16 %v3266, %v3265
        %v3291 = vpack.c.b16 %v3268, %v3267
        %v3292 = vpack.c.b16 %v3270, %v3269
        %v3293 = vpack.c.b16 %v3272, %v3271
        %v3294 = vpack.c.b16 %v3274, %v3273
        %v3295 = vpack.c.b16 %v3276, %v3275
        %v3296 = vpack.c.b16 %v3278, %v3277
        %v3297 = vpack.c.b16 %v3280, %v3279
        %v3298 = vpack.c.b16 %v3282, %v3281
        %3315 = vmatpush.bf16.msra.mxu0 %v3290
        %3316 = vmatpush.bf16.msra.mxu0 %v3289
        %3317 = vmatpush.bf16.msra.mxu0 %v3288
        %3318 = vmatpush.bf16.msra.mxu0 %v3287
        %3319 = vmatpush.bf16.msra.mxu0 %v3286
        %3320 = vmatpush.bf16.msra.mxu0 %v3285
        %3321 = vmatpush.bf16.msra.mxu0 %v3284
        %3322 = vmatpush.bf16.msra.mxu0 %v3283
        %3323 = vmatmul.bf16.gmra.mxu0 %v3175
        %v3324 = vpop.f32.mrf.mxu0
        %v3325 = vadd.f32 %v3217, %v3324
        %v3326 = vpop.f32.mrf.mxu0
        %v3327 = vadd.f32 %v3217, %v3326
        %3328 = vmatmul.bf16.gmra.mxu0 %v3177
        %v3329 = vpop.f32.mrf.mxu0
        %v3330 = vadd.f32 %v3217, %v3329
        %v3331 = vpop.f32.mrf.mxu0
        %v3332 = vadd.f32 %v3217, %v3331
        %3333 = vmatmul.bf16.gmra.mxu0 %v3179
        %v3334 = vpop.f32.mrf.mxu0
        %v3335 = vadd.f32 %v3217, %v3334
        %v3336 = vpop.f32.mrf.mxu0
        %v3337 = vadd.f32 %v3217, %v3336
        %3338 = vmatmul.bf16.gmra.mxu0 %v3181
        %v3339 = vpop.f32.mrf.mxu0
        %v3340 = vadd.f32 %v3217, %v3339
        %v3341 = vpop.f32.mrf.mxu0
        %v3342 = vadd.f32 %v3217, %v3341
        %3343 = vdwg.mxu0
        %3344 = vmatpush.bf16.msra.mxu0 %v3298
        %3345 = vmatpush.bf16.msra.mxu0 %v3297
        %3346 = vmatpush.bf16.msra.mxu0 %v3296
        %3347 = vmatpush.bf16.msra.mxu0 %v3295
        %3348 = vmatpush.bf16.msra.mxu0 %v3294
        %3349 = vmatpush.bf16.msra.mxu0 %v3293
        %3350 = vmatpush.bf16.msra.mxu0 %v3292
        %3351 = vmatpush.bf16.msra.mxu0 %v3291
        %3352 = vmatmul.bf16.gmra.mxu0 %v3176
        %v3353 = vpop.f32.mrf.mxu0
        %v3354 = vadd.f32 %v3325, %v3353
        %v3355 = vpop.f32.mrf.mxu0
        %v3356 = vadd.f32 %v3327, %v3355
        %3357 = vmatmul.bf16.gmra.mxu0 %v3178
        %v3358 = vpop.f32.mrf.mxu0
        %v3359 = vadd.f32 %v3330, %v3358
        %v3360 = vpop.f32.mrf.mxu0
        %v3361 = vadd.f32 %v3332, %v3360
        %3362 = vmatmul.bf16.gmra.mxu0 %v3180
        %v3363 = vpop.f32.mrf.mxu0
        %v3364 = vadd.f32 %v3335, %v3363
        %v3365 = vpop.f32.mrf.mxu0
        %v3366 = vadd.f32 %v3337, %v3365
        %3367 = vmatmul.bf16.gmra.mxu0 %v3182
        %v3368 = vpop.f32.mrf.mxu0
        %v3369 = vadd.f32 %v3340, %v3368
        %v3370 = vpop.f32.mrf.mxu0
        %v3371 = vadd.f32 %v3342, %v3370
        %3372 = vdwg.mxu0
        %v3373 = vlaneseq
        %v3374 = vand.u32 %v3373, 127
        %vm3375 = vcmp.lt.s32.totalorder %v3374, 50
        %3376 = vadd.xlane.f32.xlu0 %v3354
        %v3377 = vpop.xlane.xlu0 %3376
        %3378 = vadd.xlane.f32.xlu0 %v3356
        %v3379 = vpop.xlane.xlu0 %3378
        %3380 = vadd.xlane.f32.xlu0 %v3359
        %v3381 = vpop.xlane.xlu0 %3380
        %3382 = vadd.xlane.f32.xlu0 %v3361
        %v3383 = vpop.xlane.xlu0 %3382
        %3384 = vadd.xlane.f32.xlu0 %v3364
        %v3385 = vpop.xlane.xlu0 %3384
        %3386 = vadd.xlane.f32.xlu0 %v3366
        %v3387 = vpop.xlane.xlu0 %3386
        %3388 = vadd.xlane.f32.xlu0 %v3369
        %v3389 = vpop.xlane.xlu0 %3388
        %3390 = vadd.xlane.f32.xlu0 %v3371
        %v3391 = vpop.xlane.xlu0 %3390
        %v3392 = vmul.f32 %v3377, 0.02
        %v3393 = vmul.f32 %v3379, 0.02
        %v3394 = vmul.f32 %v3381, 0.02
        %v3395 = vmul.f32 %v3383, 0.02
        %v3396 = vmul.f32 %v3385, 0.02
        %v3397 = vmul.f32 %v3387, 0.02
        %v3398 = vmul.f32 %v3389, 0.02
        %v3399 = vmul.f32 %v3391, 0.02
        %v3400 = vsub.f32 %v3354, %v3392
        %v3401 = vsub.f32 %v3356, %v3393
        %v3402 = vsub.f32 %v3359, %v3394
        %v3403 = vsub.f32 %v3361, %v3395
        %v3404 = vsub.f32 %v3364, %v3396
        %v3405 = vsub.f32 %v3366, %v3397
        %v3406 = vsub.f32 %v3369, %v3398
        %v3407 = vsub.f32 %v3371, %v3399
        %v3408 = vsel %vm3375, 1, 0
        %vm3409 = vcmp.eq.s32.totalorder %v3408, 1
        %v3410 = vsel %vm3409, %v3400, 0.0
        %v3411 = vsel %vm3409, %v3401, 0.0
        %v3412 = vsel %vm3409, %v3402, 0.0
        %v3413 = vsel %vm3409, %v3403, 0.0
        %v3414 = vsel %vm3409, %v3404, 0.0
        %v3415 = vsel %vm3409, %v3405, 0.0
        %v3416 = vsel %vm3409, %v3406, 0.0
        %v3417 = vsel %vm3409, %v3407, 0.0
        %v3418 = vmul.f32 %v3410, %v3410
        %v3419 = vmul.f32 %v3411, %v3411
        %v3420 = vmul.f32 %v3412, %v3412
        %v3421 = vmul.f32 %v3413, %v3413
        %v3422 = vmul.f32 %v3414, %v3414
        %v3423 = vmul.f32 %v3415, %v3415
        %v3424 = vmul.f32 %v3416, %v3416
        %v3425 = vmul.f32 %v3417, %v3417
        %3426 = vadd.xlane.f32.xlu0 %v3418
        %v3427 = vpop.xlane.xlu0 %3426
        %3428 = vadd.xlane.f32.xlu0 %v3419
        %v3429 = vpop.xlane.xlu0 %3428
        %3430 = vadd.xlane.f32.xlu0 %v3420
        %v3431 = vpop.xlane.xlu0 %3430
        %3432 = vadd.xlane.f32.xlu0 %v3421
        %v3433 = vpop.xlane.xlu0 %3432
        %3434 = vadd.xlane.f32.xlu0 %v3422
        %v3435 = vpop.xlane.xlu0 %3434
        %3436 = vadd.xlane.f32.xlu0 %v3423
        %v3437 = vpop.xlane.xlu0 %3436
        %3438 = vadd.xlane.f32.xlu0 %v3424
        %v3439 = vpop.xlane.xlu0 %3438
        %3440 = vadd.xlane.f32.xlu0 %v3425
        %v3441 = vpop.xlane.xlu0 %3440
        %v3442 = vmul.f32 %v3427, 0.02
        %v3443 = vmul.f32 %v3429, 0.02
        %v3444 = vmul.f32 %v3431, 0.02
        %v3445 = vmul.f32 %v3433, 0.02
        %v3446 = vmul.f32 %v3435, 0.02
        %v3447 = vmul.f32 %v3437, 0.02
        %v3448 = vmul.f32 %v3439, 0.02
        %v3449 = vmul.f32 %v3441, 0.02
        %v3450 = vadd.f32 %v3442, 1e-05
        %v3451 = vadd.f32 %v3443, 1e-05
        %v3452 = vadd.f32 %v3444, 1e-05
        %v3453 = vadd.f32 %v3445, 1e-05
        %v3454 = vadd.f32 %v3446, 1e-05
        %v3455 = vadd.f32 %v3447, 1e-05
        %v3456 = vadd.f32 %v3448, 1e-05
        %v3457 = vadd.f32 %v3449, 1e-05
        %v3458 = vrsqrt.pop %v3450
        %v3459 = vmul.f32 %v3458, %v3450
        %v3460 = vmul.f32 %v3459, %v3458
        %v3461 = vmul.f32 0.5, %v3460
        %v3462 = vsub.f32 1.5, %v3461
        %v3463 = vmul.f32 %v3458, %v3462
        %vm3464 = vweird.f32 %v3450
        %vm3465 = vweird.f32 %v3458
        %vm3466 = vmor %vm3464, %vm3465
        %v3467 = vsel %vm3466, %v3458, %v3463
        %v3468 = vrsqrt.pop %v3451
        %v3469 = vmul.f32 %v3468, %v3451
        %v3470 = vmul.f32 %v3469, %v3468
        %v3471 = vmul.f32 0.5, %v3470
        %v3472 = vsub.f32 1.5, %v3471
        %v3473 = vmul.f32 %v3468, %v3472
        %vm3474 = vweird.f32 %v3451
        %vm3475 = vweird.f32 %v3468
        %vm3476 = vmor %vm3474, %vm3475
        %v3477 = vsel %vm3476, %v3468, %v3473
        %v3478 = vrsqrt.pop %v3452
        %v3479 = vmul.f32 %v3478, %v3452
        %v3480 = vmul.f32 %v3479, %v3478
        %v3481 = vmul.f32 0.5, %v3480
        %v3482 = vsub.f32 1.5, %v3481
        %v3483 = vmul.f32 %v3478, %v3482
        %vm3484 = vweird.f32 %v3452
        %vm3485 = vweird.f32 %v3478
        %vm3486 = vmor %vm3484, %vm3485
        %v3487 = vsel %vm3486, %v3478, %v3483
        %v3488 = vrsqrt.pop %v3453
        %v3489 = vmul.f32 %v3488, %v3453
        %v3490 = vmul.f32 %v3489, %v3488
        %v3491 = vmul.f32 0.5, %v3490
        %v3492 = vsub.f32 1.5, %v3491
        %v3493 = vmul.f32 %v3488, %v3492
        %vm3494 = vweird.f32 %v3453
        %vm3495 = vweird.f32 %v3488
        %vm3496 = vmor %vm3494, %vm3495
        %v3497 = vsel %vm3496, %v3488, %v3493
        %v3498 = vrsqrt.pop %v3454
        %v3499 = vmul.f32 %v3498, %v3454
        %v3500 = vmul.f32 %v3499, %v3498
        %v3501 = vmul.f32 0.5, %v3500
        %v3502 = vsub.f32 1.5, %v3501
        %v3503 = vmul.f32 %v3498, %v3502
        %vm3504 = vweird.f32 %v3454
        %vm3505 = vweird.f32 %v3498
        %vm3506 = vmor %vm3504, %vm3505
        %v3507 = vsel %vm3506, %v3498, %v3503
        %v3508 = vrsqrt.pop %v3455
        %v3509 = vmul.f32 %v3508, %v3455
        %v3510 = vmul.f32 %v3509, %v3508
        %v3511 = vmul.f32 0.5, %v3510
        %v3512 = vsub.f32 1.5, %v3511
        %v3513 = vmul.f32 %v3508, %v3512
        %vm3514 = vweird.f32 %v3455
        %vm3515 = vweird.f32 %v3508
        %vm3516 = vmor %vm3514, %vm3515
        %v3517 = vsel %vm3516, %v3508, %v3513
        %v3518 = vrsqrt.pop %v3456
        %v3519 = vmul.f32 %v3518, %v3456
        %v3520 = vmul.f32 %v3519, %v3518
        %v3521 = vmul.f32 0.5, %v3520
        %v3522 = vsub.f32 1.5, %v3521
        %v3523 = vmul.f32 %v3518, %v3522
        %vm3524 = vweird.f32 %v3456
        %vm3525 = vweird.f32 %v3518
        %vm3526 = vmor %vm3524, %vm3525
        %v3527 = vsel %vm3526, %v3518, %v3523
        %v3528 = vrsqrt.pop %v3457
        %v3529 = vmul.f32 %v3528, %v3457
        %v3530 = vmul.f32 %v3529, %v3528
        %v3531 = vmul.f32 0.5, %v3530
        %v3532 = vsub.f32 1.5, %v3531
        %v3533 = vmul.f32 %v3528, %v3532
        %vm3534 = vweird.f32 %v3457
        %vm3535 = vweird.f32 %v3528
        %vm3536 = vmor %vm3534, %vm3535
        %v3537 = vsel %vm3536, %v3528, %v3533
        %v3538 = vmul.f32 %v3410, %v3467
        %v3539 = vmul.f32 %v3411, %v3477
        %v3540 = vmul.f32 %v3412, %v3487
        %v3541 = vmul.f32 %v3413, %v3497
        %v3542 = vmul.f32 %v3414, %v3507
        %v3543 = vmul.f32 %v3415, %v3517
        %v3544 = vmul.f32 %v3416, %v3527
        %v3545 = vmul.f32 %v3417, %v3537
        %v3546 = vld [vmem:[#allocation11] sm:$0x1]
        %v3548 = vperm.slane %v3546, 0
        %v3550 = vmul.f32 %v3538, %v3548
        %v3551 = vmul.f32 %v3539, %v3548
        %v3552 = vmul.f32 %v3540, %v3548
        %v3553 = vmul.f32 %v3541, %v3548
        %v3554 = vmul.f32 %v3542, %v3548
        %v3555 = vmul.f32 %v3543, %v3548
        %v3556 = vmul.f32 %v3544, %v3548
        %v3557 = vmul.f32 %v3545, %v3548
        %v3558 = vld [vmem:[#allocation13] sm:$0x1]
        %v3560 = vperm.slane %v3558, 0
        %v3562 = vadd.f32 %v3550, %v3560
        %v3563 = vadd.f32 %v3551, %v3560
        %v3564 = vadd.f32 %v3552, %v3560
        %v3565 = vadd.f32 %v3553, %v3560
        %v3566 = vadd.f32 %v3554, %v3560
        %v3567 = vadd.f32 %v3555, %v3560
        %v3568 = vadd.f32 %v3556, %v3560
        %v3569 = vadd.f32 %v3557, %v3560
        %v3570 = vpack.c.bf16 %v3562, %v3562
        %v3571 = vpack.c.bf16 %v3563, %v3563
        %v3572 = vpack.c.bf16 %v3564, %v3564
        %v3573 = vpack.c.bf16 %v3565, %v3565
        %v3574 = vpack.c.bf16 %v3566, %v3566
        %v3575 = vpack.c.bf16 %v3567, %v3567
        %v3576 = vpack.c.bf16 %v3568, %v3568
        %v3577 = vpack.c.bf16 %v3569, %v3569
        %3578 = vst [vmem:[%s548] sm:$0xf] %v3570
        %3579 = vst [vmem:[%s548 + $0x4] sm:$0xf] %v3571
        %3580 = vst [vmem:[%s548 + $0x8] sm:$0xf] %v3572
        %3581 = vst [vmem:[%s548 + $0xc] sm:$0xf] %v3573
        %3582 = vst [vmem:[%s548 + $0x10] sm:$0xf] %v3574
        %3583 = vst [vmem:[%s548 + $0x14] sm:$0xf] %v3575
        %3584 = vst [vmem:[%s548 + $0x18] sm:$0xf] %v3576
        %3585 = vst [vmem:[%s548 + $0x1c] sm:$0xf] %v3577
        %v3586 = vld [vmem:[#allocation14] sm:$0xff]
        %v3587 = vld [vmem:[#allocation14 + $0x8] sm:$0xff]
        %v3588 = vld [vmem:[#allocation14 + $0x10] sm:$0xff]
        %v3589 = vld [vmem:[#allocation14 + $0x18] sm:$0xff]
        %v3590 = vld [vmem:[#allocation14 + $0x20] sm:$0xff]
        %v3591 = vld [vmem:[#allocation14 + $0x28] sm:$0xff]
        %v3592 = vld [vmem:[#allocation14 + $0x30] sm:$0xff]
        %v3593 = vld [vmem:[#allocation14 + $0x38] sm:$0xff]
        %v3594 = vld [vmem:[#allocation14 + $0x40] sm:$0xff]
        %v3595 = vld [vmem:[#allocation14 + $0x48] sm:$0xff]
        %v3596 = vld [vmem:[#allocation14 + $0x50] sm:$0xff]
        %v3597 = vld [vmem:[#allocation14 + $0x58] sm:$0xff]
        %v3598 = vld [vmem:[#allocation14 + $0x60] sm:$0xff]
        %v3599 = vld [vmem:[#allocation14 + $0x68] sm:$0xff]
        %v3600 = vld [vmem:[#allocation14 + $0x70] sm:$0xff]
        %v3601 = vld [vmem:[#allocation14 + $0x78] sm:$0xff]
        %v3602 = vld [vmem:[#allocation14 + $0x80] sm:$0xff]
        %v3603 = vld [vmem:[#allocation14 + $0x88] sm:$0xff]
        %v3604 = vld [vmem:[#allocation14 + $0x90] sm:$0xff]
        %v3605 = vld [vmem:[#allocation14 + $0x98] sm:$0xff]
        %v3606 = vld [vmem:[#allocation14 + $0xa0] sm:$0xff]
        %v3607 = vld [vmem:[#allocation14 + $0xa8] sm:$0xff]
        %v3608 = vld [vmem:[#allocation14 + $0xb0] sm:$0xff]
        %v3609 = vld [vmem:[#allocation14 + $0xb8] sm:$0xff]
        %v3610 = vld [vmem:[#allocation14 + $0xc0] sm:$0xff]
        %v3611 = vld [vmem:[#allocation14 + $0xc8] sm:$0xff]
        %v3612 = vld [vmem:[#allocation14 + $0xd0] sm:$0xff]
        %v3613 = vld [vmem:[#allocation14 + $0xd8] sm:$0xff]
        %v3614 = vld [vmem:[#allocation14 + $0xe0] sm:$0xff]
        %v3615 = vld [vmem:[#allocation14 + $0xe8] sm:$0xff]
        %v3616 = vld [vmem:[#allocation14 + $0xf0] sm:$0xff]
        %v3617 = vld [vmem:[#allocation14 + $0xf8] sm:$0xff]
        %v3618 = vld [vmem:[#allocation14 + $0x100] sm:$0xff]
        %v3619 = vld [vmem:[#allocation14 + $0x108] sm:$0xff]
        %v3620 = vld [vmem:[#allocation14 + $0x110] sm:$0xff]
        %v3621 = vld [vmem:[#allocation14 + $0x118] sm:$0xff]
        %v3622 = vld [vmem:[#allocation14 + $0x120] sm:$0xff]
        %v3623 = vld [vmem:[#allocation14 + $0x128] sm:$0xff]
        %v3624 = vld [vmem:[#allocation14 + $0x130] sm:$0xff]
        %v3625 = vld [vmem:[#allocation14 + $0x138] sm:$0xff]
        %v3626 = vld [vmem:[#allocation14 + $0x140] sm:$0xff]
        %v3627 = vld [vmem:[#allocation14 + $0x148] sm:$0xff]
        %v3628 = vld [vmem:[#allocation14 + $0x150] sm:$0xff]
        %v3629 = vld [vmem:[#allocation14 + $0x158] sm:$0xff]
        %v3630 = vld [vmem:[#allocation14 + $0x160] sm:$0xff]
        %v3631 = vld [vmem:[#allocation14 + $0x168] sm:$0xff]
        %v3632 = vld [vmem:[#allocation14 + $0x170] sm:$0xff]
        %v3633 = vld [vmem:[#allocation14 + $0x178] sm:$0xff]
        %v3634 = vld [vmem:[%s10] sm:$0x3f]
        %v3636 = vperm.slane %v3634, 0
        %v3637 = vperm.slane %v3634, 1
        %v3638 = vperm.slane %v3634, 2
        %v3639 = vperm.slane %v3634, 3
        %v3640 = vperm.slane %v3634, 4
        %v3641 = vperm.slane %v3634, 5
        %v3656 = vunpack.c.l.b16 %v3570
        %v3657 = vunpack.c.l.b16 %v3571
        %v3658 = vunpack.c.l.b16 %v3572
        %v3659 = vunpack.c.l.b16 %v3573
        %v3660 = vunpack.c.l.b16 %v3574
        %v3661 = vunpack.c.l.b16 %v3575
        %v3662 = vunpack.c.l.b16 %v3576
        %v3663 = vunpack.c.l.b16 %v3577
        %v3664 = vpack.c.b16 %v3657, %v3656
        %v3665 = vpack.c.b16 %v3659, %v3658
        %v3666 = vpack.c.b16 %v3661, %v3660
        %v3667 = vpack.c.b16 %v3663, %v3662
        %v3720 = vunpack.c.l.b16 %v3586
        %v3721 = vunpack.c.h.b16 %v3586
        %v3722 = vunpack.c.l.b16 %v3587
        %v3723 = vunpack.c.h.b16 %v3587
        %v3724 = vunpack.c.l.b16 %v3588
        %v3725 = vunpack.c.h.b16 %v3588
        %v3726 = vunpack.c.l.b16 %v3589
        %v3727 = vunpack.c.h.b16 %v3589
        %v3728 = vunpack.c.l.b16 %v3590
        %v3729 = vunpack.c.h.b16 %v3590
        %v3730 = vunpack.c.l.b16 %v3591
        %v3731 = vunpack.c.h.b16 %v3591
        %v3732 = vunpack.c.l.b16 %v3592
        %v3733 = vunpack.c.h.b16 %v3592
        %v3734 = vunpack.c.l.b16 %v3593
        %v3735 = vunpack.c.h.b16 %v3593
        %v3736 = vunpack.c.l.b16 %v3594
        %v3737 = vunpack.c.h.b16 %v3594
        %v3738 = vunpack.c.l.b16 %v3595
        %v3739 = vunpack.c.h.b16 %v3595
        %v3740 = vunpack.c.l.b16 %v3596
        %v3741 = vunpack.c.h.b16 %v3596
        %v3742 = vunpack.c.l.b16 %v3597
        %v3743 = vunpack.c.h.b16 %v3597
        %v3744 = vunpack.c.l.b16 %v3598
        %v3745 = vunpack.c.h.b16 %v3598
        %v3746 = vunpack.c.l.b16 %v3599
        %v3747 = vunpack.c.h.b16 %v3599
        %v3748 = vunpack.c.l.b16 %v3600
        %v3749 = vunpack.c.h.b16 %v3600
        %v3750 = vunpack.c.l.b16 %v3601
        %v3751 = vunpack.c.h.b16 %v3601
        %v3752 = vunpack.c.l.b16 %v3602
        %v3753 = vunpack.c.h.b16 %v3602
        %v3754 = vunpack.c.l.b16 %v3603
        %v3755 = vunpack.c.h.b16 %v3603
        %v3756 = vunpack.c.l.b16 %v3604
        %v3757 = vunpack.c.h.b16 %v3604
        %v3758 = vunpack.c.l.b16 %v3605
        %v3759 = vunpack.c.h.b16 %v3605
        %v3760 = vunpack.c.l.b16 %v3606
        %v3761 = vunpack.c.h.b16 %v3606
        %v3762 = vunpack.c.l.b16 %v3607
        %v3763 = vunpack.c.h.b16 %v3607
        %v3764 = vunpack.c.l.b16 %v3608
        %v3765 = vunpack.c.h.b16 %v3608
        %v3766 = vunpack.c.l.b16 %v3609
        %v3767 = vunpack.c.h.b16 %v3609
        %v3768 = vunpack.c.l.b16 %v3610
        %v3769 = vunpack.c.h.b16 %v3610
        %v3770 = vunpack.c.l.b16 %v3611
        %v3771 = vunpack.c.h.b16 %v3611
        %v3772 = vunpack.c.l.b16 %v3612
        %v3773 = vunpack.c.h.b16 %v3612
        %v3774 = vunpack.c.l.b16 %v3613
        %v3775 = vunpack.c.h.b16 %v3613
        %v3776 = vunpack.c.l.b16 %v3614
        %v3777 = vunpack.c.h.b16 %v3614
        %v3778 = vunpack.c.l.b16 %v3615
        %v3779 = vunpack.c.h.b16 %v3615
        %v3780 = vunpack.c.l.b16 %v3616
        %v3781 = vunpack.c.h.b16 %v3616
        %v3782 = vunpack.c.l.b16 %v3617
        %v3783 = vunpack.c.h.b16 %v3617
        %v3784 = vunpack.c.l.b16 %v3618
        %v3785 = vunpack.c.h.b16 %v3618
        %v3786 = vunpack.c.l.b16 %v3619
        %v3787 = vunpack.c.h.b16 %v3619
        %v3788 = vunpack.c.l.b16 %v3620
        %v3789 = vunpack.c.h.b16 %v3620
        %v3790 = vunpack.c.l.b16 %v3621
        %v3791 = vunpack.c.h.b16 %v3621
        %v3792 = vunpack.c.l.b16 %v3622
        %v3793 = vunpack.c.h.b16 %v3622
        %v3794 = vunpack.c.l.b16 %v3623
        %v3795 = vunpack.c.h.b16 %v3623
        %v3796 = vunpack.c.l.b16 %v3624
        %v3797 = vunpack.c.h.b16 %v3624
        %v3798 = vunpack.c.l.b16 %v3625
        %v3799 = vunpack.c.h.b16 %v3625
        %v3800 = vunpack.c.l.b16 %v3626
        %v3801 = vunpack.c.h.b16 %v3626
        %v3802 = vunpack.c.l.b16 %v3627
        %v3803 = vunpack.c.h.b16 %v3627
        %v3804 = vunpack.c.l.b16 %v3628
        %v3805 = vunpack.c.h.b16 %v3628
        %v3806 = vunpack.c.l.b16 %v3629
        %v3807 = vunpack.c.h.b16 %v3629
        %v3808 = vunpack.c.l.b16 %v3630
        %v3809 = vunpack.c.h.b16 %v3630
        %v3810 = vunpack.c.l.b16 %v3631
        %v3811 = vunpack.c.h.b16 %v3631
        %v3812 = vunpack.c.l.b16 %v3632
        %v3813 = vunpack.c.h.b16 %v3632
        %v3814 = vunpack.c.l.b16 %v3633
        %v3815 = vunpack.c.h.b16 %v3633
        %v3816 = vpack.c.b16 %v3726, %v3720
        %v3817 = vpack.c.b16 %v3727, %v3721
        %v3818 = vpack.c.b16 %v3728, %v3722
        %v3819 = vpack.c.b16 %v3729, %v3723
        %v3820 = vpack.c.b16 %v3730, %v3724
        %v3821 = vpack.c.b16 %v3731, %v3725
        %v3822 = vpack.c.b16 %v3738, %v3732
        %v3823 = vpack.c.b16 %v3739, %v3733
        %v3824 = vpack.c.b16 %v3740, %v3734
        %v3825 = vpack.c.b16 %v3741, %v3735
        %v3826 = vpack.c.b16 %v3742, %v3736
        %v3827 = vpack.c.b16 %v3743, %v3737
        %v3828 = vpack.c.b16 %v3750, %v3744
        %v3829 = vpack.c.b16 %v3751, %v3745
        %v3830 = vpack.c.b16 %v3752, %v3746
        %v3831 = vpack.c.b16 %v3753, %v3747
        %v3832 = vpack.c.b16 %v3754, %v3748
        %v3833 = vpack.c.b16 %v3755, %v3749
        %v3834 = vpack.c.b16 %v3762, %v3756
        %v3835 = vpack.c.b16 %v3763, %v3757
        %v3836 = vpack.c.b16 %v3764, %v3758
        %v3837 = vpack.c.b16 %v3765, %v3759
        %v3838 = vpack.c.b16 %v3766, %v3760
        %v3839 = vpack.c.b16 %v3767, %v3761
        %v3840 = vpack.c.b16 %v3774, %v3768
        %v3841 = vpack.c.b16 %v3775, %v3769
        %v3842 = vpack.c.b16 %v3776, %v3770
        %v3843 = vpack.c.b16 %v3777, %v3771
        %v3844 = vpack.c.b16 %v3778, %v3772
        %v3845 = vpack.c.b16 %v3779, %v3773
        %v3846 = vpack.c.b16 %v3786, %v3780
        %v3847 = vpack.c.b16 %v3787, %v3781
        %v3848 = vpack.c.b16 %v3788, %v3782
        %v3849 = vpack.c.b16 %v3789, %v3783
        %v3850 = vpack.c.b16 %v3790, %v3784
        %v3851 = vpack.c.b16 %v3791, %v3785
        %v3852 = vpack.c.b16 %v3798, %v3792
        %v3853 = vpack.c.b16 %v3799, %v3793
        %v3854 = vpack.c.b16 %v3800, %v3794
        %v3855 = vpack.c.b16 %v3801, %v3795
        %v3856 = vpack.c.b16 %v3802, %v3796
        %v3857 = vpack.c.b16 %v3803, %v3797
        %v3858 = vpack.c.b16 %v3810, %v3804
        %v3859 = vpack.c.b16 %v3811, %v3805
        %v3860 = vpack.c.b16 %v3812, %v3806
        %v3861 = vpack.c.b16 %v3813, %v3807
        %v3862 = vpack.c.b16 %v3814, %v3808
        %v3863 = vpack.c.b16 %v3815, %v3809
        %3912 = vmatpush.bf16.msra.mxu0 %v3858
        %3913 = vmatpush.bf16.msra.mxu0 %v3852
        %3914 = vmatpush.bf16.msra.mxu0 %v3846
        %3915 = vmatpush.bf16.msra.mxu0 %v3840
        %3916 = vmatpush.bf16.msra.mxu0 %v3834
        %3917 = vmatpush.bf16.msra.mxu0 %v3828
        %3918 = vmatpush.bf16.msra.mxu0 %v3822
        %3919 = vmatpush.bf16.msra.mxu0 %v3816
        %3920 = vmatmul.bf16.gmra.mxu0 %v3664
        %v3921 = vpop.f32.mrf.mxu0
        %v3922 = vadd.f32 %v3636, %v3921
        %v3923 = vpop.f32.mrf.mxu0
        %v3924 = vadd.f32 %v3636, %v3923
        %3925 = vmatmul.bf16.gmra.mxu0 %v3665
        %v3926 = vpop.f32.mrf.mxu0
        %v3927 = vadd.f32 %v3636, %v3926
        %v3928 = vpop.f32.mrf.mxu0
        %v3929 = vadd.f32 %v3636, %v3928
        %3930 = vmatmul.bf16.gmra.mxu0 %v3666
        %v3931 = vpop.f32.mrf.mxu0
        %v3932 = vadd.f32 %v3636, %v3931
        %v3933 = vpop.f32.mrf.mxu0
        %v3934 = vadd.f32 %v3636, %v3933
        %3935 = vmatmul.bf16.gmra.mxu0 %v3667
        %v3936 = vpop.f32.mrf.mxu0
        %v3937 = vadd.f32 %v3636, %v3936
        %v3938 = vpop.f32.mrf.mxu0
        %v3939 = vadd.f32 %v3636, %v3938
        %3940 = vdwg.mxu0
        %3941 = vmatpush.bf16.msra.mxu0 %v3859
        %3942 = vmatpush.bf16.msra.mxu0 %v3853
        %3943 = vmatpush.bf16.msra.mxu0 %v3847
        %3944 = vmatpush.bf16.msra.mxu0 %v3841
        %3945 = vmatpush.bf16.msra.mxu0 %v3835
        %3946 = vmatpush.bf16.msra.mxu0 %v3829
        %3947 = vmatpush.bf16.msra.mxu0 %v3823
        %3948 = vmatpush.bf16.msra.mxu0 %v3817
        %3949 = vmatmul.bf16.gmra.mxu0 %v3664
        %v3950 = vpop.f32.mrf.mxu0
        %v3951 = vadd.f32 %v3637, %v3950
        %v3952 = vpop.f32.mrf.mxu0
        %v3953 = vadd.f32 %v3637, %v3952
        %3954 = vmatmul.bf16.gmra.mxu0 %v3665
        %v3955 = vpop.f32.mrf.mxu0
        %v3956 = vadd.f32 %v3637, %v3955
        %v3957 = vpop.f32.mrf.mxu0
        %v3958 = vadd.f32 %v3637, %v3957
        %3959 = vmatmul.bf16.gmra.mxu0 %v3666
        %v3960 = vpop.f32.mrf.mxu0
        %v3961 = vadd.f32 %v3637, %v3960
        %v3962 = vpop.f32.mrf.mxu0
        %v3963 = vadd.f32 %v3637, %v3962
        %3964 = vmatmul.bf16.gmra.mxu0 %v3667
        %v3965 = vpop.f32.mrf.mxu0
        %v3966 = vadd.f32 %v3637, %v3965
        %v3967 = vpop.f32.mrf.mxu0
        %v3968 = vadd.f32 %v3637, %v3967
        %3969 = vdwg.mxu0
        %3970 = vmatpush.bf16.msra.mxu0 %v3860
        %3971 = vmatpush.bf16.msra.mxu0 %v3854
        %3972 = vmatpush.bf16.msra.mxu0 %v3848
        %3973 = vmatpush.bf16.msra.mxu0 %v3842
        %3974 = vmatpush.bf16.msra.mxu0 %v3836
        %3975 = vmatpush.bf16.msra.mxu0 %v3830
        %3976 = vmatpush.bf16.msra.mxu0 %v3824
        %3977 = vmatpush.bf16.msra.mxu0 %v3818
        %3978 = vmatmul.bf16.gmra.mxu0 %v3664
        %v3979 = vpop.f32.mrf.mxu0
        %v3980 = vadd.f32 %v3638, %v3979
        %v3981 = vpop.f32.mrf.mxu0
        %v3982 = vadd.f32 %v3638, %v3981
        %3983 = vmatmul.bf16.gmra.mxu0 %v3665
        %v3984 = vpop.f32.mrf.mxu0
        %v3985 = vadd.f32 %v3638, %v3984
        %v3986 = vpop.f32.mrf.mxu0
        %v3987 = vadd.f32 %v3638, %v3986
        %3988 = vmatmul.bf16.gmra.mxu0 %v3666
        %v3989 = vpop.f32.mrf.mxu0
        %v3990 = vadd.f32 %v3638, %v3989
        %v3991 = vpop.f32.mrf.mxu0
        %v3992 = vadd.f32 %v3638, %v3991
        %3993 = vmatmul.bf16.gmra.mxu0 %v3667
        %v3994 = vpop.f32.mrf.mxu0
        %v3995 = vadd.f32 %v3638, %v3994
        %v3996 = vpop.f32.mrf.mxu0
        %v3997 = vadd.f32 %v3638, %v3996
        %3998 = vdwg.mxu0
        %3999 = vmatpush.bf16.msra.mxu0 %v3861
        %4000 = vmatpush.bf16.msra.mxu0 %v3855
        %4001 = vmatpush.bf16.msra.mxu0 %v3849
        %4002 = vmatpush.bf16.msra.mxu0 %v3843
        %4003 = vmatpush.bf16.msra.mxu0 %v3837
        %4004 = vmatpush.bf16.msra.mxu0 %v3831
        %4005 = vmatpush.bf16.msra.mxu0 %v3825
        %4006 = vmatpush.bf16.msra.mxu0 %v3819
        %4007 = vmatmul.bf16.gmra.mxu0 %v3664
        %v4008 = vpop.f32.mrf.mxu0
        %v4009 = vadd.f32 %v3639, %v4008
        %v4010 = vpop.f32.mrf.mxu0
        %v4011 = vadd.f32 %v3639, %v4010
        %4012 = vmatmul.bf16.gmra.mxu0 %v3665
        %v4013 = vpop.f32.mrf.mxu0
        %v4014 = vadd.f32 %v3639, %v4013
        %v4015 = vpop.f32.mrf.mxu0
        %v4016 = vadd.f32 %v3639, %v4015
        %4017 = vmatmul.bf16.gmra.mxu0 %v3666
        %v4018 = vpop.f32.mrf.mxu0
        %v4019 = vadd.f32 %v3639, %v4018
        %v4020 = vpop.f32.mrf.mxu0
        %v4021 = vadd.f32 %v3639, %v4020
        %4022 = vmatmul.bf16.gmra.mxu0 %v3667
        %v4023 = vpop.f32.mrf.mxu0
        %v4024 = vadd.f32 %v3639, %v4023
        %v4025 = vpop.f32.mrf.mxu0
        %v4026 = vadd.f32 %v3639, %v4025
        %4027 = vdwg.mxu0
        %4028 = vmatpush.bf16.msra.mxu0 %v3862
        %4029 = vmatpush.bf16.msra.mxu0 %v3856
        %4030 = vmatpush.bf16.msra.mxu0 %v3850
        %4031 = vmatpush.bf16.msra.mxu0 %v3844
        %4032 = vmatpush.bf16.msra.mxu0 %v3838
        %4033 = vmatpush.bf16.msra.mxu0 %v3832
        %4034 = vmatpush.bf16.msra.mxu0 %v3826
        %4035 = vmatpush.bf16.msra.mxu0 %v3820
        %4036 = vmatmul.bf16.gmra.mxu0 %v3664
        %v4037 = vpop.f32.mrf.mxu0
        %v4038 = vadd.f32 %v3640, %v4037
        %v4039 = vpop.f32.mrf.mxu0
        %v4040 = vadd.f32 %v3640, %v4039
        %4041 = vmatmul.bf16.gmra.mxu0 %v3665
        %v4042 = vpop.f32.mrf.mxu0
        %v4043 = vadd.f32 %v3640, %v4042
        %v4044 = vpop.f32.mrf.mxu0
        %v4045 = vadd.f32 %v3640, %v4044
        %4046 = vmatmul.bf16.gmra.mxu0 %v3666
        %v4047 = vpop.f32.mrf.mxu0
        %v4048 = vadd.f32 %v3640, %v4047
        %v4049 = vpop.f32.mrf.mxu0
        %v4050 = vadd.f32 %v3640, %v4049
        %4051 = vmatmul.bf16.gmra.mxu0 %v3667
        %v4052 = vpop.f32.mrf.mxu0
        %v4053 = vadd.f32 %v3640, %v4052
        %v4054 = vpop.f32.mrf.mxu0
        %v4055 = vadd.f32 %v3640, %v4054
        %4056 = vdwg.mxu0
        %4057 = vmatpush.bf16.msra.mxu0 %v3863
        %4058 = vmatpush.bf16.msra.mxu0 %v3857
        %4059 = vmatpush.bf16.msra.mxu0 %v3851
        %4060 = vmatpush.bf16.msra.mxu0 %v3845
        %4061 = vmatpush.bf16.msra.mxu0 %v3839
        %4062 = vmatpush.bf16.msra.mxu0 %v3833
        %4063 = vmatpush.bf16.msra.mxu0 %v3827
        %4064 = vmatpush.bf16.msra.mxu0 %v3821
        %4065 = vmatmul.bf16.gmra.mxu0 %v3664
        %v4066 = vpop.f32.mrf.mxu0
        %v4067 = vadd.f32 %v3641, %v4066
        %v4068 = vpop.f32.mrf.mxu0
        %v4069 = vadd.f32 %v3641, %v4068
        %4070 = vmatmul.bf16.gmra.mxu0 %v3665
        %v4071 = vpop.f32.mrf.mxu0
        %v4072 = vadd.f32 %v3641, %v4071
        %v4073 = vpop.f32.mrf.mxu0
        %v4074 = vadd.f32 %v3641, %v4073
        %4075 = vmatmul.bf16.gmra.mxu0 %v3666
        %v4076 = vpop.f32.mrf.mxu0
        %v4077 = vadd.f32 %v3641, %v4076
        %v4078 = vpop.f32.mrf.mxu0
        %v4079 = vadd.f32 %v3641, %v4078
        %4080 = vmatmul.bf16.gmra.mxu0 %v3667
        %v4081 = vpop.f32.mrf.mxu0
        %v4082 = vadd.f32 %v3641, %v4081
        %v4083 = vpop.f32.mrf.mxu0
        %v4084 = vadd.f32 %v3641, %v4083
        %4085 = vdwg.mxu0
        %v4086 = vpack.c.bf16 %v3951, %v3922
        %v4087 = vpack.c.bf16 %v4009, %v3980
        %v4088 = vpack.c.bf16 %v4067, %v4038
        %v4089 = vpack.c.bf16 %v3953, %v3924
        %v4090 = vpack.c.bf16 %v4011, %v3982
        %v4091 = vpack.c.bf16 %v4069, %v4040
        %v4092 = vpack.c.bf16 %v3956, %v3927
        %v4093 = vpack.c.bf16 %v4014, %v3985
        %v4094 = vpack.c.bf16 %v4072, %v4043
        %v4095 = vpack.c.bf16 %v3958, %v3929
        %v4096 = vpack.c.bf16 %v4016, %v3987
        %v4097 = vpack.c.bf16 %v4074, %v4045
        %v4098 = vpack.c.bf16 %v3961, %v3932
        %v4099 = vpack.c.bf16 %v4019, %v3990
        %v4100 = vpack.c.bf16 %v4077, %v4048
        %v4101 = vpack.c.bf16 %v3963, %v3934
        %v4102 = vpack.c.bf16 %v4021, %v3992
        %v4103 = vpack.c.bf16 %v4079, %v4050
        %v4104 = vpack.c.bf16 %v3966, %v3937
        %v4105 = vpack.c.bf16 %v4024, %v3995
        %v4106 = vpack.c.bf16 %v4082, %v4053
        %v4107 = vpack.c.bf16 %v3968, %v3939
        %v4108 = vpack.c.bf16 %v4026, %v3997
        %v4109 = vpack.c.bf16 %v4084, %v4055
        %4110 = vst [vmem:[%s555] sm:$0xff] %v4086
        %4111 = vst [vmem:[%s555 + $0x8] sm:$0xff] %v4087
        %4112 = vst [vmem:[%s555 + $0x10] sm:$0xff] %v4088
        %4113 = vst [vmem:[%s555 + $0x18] sm:$0xff] %v4089
        %4114 = vst [vmem:[%s555 + $0x20] sm:$0xff] %v4090
        %4115 = vst [vmem:[%s555 + $0x28] sm:$0xff] %v4091
        %4116 = vst [vmem:[%s555 + $0x30] sm:$0xff] %v4092
        %4117 = vst [vmem:[%s555 + $0x38] sm:$0xff] %v4093
        %4118 = vst [vmem:[%s555 + $0x40] sm:$0xff] %v4094
        %4119 = vst [vmem:[%s555 + $0x48] sm:$0xff] %v4095
        %4120 = vst [vmem:[%s555 + $0x50] sm:$0xff] %v4096
        %4121 = vst [vmem:[%s555 + $0x58] sm:$0xff] %v4097
        %4122 = vst [vmem:[%s555 + $0x60] sm:$0xff] %v4098
        %4123 = vst [vmem:[%s555 + $0x68] sm:$0xff] %v4099
        %4124 = vst [vmem:[%s555 + $0x70] sm:$0xff] %v4100
        %4125 = vst [vmem:[%s555 + $0x78] sm:$0xff] %v4101
        %4126 = vst [vmem:[%s555 + $0x80] sm:$0xff] %v4102
        %4127 = vst [vmem:[%s555 + $0x88] sm:$0xff] %v4103
        %4128 = vst [vmem:[%s555 + $0x90] sm:$0xff] %v4104
        %4129 = vst [vmem:[%s555 + $0x98] sm:$0xff] %v4105
        %4130 = vst [vmem:[%s555 + $0xa0] sm:$0xff] %v4106
        %4131 = vst [vmem:[%s555 + $0xa8] sm:$0xff] %v4107
        %4132 = vst [vmem:[%s555 + $0xb0] sm:$0xff] %v4108
        %4133 = vst [vmem:[%s555 + $0xb8] sm:$0xff] %v4109
        %s4134 = sand.u32 %s281, 1
        %s4135 = scalar_lea.sflag [#allocation4], %s4134
        %s4136 = sand.u32 %s281, 1
        %s4137 = smul.addr %s4136, 32
        %s4138 = scalar_lea.vmem [#allocation16], %s4137
        %s4139 = sand.u32 %s307, 1
        %s4140 = scalar_lea.sflag [#allocation18], %s4139
        %s4141 = sand.u32 %s307, 1
        %s4142 = smul.addr %s4141, 192
        %s4143 = scalar_lea.vmem [#allocation17], %s4142
        // Predicated region
        $region97: #{tpu_custom_call.1} parent=63 // pred_check
          %p4144 = pneg %p291
        $region98: #{tpu_custom_call.1} parent=63 // pred_check_branch
          %4146 = sbr.rel (%p4144) target = $region100
        $region99: #{tpu_custom_call.1} parent=63 // pred_region
          %s4147 = smul.u32 8, %s37
          %4149 = vsyncadd %s4135, 0
          %s4150 = smul.addr %s4147, 4
          %s4151 = scalar_lea.hbm %s11, %s4150
          %s4152 = sshll.u32 %s4138, 4
          %s4153 = int_to_ptr.vmem [resolvable:$true] %s4152
          %s4154 = sshll.u32 %s4151, 4
          %s4155 = int_to_ptr.hbm [resolvable:$true] %s4154
          %4160 = dma.vmem_to_hbm [thread:$0]  %s4153, 512, %s4155, %s4135, 64, 64, 4
        $region100: #{tpu_custom_call.1} parent=63 // pred_fallthru
          _
        // Predicated region
        $region101: #{tpu_custom_call.1} parent=63 // pred_check
          %p4161 = pneg %p317
        $region102: #{tpu_custom_call.1} parent=63 // pred_check_branch
          %4163 = sbr.rel (%p4161) target = $region104
        $region103: #{tpu_custom_call.1} parent=63 // pred_region
          %s4164 = smul.u32 8, %s37
          %4166 = vsyncadd %s4140, 0
          %s4167 = smul.addr %s4164, 6
          %s4168 = smul.addr %s4167, 4
          %s4169 = scalar_lea.hbm %s12, %s4168
          %s4170 = sshll.u32 %s4143, 4
          %s4171 = int_to_ptr.vmem [resolvable:$true] %s4170
          %s4172 = sshll.u32 %s4169, 4
          %s4173 = int_to_ptr.hbm [resolvable:$true] %s4172
          %4178 = dma.vmem_to_hbm [thread:$0]  %s4171, 3072, %s4173, %s4140, 384, 384, 24
        $region104: #{tpu_custom_call.1} parent=63 // pred_fallthru
          _
      $region64: #{tpu_custom_call.1} parent=5 // pred_fallthru
        _
      %p4179 = scmp.le.s32.totalorder 2, %s32
      // Predicated region
      $region105: #{tpu_custom_call.1} parent=5 // pred_check
        %p4180 = pneg %p4179
      $region106: #{tpu_custom_call.1} parent=5 // pred_check_branch
        %4182 = sbr.rel (%p4180) target = $region108
      $region107: #{tpu_custom_call.1} parent=5 // pred_region
        %s4183 = ssub.s32 %s32, 2
        // Predicated region
        $region109: #{tpu_custom_call.1} parent=107 // pred_check
          %p4184 = pneg %p297
        $region110: #{tpu_custom_call.1} parent=107 // pred_check_branch
          %4186 = sbr.rel (%p4184) target = $region112
        $region111: #{tpu_custom_call.1} parent=107 // pred_region
          %s4187 = sand.u32 %s282, 1
          %s4188 = scalar_lea.sflag [#allocation4], %s4187
          %s4189 = sand.u32 %s282, 1
          %s4190 = smul.addr %s4189, 32
          %s4191 = scalar_lea.vmem [#allocation16], %s4190
          %4193 = dma.done %s4188, 512
        $region112: #{tpu_custom_call.1} parent=107 // pred_fallthru
          _
        // Predicated region
        $region113: #{tpu_custom_call.1} parent=107 // pred_check
          %p4194 = pneg %p323
        $region114: #{tpu_custom_call.1} parent=107 // pred_check_branch
          %4196 = sbr.rel (%p4194) target = $region116
        $region115: #{tpu_custom_call.1} parent=107 // pred_region
          %s4197 = sand.u32 %s308, 1
          %s4198 = scalar_lea.sflag [#allocation18], %s4197
          %s4199 = sand.u32 %s308, 1
          %s4200 = smul.addr %s4199, 192
          %s4201 = scalar_lea.vmem [#allocation17], %s4200
          %4203 = dma.done %s4198, 3072
        $region116: #{tpu_custom_call.1} parent=107 // pred_fallthru
          _
      $region108: #{tpu_custom_call.1} parent=5 // pred_fallthru
        _
    $region6: #{tpu_custom_call.1} parent=1 // loop_footer
      %s36 = sadd.s32 1, %s32
    $region7: #{tpu_custom_call.1} parent=1 // loop_footer_branch
      %31 = sbr.rel target = $region3
    $region8: #{tpu_custom_call.1} parent=1 // loop_exit
      _
    %4204 = vsyncpa [#allocation3], 1
    %s4205 = scalar_lea.sflag [#allocation3], 1
    %4206 = vsyncpa %s4205, 1
    %4207 = vsyncpa [#allocation6], 1
    %4208 = vsyncpa [#allocation9], 1
    %4209 = vsyncpa [#allocation12], 1
    %4210 = vsyncpa [#allocation15], 1
    %4211 = vsyncpa [#allocation4], 1
    %s4212 = scalar_lea.sflag [#allocation4], 1
    %4213 = vsyncpa %s4212, 1
    %4214 = vsyncpa [#allocation18], 1
    %s4215 = scalar_lea.sflag [#allocation18], 1
    %4216 = vsyncpa %s4215, 1

</llo_original>
